<compile_context>
chip_gen: v7x
topology: tpu7x:2x2x1
jax: 0.10.0
libtpu: 0.0.40
codegen_flags: <defaults>
</compile_context>

<pallas_src>
import functools
import math

import jax
import jax.numpy as jnp
from jax.experimental import pallas as pl
from jax.experimental.pallas import tpu as pltpu

MATMUL_DTYPE = jnp.bfloat16     # MXU-native operand dtype (f32 accumulation kept)
ACT_DTYPE = jnp.bfloat16        # inter-layer activation storage dtype
_LN_EPS = 1e-5
_NEG_BIG = -10000.0


def _tpu_defaults():
    """(vmem_limit_bytes, row_tile) tuned per TPU generation."""
    kind = ""
    try:
        kind = jax.devices()[0].device_kind.lower()
    except Exception:
        pass
    if ("v5" in kind) or ("v6" in kind):       # 128 MiB physical VMEM
        return 96 * 1024 * 1024, 1024
    return 40 * 1024 * 1024, 512               # v7x (64 MiB physical) / unknown


_VMEM_LIMIT, _ROW_TILE = _tpu_defaults()


def _mm(a, b):
    """MXU matmul: bf16 operands, f32 accumulation."""
    return jnp.dot(a.astype(MATMUL_DTYPE), b.astype(MATMUL_DTYPE),
                   preferred_element_type=jnp.float32)


def _qk(a, b):
    """a: [Sq, dk], b: [Sk, dk] -> a @ b^T (contract last-with-last)."""
    return jax.lax.dot_general(
        a.astype(MATMUL_DTYPE), b.astype(MATMUL_DTYPE),
        (((1,), (1,)), ((), ())), preferred_element_type=jnp.float32)


def _layernorm(y, g, b, eps):
    mu = jnp.mean(y, axis=-1, keepdims=True)
    yc = y - mu
    var = jnp.mean(yc * yc, axis=-1, keepdims=True)        # biased, as nn.LayerNorm
    return yc * jax.lax.rsqrt(var + eps) * g + b


def _attention(q, k, v, bias, n_head, ctx_sc):
    """Per-head softmax attention; heads write into the VMEM scratch slab."""
    dk = q.shape[-1] // n_head
    for h in range(n_head):                                 # static unroll over heads
        sl = slice(h * dk, (h + 1) * dk)
        s = _qk(q[:, sl], k[:, sl])                         # q already carries the scale
        if bias is not None:
            s = s + bias                                    # hoisted additive mask bias
        s = s - jnp.max(s, axis=-1, keepdims=True)
        p = jnp.exp(s)
        p = p * pl.reciprocal(jnp.sum(p, axis=-1, keepdims=True), approx=True)
        ctx_sc[:, sl] = _mm(p, v[:, sl])                    # lane-dense f32 slab
    return ctx_sc[...]


# ----------------------------- fused decoder layer -----------------------------

def _decoder_layer_kernel(x_ref, nv_ref, im_ref,
                          wqkv_ref, bqkv_ref, wo1_ref, bo1_ref, g1_ref, be1_ref,
                          wq_ref, bq_ref, wkv_ref, bkv_ref, wo2_ref, bo2_ref,
                          g2_ref, be2_ref,
                          w1_ref, bf1_ref, w2_ref, bf2_ref, g3_ref, be3_ref,
                          o_ref, ctx_sc, *, n_head, scale, eps):
    x = x_ref[0].astype(jnp.float32)                        # [St, D]  residual/LN in f32
    St, D = x.shape

    # ---- masked self-attention ------------------------------------------------
    # Rebuild the additive mask bias in-kernel from per-query valid-key counts:
    # avoids reading a [B, St, St] f32 mask from HBM every layer.
    nv = nv_ref[0]                                          # [St, 1] int32
    col = jax.lax.broadcasted_iota(jnp.int32, (St, St), 1)
    bias = jnp.where(col < nv, 0.0, _NEG_BIG)               # [St, St], built once per block

    qkv = _mm(x_ref[0], wqkv_ref[...]) + bqkv_ref[...]      # fused QKV: [St, 3D]
    q = qkv[:, :D] * scale                                  # scale folded into Q once
    k = qkv[:, D:2 * D]
    v = qkv[:, 2 * D:]
    ctx = _attention(q, k, v, bias, n_head, ctx_sc)         # [St, D]
    attn = _mm(ctx, wo1_ref[...]) + bo1_ref[...]
    x = _layernorm(x + attn, g1_ref[...], be1_ref[...], eps)

    # ---- cross-attention over image embeddings (all-ones mask -> elided) ------
    qc = (_mm(x, wq_ref[...]) + bq_ref[...]) * scale        # [St, D]
    kv = _mm(im_ref[0], wkv_ref[...]) + bkv_ref[...]        # fused K/V: [S_im, 2D]
    kc = kv[:, :D]
    vc = kv[:, D:]
    ctx = _attention(qc, kc, vc, None, n_head, ctx_sc)
    attn = _mm(ctx, wo2_ref[...]) + bo2_ref[...]
    x = _layernorm(x + attn, g2_ref[...], be2_ref[...], eps)

    # ---- position-wise FFN (ReLU) ----------------------------------------------
    h = jnp.maximum(_mm(x, w1_ref[...]) + bf1_ref[...], 0.0)
    f = _mm(h, w2_ref[...]) + bf2_ref[...]
    x = _layernorm(x + f, g3_ref[...], be3_ref[...], eps)

    o_ref[0] = x.astype(o_ref.dtype)                        # bf16 lane-dense store


def pallas_decoder_layer(x, nv, im_emb, lp, n_head):
    B, St, D = x.shape
    S_im = im_emb.shape[1]
    H = lp["ffn"]["w1"].shape[1]
    dk = D // n_head
    kernel = functools.partial(_decoder_layer_kernel, n_head=n_head,
                               scale=1.0 / math.sqrt(dk), eps=_LN_EPS)

    sa, ca, ff = lp["self_attn"], lp["cross_attn"], lp["ffn"]
    mt = MATMUL_DTYPE

    inputs = [
        x.astype(ACT_DTYPE),
        nv,
        im_emb.astype(ACT_DTYPE),
        sa["wqkv"].astype(mt), sa["bqkv"].reshape(1, 3 * D),
        sa["wo"].astype(mt), sa["bo"].reshape(1, D),
        lp["norm1"]["g"].reshape(1, D), lp["norm1"]["b"].reshape(1, D),
        ca["wq"].astype(mt), ca["bq"].reshape(1, D),
        ca["wkv"].astype(mt), ca["bkv"].reshape(1, 2 * D),
        ca["wo"].astype(mt), ca["bo"].reshape(1, D),
        lp["norm2"]["g"].reshape(1, D), lp["norm2"]["b"].reshape(1, D),
        ff["w1"].astype(mt), ff["b1"].reshape(1, H),
        ff["w2"].astype(mt), ff["b2"].reshape(1, D),
        lp["norm3"]["g"].reshape(1, D), lp["norm3"]["b"].reshape(1, D),
    ]

    def const2(shape):
        # Grid-invariant weight / bias / LN blocks (always block (0, 0)).
        # TODO(synk): pipeline_mode=pl.Buffered(1) would halve their VMEM
        # footprint (relevant on v7x at large d_model / ffn_hidden).
        return pl.BlockSpec(shape, lambda i: (0, 0))

    in_specs = [
        pl.BlockSpec((1, St, D), lambda i: (i, 0, 0)),       # x
        pl.BlockSpec((1, St, 1), lambda i: (i, 0, 0)),       # nv (valid-key counts)
        pl.BlockSpec((1, S_im, D), lambda i: (i, 0, 0)),     # im_emb
        const2((D, 3 * D)), const2((1, 3 * D)),              # self-attn QKV
        const2((D, D)), const2((1, D)),                      # self-attn out proj
        const2((1, D)), const2((1, D)),                      # norm1
        const2((D, D)), const2((1, D)),                      # cross-attn Q
        const2((D, 2 * D)), const2((1, 2 * D)),              # cross-attn KV
        const2((D, D)), const2((1, D)),                      # cross-attn out proj
        const2((1, D)), const2((1, D)),                      # norm2
        const2((D, H)), const2((1, H)),                      # FFN w1
        const2((H, D)), const2((1, D)),                      # FFN w2
        const2((1, D)), const2((1, D)),                      # norm3
    ]

    flops = B * (2 * St * D * 3 * D + 4 * St * St * D + 2 * St * D * D      # self-attn
                 + 2 * St * D * D + 4 * S_im * D * D                        # cross q / kv
                 + 4 * St * S_im * D + 2 * St * D * D                       # cross attn / out
                 + 4 * St * D * H)                                          # FFN
    transc = B * n_head * St * (St + S_im) + 3 * B * St
    bytes_acc = (2 * (2 * B * St * D + B * S_im * D)                        # bf16 activations
                 + 2 * (8 * D * D + 2 * D * H)                              # bf16 weights
                 + 4 * (B * St + 12 * D + H))                               # int32 nv + f32 vecs

    return pl.pallas_call(
        kernel,
        out_shape=jax.ShapeDtypeStruct((B, St, D), ACT_DTYPE),
        grid=(B,),
        in_specs=in_specs,
        out_specs=pl.BlockSpec((1, St, D), lambda i: (i, 0, 0)),
        scratch_shapes=[pltpu.VMEM((St, D), jnp.float32)],   # per-head ctx slab
        compiler_params=pltpu.CompilerParams(
            dimension_semantics=("parallel",), vmem_limit_bytes=_VMEM_LIMIT),
        cost_estimate=pl.CostEstimate(flops=int(flops), transcendentals=int(transc),
                                      bytes_accessed=int(bytes_acc)),
    )(*inputs)


# ----------------------------- tiled vocab head -----------------------------

def _linear_kernel(x_ref, w_ref, b_ref, o_ref):
    o_ref[...] = _mm(x_ref[...], w_ref[...]) + b_ref[...]


def pallas_linear(x, w, b, *, col_tile=2048):
    M, K = x.shape
    N = w.shape[1]
    tm = min(M, _ROW_TILE)
    tn = min(N, col_tile)
    return pl.pallas_call(
        _linear_kernel,
        out_shape=jax.ShapeDtypeStruct((M, N), jnp.float32),
        grid=(pl.cdiv(M, tm), pl.cdiv(N, tn)),
        in_specs=[
            pl.BlockSpec((tm, K), lambda i, j: (i, 0)),
            pl.BlockSpec((K, tn), lambda i, j: (0, j)),      # vocab dim tiled
            pl.BlockSpec((1, tn), lambda i, j: (0, j)),
        ],
        out_specs=pl.BlockSpec((tm, tn), lambda i, j: (i, j)),
        compiler_params=pltpu.CompilerParams(
            dimension_semantics=("parallel", "parallel"),
            vmem_limit_bytes=_VMEM_LIMIT),
        cost_estimate=pl.CostEstimate(
            flops=2 * M * K * N, transcendentals=0,
            bytes_accessed=2 * (M * K + K * N) + 4 * (M * N + N)),
    )(x.astype(MATMUL_DTYPE), w.astype(MATMUL_DTYPE), b.reshape(1, N))


# ----------------------------- model glue -----------------------------

def transformer_forward(params, im_emb, tgt, tgt_pad_mask, tgt_causal_mask, n_head):
    B, St = tgt.shape
    V, D = params["tok_emb"].shape

    # Embedding: token gather + sinusoidal positional encoding (dropout = identity).
    # TODO(synk): the data-dependent token gather stays as a plain XLA gather.
    x = params["tok_emb"][tgt] + params["pos_emb"][:St][None, :, :]
    x = x.astype(ACT_DTYPE)

    # Combine pad & causal masks into per-(batch, query-row) valid-key counts.
    # The kernels rebuild the additive mask bias from this [B, St, 1] int32
    # tensor with in-kernel iota compares (no quadratic mask HBM traffic).
    # TODO(synk): assumes the combined mask is a row-prefix mask (true for
    # pad & causal masks); a fully arbitrary mask would need the dense path.
    mask = jnp.logical_and(tgt_pad_mask, tgt_causal_mask)        # [B,1,St,St]
    mask = jnp.broadcast_to(mask, (B, 1, St, St)).reshape(B, St, St)
    nv = jnp.sum(mask.astype(jnp.int32), axis=-1).reshape(B, St, 1)
    # Cross-attention mask is all-ones (image tokens never padded) -> elided.

    for lp in params["layers"]:
        x = pallas_decoder_layer(x, nv, im_emb, lp, n_head)

    logits = pallas_linear(x.reshape(B * St, D), params["out_w"], params["out_b"])
    return logits.reshape(B, St, V)


# ----------------------------- parameter init -----------------------------

def sinusoidal_encoding(max_len, d_model):
    pos = jnp.arange(max_len, dtype=jnp.float32)[:, None]
    i = jnp.arange(0, d_model, 2, dtype=jnp.float32)[None, :]
    angle = pos / jnp.power(10000.0, i / d_model)
    pe = jnp.zeros((max_len, d_model), jnp.float32)
    pe = pe.at[:, 0::2].set(jnp.sin(angle))
    pe = pe.at[:, 1::2].set(jnp.cos(angle))
    return pe


def init_params(key, vocab_size, d_model, n_head, max_len, ffn_hidden, n_layers):
    def lin_init(k, fin, fout):
        w = 0.02 * jax.random.normal(k, (fin, fout), jnp.float32)
        b = jnp.zeros((fout,), jnp.float32)
        return w, b

    keys = jax.random.split(key, n_layers + 2)
    params = {
        "tok_emb": 0.02 * jax.random.normal(keys[0], (vocab_size, d_model), jnp.float32),
        "pos_emb": sinusoidal_encoding(max_len, d_model),
    }
    params["out_w"], params["out_b"] = lin_init(keys[1], d_model, vocab_size)

    def self_attn_params(kq, kk, kv, ko):
        wq, bq = lin_init(kq, d_model, d_model)
        wk, bk = lin_init(kk, d_model, d_model)
        wv, bv = lin_init(kv, d_model, d_model)
        wo, bo = lin_init(ko, d_model, d_model)
        return dict(wqkv=jnp.concatenate([wq, wk, wv], axis=1),
                    bqkv=jnp.concatenate([bq, bk, bv], axis=0),
                    wo=wo, bo=bo)

    def cross_attn_params(kq, kk, kv, ko):
        wq, bq = lin_init(kq, d_model, d_model)
        wk, bk = lin_init(kk, d_model, d_model)
        wv, bv = lin_init(kv, d_model, d_model)
        wo, bo = lin_init(ko, d_model, d_model)
        return dict(wq=wq, bq=bq,
                    wkv=jnp.concatenate([wk, wv], axis=1),
                    bkv=jnp.concatenate([bk, bv], axis=0),
                    wo=wo, bo=bo)

    def ln_params():
        return dict(g=jnp.ones((d_model,), jnp.float32),
                    b=jnp.zeros((d_model,), jnp.float32))

    layers = []
    for l in range(n_layers):
        lk = jax.random.split(keys[2 + l], 10)
        w1, b1 = lin_init(lk[8], d_model, ffn_hidden)
        w2, b2 = lin_init(lk[9], ffn_hidden, d_model)
        layers.append({
            "self_attn": self_attn_params(lk[0], lk[1], lk[2], lk[3]),
            "cross_attn": cross_attn_params(lk[4], lk[5], lk[6], lk[7]),
            "ffn": dict(w1=w1, b1=b1, w2=w2, b2=b2),
            "norm1": ln_params(),
            "norm2": ln_params(),
            "norm3": ln_params(),
        })
    params["layers"] = layers
    return params


# ----------------------------- demo -----------------------------

if __name__ == "__main__":
    vocab_size, d_model, n_head, max_len = 32, 32, 4, 16
    ffn_hidden, n_layers = 64, 2
    B, St, S_im = 2, 8, 8

    key = jax.random.PRNGKey(0)
    k_params, k_im, k_tgt = jax.random.split(key, 3)

    params = init_params(k_params, vocab_size, d_model, n_head, max_len,
                         ffn_hidden, n_layers)

    im_emb = jax.random.normal(k_im, (B, S_im, d_model), jnp.float32)
    tgt = jax.random.randint(k_tgt, (B, St), 0, vocab_size)

    # pad mask: second sequence has 2 padding tokens at the end.
    lengths = jnp.array([St, St - 2])
    tgt_pad_mask = (jnp.arange(St)[None, :] < lengths[:, None])[:, None, None, :]      # [B,1,1,St]
    tgt_causal_mask = jnp.tril(jnp.ones((St, St), dtype=jnp.bool_))[None, None, :, :]  # [1,1,St,St]

    out = transformer_forward(params, im_emb, tgt, tgt_pad_mask, tgt_causal_mask, n_head)
    out = jax.block_until_ready(out)
    assert out.shape == (B, St, vocab_size)
    assert bool(jnp.all(jnp.isfinite(out)))
    print("KERNEL_OK")
</pallas_src>

<mosaic_0001>
module attributes {stable_mosaic.version = 11 : i64} {
  func.func @_decoder_layer_kernel(%arg0: i32, %arg1: memref<1x8x32xbf16, #tpu.memory_space<vmem>>, %arg2: memref<1x8x1xi32, #tpu.memory_space<vmem>>, %arg3: memref<1x8x32xbf16, #tpu.memory_space<vmem>>, %arg4: memref<32x96xbf16, #tpu.memory_space<vmem>>, %arg5: memref<1x96xf32, #tpu.memory_space<vmem>>, %arg6: memref<32x32xbf16, #tpu.memory_space<vmem>>, %arg7: memref<1x32xf32, #tpu.memory_space<vmem>>, %arg8: memref<1x32xf32, #tpu.memory_space<vmem>>, %arg9: memref<1x32xf32, #tpu.memory_space<vmem>>, %arg10: memref<32x32xbf16, #tpu.memory_space<vmem>>, %arg11: memref<1x32xf32, #tpu.memory_space<vmem>>, %arg12: memref<32x64xbf16, #tpu.memory_space<vmem>>, %arg13: memref<1x64xf32, #tpu.memory_space<vmem>>, %arg14: memref<32x32xbf16, #tpu.memory_space<vmem>>, %arg15: memref<1x32xf32, #tpu.memory_space<vmem>>, %arg16: memref<1x32xf32, #tpu.memory_space<vmem>>, %arg17: memref<1x32xf32, #tpu.memory_space<vmem>>, %arg18: memref<32x64xbf16, #tpu.memory_space<vmem>>, %arg19: memref<1x64xf32, #tpu.memory_space<vmem>>, %arg20: memref<64x32xbf16, #tpu.memory_space<vmem>>, %arg21: memref<1x32xf32, #tpu.memory_space<vmem>>, %arg22: memref<1x32xf32, #tpu.memory_space<vmem>>, %arg23: memref<1x32xf32, #tpu.memory_space<vmem>>, %arg24: memref<1x8x32xbf16, #tpu.memory_space<vmem>>, %arg25: memref<8x32xf32, #tpu.memory_space<vmem>>) attributes {dimension_semantics = [#tpu.dimension_semantics<parallel>], iteration_bounds = array<i64: 2>, scalar_prefetch = 0 : i64, scratch_operands = 1 : i64, tpu.core_type = #tpu.core_type<tc>, window_params = [{transform_indices = @transform_0, window_bounds = array<i64: 1, 8, 32>}, {transform_indices = @transform_1, window_bounds = array<i64: 1, 8, 1>}, {transform_indices = @transform_2, window_bounds = array<i64: 1, 8, 32>}, {pipeline_mode = #tpu.pipeline_mode<synchronous>, transform_indices = @transform_3, window_bounds = array<i64: 32, 96>}, {pipeline_mode = #tpu.pipeline_mode<synchronous>, transform_indices = @transform_4, window_bounds = array<i64: 1, 96>}, {pipeline_mode = #tpu.pipeline_mode<synchronous>, transform_indices = @transform_5, window_bounds = array<i64: 32, 32>}, {pipeline_mode = #tpu.pipeline_mode<synchronous>, transform_indices = @transform_6, window_bounds = array<i64: 1, 32>}, {pipeline_mode = #tpu.pipeline_mode<synchronous>, transform_indices = @transform_7, window_bounds = array<i64: 1, 32>}, {pipeline_mode = #tpu.pipeline_mode<synchronous>, transform_indices = @transform_8, window_bounds = array<i64: 1, 32>}, {pipeline_mode = #tpu.pipeline_mode<synchronous>, transform_indices = @transform_9, window_bounds = array<i64: 32, 32>}, {pipeline_mode = #tpu.pipeline_mode<synchronous>, transform_indices = @transform_10, window_bounds = array<i64: 1, 32>}, {pipeline_mode = #tpu.pipeline_mode<synchronous>, transform_indices = @transform_11, window_bounds = array<i64: 32, 64>}, {pipeline_mode = #tpu.pipeline_mode<synchronous>, transform_indices = @transform_12, window_bounds = array<i64: 1, 64>}, {pipeline_mode = #tpu.pipeline_mode<synchronous>, transform_indices = @transform_13, window_bounds = array<i64: 32, 32>}, {pipeline_mode = #tpu.pipeline_mode<synchronous>, transform_indices = @transform_14, window_bounds = array<i64: 1, 32>}, {pipeline_mode = #tpu.pipeline_mode<synchronous>, transform_indices = @transform_15, window_bounds = array<i64: 1, 32>}, {pipeline_mode = #tpu.pipeline_mode<synchronous>, transform_indices = @transform_16, window_bounds = array<i64: 1, 32>}, {pipeline_mode = #tpu.pipeline_mode<synchronous>, transform_indices = @transform_17, window_bounds = array<i64: 32, 64>}, {pipeline_mode = #tpu.pipeline_mode<synchronous>, transform_indices = @transform_18, window_bounds = array<i64: 1, 64>}, {pipeline_mode = #tpu.pipeline_mode<synchronous>, transform_indices = @transform_19, window_bounds = array<i64: 64, 32>}, {pipeline_mode = #tpu.pipeline_mode<synchronous>, transform_indices = @transform_20, window_bounds = array<i64: 1, 32>}, {pipeline_mode = #tpu.pipeline_mode<synchronous>, transform_indices = @transform_21, window_bounds = array<i64: 1, 32>}, {pipeline_mode = #tpu.pipeline_mode<synchronous>, transform_indices = @transform_22, window_bounds = array<i64: 1, 32>}, {transform_indices = @transform_23, window_bounds = array<i64: 1, 8, 32>}]} {
    %c0 = arith.constant 0 : index
    %c0_0 = arith.constant 0 : index
    %c0_1 = arith.constant 0 : index
    %0 = vector.load %arg1[%c0, %c0_0, %c0_1] : memref<1x8x32xbf16, #tpu.memory_space<vmem>>, vector<1x8x32xbf16>
    %1 = vector.shape_cast %0 : vector<1x8x32xbf16> to vector<8x32xbf16>
    %2 = arith.extf %1 : vector<8x32xbf16> to vector<8x32xf32>
    %c0_2 = arith.constant 0 : index
    %c0_3 = arith.constant 0 : index
    %c0_4 = arith.constant 0 : index
    %3 = vector.load %arg2[%c0_2, %c0_3, %c0_4] : memref<1x8x1xi32, #tpu.memory_space<vmem>>, vector<1x8x1xi32>
    %4 = vector.shape_cast %3 : vector<1x8x1xi32> to vector<8x1xi32>
    %5 = tpu.iota {dimensions = array<i32: 1>} : vector<8x8xi32>
    %6 = vector.broadcast %4 : vector<8x1xi32> to vector<8x8xi32>
    %7 = arith.cmpi slt, %5, %6 : vector<8x8xi32>
    %cst = arith.constant 0.000000e+00 : f32
    %cst_5 = arith.constant -1.000000e+04 : f32
    %8 = vector.broadcast %cst : f32 to vector<8x8xf32>
    %9 = vector.broadcast %cst_5 : f32 to vector<8x8xf32>
    %10 = arith.select %7, %8, %9 : vector<8x8xi1>, vector<8x8xf32>
    %c0_6 = arith.constant 0 : index
    %c0_7 = arith.constant 0 : index
    %c0_8 = arith.constant 0 : index
    %11 = vector.load %arg1[%c0_6, %c0_7, %c0_8] : memref<1x8x32xbf16, #tpu.memory_space<vmem>>, vector<1x8x32xbf16>
    %12 = vector.shape_cast %11 : vector<1x8x32xbf16> to vector<8x32xbf16>
    %c0_9 = arith.constant 0 : index
    %c0_10 = arith.constant 0 : index
    %13 = vector.load %arg4[%c0_9, %c0_10] : memref<32x96xbf16, #tpu.memory_space<vmem>>, vector<32x96xbf16>
    %cst_11 = arith.constant dense<0.000000e+00> : vector<8x96xf32>
    %14 = tpu.matmul %12, %13, %cst_11 {dimension_numbers = #tpu.dot_dimension_numbers<[1], [0], [0], [1], [0, 0, 1, 1], [], []>} : vector<8x32xbf16>, vector<32x96xbf16>, vector<8x96xf32> -> vector<8x96xf32>
    %c0_12 = arith.constant 0 : index
    %c0_13 = arith.constant 0 : index
    %15 = vector.load %arg5[%c0_12, %c0_13] : memref<1x96xf32, #tpu.memory_space<vmem>>, vector<1x96xf32>
    %16 = vector.broadcast %15 : vector<1x96xf32> to vector<8x96xf32>
    %17 = arith.addf %14, %16 : vector<8x96xf32>
    %18 = vector.extract_strided_slice %17 {offsets = [0, 0], sizes = [8, 32], strides = [1, 1]} : vector<8x96xf32> to vector<8x32xf32>
    %cst_14 = arith.constant 0.353553385 : f32
    %19 = vector.broadcast %cst_14 : f32 to vector<8x32xf32>
    %20 = arith.mulf %18, %19 : vector<8x32xf32>
    %21 = vector.extract_strided_slice %17 {offsets = [0, 32], sizes = [8, 32], strides = [1, 1]} : vector<8x96xf32> to vector<8x32xf32>
    %22 = vector.extract_strided_slice %17 {offsets = [0, 64], sizes = [8, 32], strides = [1, 1]} : vector<8x96xf32> to vector<8x32xf32>
    %23 = vector.extract_strided_slice %20 {offsets = [0, 0], sizes = [8, 8], strides = [1, 1]} : vector<8x32xf32> to vector<8x8xf32>
    %24 = vector.extract_strided_slice %21 {offsets = [0, 0], sizes = [8, 8], strides = [1, 1]} : vector<8x32xf32> to vector<8x8xf32>
    %25 = arith.truncf %23 : vector<8x8xf32> to vector<8x8xbf16>
    %26 = arith.truncf %24 : vector<8x8xf32> to vector<8x8xbf16>
    %cst_15 = arith.constant dense<0.000000e+00> : vector<8x8xf32>
    %27 = tpu.matmul %25, %26, %cst_15 {dimension_numbers = #tpu.dot_dimension_numbers<[1], [1], [0], [0], [0, 0, 1, 0], [], []>} : vector<8x8xbf16>, vector<8x8xbf16>, vector<8x8xf32> -> vector<8x8xf32>
    %28 = arith.addf %27, %10 : vector<8x8xf32>
    %cst_16 = arith.constant dense<0xFF800000> : vector<8xf32>
    %29 = vector.multi_reduction <maximumf>, %28, %cst_16 [1] : vector<8x8xf32> to vector<8xf32>
    %30 = vector.shape_cast %29 : vector<8xf32> to vector<8x1xf32>
    %31 = vector.broadcast %30 : vector<8x1xf32> to vector<8x8xf32>
    %32 = arith.subf %28, %31 : vector<8x8xf32>
    %33 = math.exp %32 : vector<8x8xf32>
    %cst_17 = arith.constant dense<0.000000e+00> : vector<8xf32>
    %34 = vector.multi_reduction <add>, %33, %cst_17 [1] : vector<8x8xf32> to vector<8xf32>
    %35 = vector.shape_cast %34 : vector<8xf32> to vector<8x1xf32>
    %36 = tpu.reciprocal %35 {approx = true} : vector<8x1xf32> -> vector<8x1xf32>
    %37 = vector.broadcast %36 : vector<8x1xf32> to vector<8x8xf32>
    %38 = arith.mulf %33, %37 : vector<8x8xf32>
    %39 = vector.extract_strided_slice %22 {offsets = [0, 0], sizes = [8, 8], strides = [1, 1]} : vector<8x32xf32> to vector<8x8xf32>
    %40 = arith.truncf %38 : vector<8x8xf32> to vector<8x8xbf16>
    %41 = arith.truncf %39 : vector<8x8xf32> to vector<8x8xbf16>
    %cst_18 = arith.constant dense<0.000000e+00> : vector<8x8xf32>
    %42 = tpu.matmul %40, %41, %cst_18 {dimension_numbers = #tpu.dot_dimension_numbers<[1], [0], [0], [1], [0, 0, 1, 1], [], []>} : vector<8x8xbf16>, vector<8x8xbf16>, vector<8x8xf32> -> vector<8x8xf32>
    %c0_19 = arith.constant 0 : index
    %c0_20 = arith.constant 0 : index
    %43 = vector.load %arg25[%c0_19, %c0_20] : memref<8x32xf32, #tpu.memory_space<vmem>>, vector<8x8xf32>
    tpu.vector_store %arg25[%c0_19, %c0_20], %42 {strides = array<i32>} : memref<8x32xf32, #tpu.memory_space<vmem>>, vector<8x8xf32>,
    %44 = vector.extract_strided_slice %20 {offsets = [0, 8], sizes = [8, 8], strides = [1, 1]} : vector<8x32xf32> to vector<8x8xf32>
    %45 = vector.extract_strided_slice %21 {offsets = [0, 8], sizes = [8, 8], strides = [1, 1]} : vector<8x32xf32> to vector<8x8xf32>
    %46 = arith.truncf %44 : vector<8x8xf32> to vector<8x8xbf16>
    %47 = arith.truncf %45 : vector<8x8xf32> to vector<8x8xbf16>
    %cst_21 = arith.constant dense<0.000000e+00> : vector<8x8xf32>
    %48 = tpu.matmul %46, %47, %cst_21 {dimension_numbers = #tpu.dot_dimension_numbers<[1], [1], [0], [0], [0, 0, 1, 0], [], []>} : vector<8x8xbf16>, vector<8x8xbf16>, vector<8x8xf32> -> vector<8x8xf32>
    %49 = arith.addf %48, %10 : vector<8x8xf32>
    %cst_22 = arith.constant dense<0xFF800000> : vector<8xf32>
    %50 = vector.multi_reduction <maximumf>, %49, %cst_22 [1] : vector<8x8xf32> to vector<8xf32>
    %51 = vector.shape_cast %50 : vector<8xf32> to vector<8x1xf32>
    %52 = vector.broadcast %51 : vector<8x1xf32> to vector<8x8xf32>
    %53 = arith.subf %49, %52 : vector<8x8xf32>
    %54 = math.exp %53 : vector<8x8xf32>
    %cst_23 = arith.constant dense<0.000000e+00> : vector<8xf32>
    %55 = vector.multi_reduction <add>, %54, %cst_23 [1] : vector<8x8xf32> to vector<8xf32>
    %56 = vector.shape_cast %55 : vector<8xf32> to vector<8x1xf32>
    %57 = tpu.reciprocal %56 {approx = true} : vector<8x1xf32> -> vector<8x1xf32>
    %58 = vector.broadcast %57 : vector<8x1xf32> to vector<8x8xf32>
    %59 = arith.mulf %54, %58 : vector<8x8xf32>
    %60 = vector.extract_strided_slice %22 {offsets = [0, 8], sizes = [8, 8], strides = [1, 1]} : vector<8x32xf32> to vector<8x8xf32>
    %61 = arith.truncf %59 : vector<8x8xf32> to vector<8x8xbf16>
    %62 = arith.truncf %60 : vector<8x8xf32> to vector<8x8xbf16>
    %cst_24 = arith.constant dense<0.000000e+00> : vector<8x8xf32>
    %63 = tpu.matmul %61, %62, %cst_24 {dimension_numbers = #tpu.dot_dimension_numbers<[1], [0], [0], [1], [0, 0, 1, 1], [], []>} : vector<8x8xbf16>, vector<8x8xbf16>, vector<8x8xf32> -> vector<8x8xf32>
    %c0_25 = arith.constant 0 : index
    %c8 = arith.constant 8 : index
    %64 = vector.load %arg25[%c0_25, %c8] : memref<8x32xf32, #tpu.memory_space<vmem>>, vector<8x8xf32>
    tpu.vector_store %arg25[%c0_25, %c8], %63 {strides = array<i32>} : memref<8x32xf32, #tpu.memory_space<vmem>>, vector<8x8xf32>,
    %65 = vector.extract_strided_slice %20 {offsets = [0, 16], sizes = [8, 8], strides = [1, 1]} : vector<8x32xf32> to vector<8x8xf32>
    %66 = vector.extract_strided_slice %21 {offsets = [0, 16], sizes = [8, 8], strides = [1, 1]} : vector<8x32xf32> to vector<8x8xf32>
    %67 = arith.truncf %65 : vector<8x8xf32> to vector<8x8xbf16>
    %68 = arith.truncf %66 : vector<8x8xf32> to vector<8x8xbf16>
    %cst_26 = arith.constant dense<0.000000e+00> : vector<8x8xf32>
    %69 = tpu.matmul %67, %68, %cst_26 {dimension_numbers = #tpu.dot_dimension_numbers<[1], [1], [0], [0], [0, 0, 1, 0], [], []>} : vector<8x8xbf16>, vector<8x8xbf16>, vector<8x8xf32> -> vector<8x8xf32>
    %70 = arith.addf %69, %10 : vector<8x8xf32>
    %cst_27 = arith.constant dense<0xFF800000> : vector<8xf32>
    %71 = vector.multi_reduction <maximumf>, %70, %cst_27 [1] : vector<8x8xf32> to vector<8xf32>
    %72 = vector.shape_cast %71 : vector<8xf32> to vector<8x1xf32>
    %73 = vector.broadcast %72 : vector<8x1xf32> to vector<8x8xf32>
    %74 = arith.subf %70, %73 : vector<8x8xf32>
    %75 = math.exp %74 : vector<8x8xf32>
    %cst_28 = arith.constant dense<0.000000e+00> : vector<8xf32>
    %76 = vector.multi_reduction <add>, %75, %cst_28 [1] : vector<8x8xf32> to vector<8xf32>
    %77 = vector.shape_cast %76 : vector<8xf32> to vector<8x1xf32>
    %78 = tpu.reciprocal %77 {approx = true} : vector<8x1xf32> -> vector<8x1xf32>
    %79 = vector.broadcast %78 : vector<8x1xf32> to vector<8x8xf32>
    %80 = arith.mulf %75, %79 : vector<8x8xf32>
    %81 = vector.extract_strided_slice %22 {offsets = [0, 16], sizes = [8, 8], strides = [1, 1]} : vector<8x32xf32> to vector<8x8xf32>
    %82 = arith.truncf %80 : vector<8x8xf32> to vector<8x8xbf16>
    %83 = arith.truncf %81 : vector<8x8xf32> to vector<8x8xbf16>
    %cst_29 = arith.constant dense<0.000000e+00> : vector<8x8xf32>
    %84 = tpu.matmul %82, %83, %cst_29 {dimension_numbers = #tpu.dot_dimension_numbers<[1], [0], [0], [1], [0, 0, 1, 1], [], []>} : vector<8x8xbf16>, vector<8x8xbf16>, vector<8x8xf32> -> vector<8x8xf32>
    %c0_30 = arith.constant 0 : index
    %c16 = arith.constant 16 : index
    %85 = vector.load %arg25[%c0_30, %c16] : memref<8x32xf32, #tpu.memory_space<vmem>>, vector<8x8xf32>
    tpu.vector_store %arg25[%c0_30, %c16], %84 {strides = array<i32>} : memref<8x32xf32, #tpu.memory_space<vmem>>, vector<8x8xf32>,
    %86 = vector.extract_strided_slice %20 {offsets = [0, 24], sizes = [8, 8], strides = [1, 1]} : vector<8x32xf32> to vector<8x8xf32>
    %87 = vector.extract_strided_slice %21 {offsets = [0, 24], sizes = [8, 8], strides = [1, 1]} : vector<8x32xf32> to vector<8x8xf32>
    %88 = arith.truncf %86 : vector<8x8xf32> to vector<8x8xbf16>
    %89 = arith.truncf %87 : vector<8x8xf32> to vector<8x8xbf16>
    %cst_31 = arith.constant dense<0.000000e+00> : vector<8x8xf32>
    %90 = tpu.matmul %88, %89, %cst_31 {dimension_numbers = #tpu.dot_dimension_numbers<[1], [1], [0], [0], [0, 0, 1, 0], [], []>} : vector<8x8xbf16>, vector<8x8xbf16>, vector<8x8xf32> -> vector<8x8xf32>
    %91 = arith.addf %90, %10 : vector<8x8xf32>
    %cst_32 = arith.constant dense<0xFF800000> : vector<8xf32>
    %92 = vector.multi_reduction <maximumf>, %91, %cst_32 [1] : vector<8x8xf32> to vector<8xf32>
    %93 = vector.shape_cast %92 : vector<8xf32> to vector<8x1xf32>
    %94 = vector.broadcast %93 : vector<8x1xf32> to vector<8x8xf32>
    %95 = arith.subf %91, %94 : vector<8x8xf32>
    %96 = math.exp %95 : vector<8x8xf32>
    %cst_33 = arith.constant dense<0.000000e+00> : vector<8xf32>
    %97 = vector.multi_reduction <add>, %96, %cst_33 [1] : vector<8x8xf32> to vector<8xf32>
    %98 = vector.shape_cast %97 : vector<8xf32> to vector<8x1xf32>
    %99 = tpu.reciprocal %98 {approx = true} : vector<8x1xf32> -> vector<8x1xf32>
    %100 = vector.broadcast %99 : vector<8x1xf32> to vector<8x8xf32>
    %101 = arith.mulf %96, %100 : vector<8x8xf32>
    %102 = vector.extract_strided_slice %22 {offsets = [0, 24], sizes = [8, 8], strides = [1, 1]} : vector<8x32xf32> to vector<8x8xf32>
    %103 = arith.truncf %101 : vector<8x8xf32> to vector<8x8xbf16>
    %104 = arith.truncf %102 : vector<8x8xf32> to vector<8x8xbf16>
    %cst_34 = arith.constant dense<0.000000e+00> : vector<8x8xf32>
    %105 = tpu.matmul %103, %104, %cst_34 {dimension_numbers = #tpu.dot_dimension_numbers<[1], [0], [0], [1], [0, 0, 1, 1], [], []>} : vector<8x8xbf16>, vector<8x8xbf16>, vector<8x8xf32> -> vector<8x8xf32>
    %c0_35 = arith.constant 0 : index
    %c24 = arith.constant 24 : index
    %106 = vector.load %arg25[%c0_35, %c24] : memref<8x32xf32, #tpu.memory_space<vmem>>, vector<8x8xf32>
    tpu.vector_store %arg25[%c0_35, %c24], %105 {strides = array<i32>} : memref<8x32xf32, #tpu.memory_space<vmem>>, vector<8x8xf32>,
    %c0_36 = arith.constant 0 : index
    %c0_37 = arith.constant 0 : index
    %107 = vector.load %arg25[%c0_36, %c0_37] : memref<8x32xf32, #tpu.memory_space<vmem>>, vector<8x32xf32>
    %c0_38 = arith.constant 0 : index
    %c0_39 = arith.constant 0 : index
    %108 = vector.load %arg6[%c0_38, %c0_39] : memref<32x32xbf16, #tpu.memory_space<vmem>>, vector<32x32xbf16>
    %109 = arith.truncf %107 : vector<8x32xf32> to vector<8x32xbf16>
    %cst_40 = arith.constant dense<0.000000e+00> : vector<8x32xf32>
    %110 = tpu.matmul %109, %108, %cst_40 {dimension_numbers = #tpu.dot_dimension_numbers<[1], [0], [0], [1], [0, 0, 1, 1], [], []>} : vector<8x32xbf16>, vector<32x32xbf16>, vector<8x32xf32> -> vector<8x32xf32>
    %c0_41 = arith.constant 0 : index
    %c0_42 = arith.constant 0 : index
    %111 = vector.load %arg7[%c0_41, %c0_42] : memref<1x32xf32, #tpu.memory_space<vmem>>, vector<1x32xf32>
    %112 = vector.broadcast %111 : vector<1x32xf32> to vector<8x32xf32>
    %113 = arith.addf %110, %112 : vector<8x32xf32>
    %114 = arith.addf %2, %113 : vector<8x32xf32>
    %c0_43 = arith.constant 0 : index
    %c0_44 = arith.constant 0 : index
    %115 = vector.load %arg8[%c0_43, %c0_44] : memref<1x32xf32, #tpu.memory_space<vmem>>, vector<1x32xf32>
    %c0_45 = arith.constant 0 : index
    %c0_46 = arith.constant 0 : index
    %116 = vector.load %arg9[%c0_45, %c0_46] : memref<1x32xf32, #tpu.memory_space<vmem>>, vector<1x32xf32>
    %cst_47 = arith.constant dense<0.000000e+00> : vector<8xf32>
    %117 = vector.multi_reduction <add>, %114, %cst_47 [1] : vector<8x32xf32> to vector<8xf32>
    %118 = vector.shape_cast %117 : vector<8xf32> to vector<8x1xf32>
    %cst_48 = arith.constant 3.200000e+01 : f32
    %119 = vector.broadcast %cst_48 : f32 to vector<8x1xf32>
    %120 = arith.divf %118, %119 : vector<8x1xf32>
    %121 = vector.broadcast %120 : vector<8x1xf32> to vector<8x32xf32>
    %122 = arith.subf %114, %121 : vector<8x32xf32>
    %123 = arith.mulf %122, %122 : vector<8x32xf32>
    %cst_49 = arith.constant dense<0.000000e+00> : vector<8xf32>
    %124 = vector.multi_reduction <add>, %123, %cst_49 [1] : vector<8x32xf32> to vector<8xf32>
    %125 = vector.shape_cast %124 : vector<8xf32> to vector<8x1xf32>
    %cst_50 = arith.constant 3.200000e+01 : f32
    %126 = vector.broadcast %cst_50 : f32 to vector<8x1xf32>
    %127 = arith.divf %125, %126 : vector<8x1xf32>
    %cst_51 = arith.constant 9.99999974E-6 : f32
    %128 = vector.broadcast %cst_51 : f32 to vector<8x1xf32>
    %129 = arith.addf %127, %128 : vector<8x1xf32>
    %130 = math.rsqrt %129 : vector<8x1xf32>
    %131 = vector.broadcast %130 : vector<8x1xf32> to vector<8x32xf32>
    %132 = arith.mulf %122, %131 : vector<8x32xf32>
    %133 = vector.broadcast %115 : vector<1x32xf32> to vector<8x32xf32>
    %134 = arith.mulf %132, %133 : vector<8x32xf32>
    %135 = vector.broadcast %116 : vector<1x32xf32> to vector<8x32xf32>
    %136 = arith.addf %134, %135 : vector<8x32xf32>
    %c0_52 = arith.constant 0 : index
    %c0_53 = arith.constant 0 : index
    %137 = vector.load %arg10[%c0_52, %c0_53] : memref<32x32xbf16, #tpu.memory_space<vmem>>, vector<32x32xbf16>
    %138 = arith.truncf %136 : vector<8x32xf32> to vector<8x32xbf16>
    %cst_54 = arith.constant dense<0.000000e+00> : vector<8x32xf32>
    %139 = tpu.matmul %138, %137, %cst_54 {dimension_numbers = #tpu.dot_dimension_numbers<[1], [0], [0], [1], [0, 0, 1, 1], [], []>} : vector<8x32xbf16>, vector<32x32xbf16>, vector<8x32xf32> -> vector<8x32xf32>
    %c0_55 = arith.constant 0 : index
    %c0_56 = arith.constant 0 : index
    %140 = vector.load %arg11[%c0_55, %c0_56] : memref<1x32xf32, #tpu.memory_space<vmem>>, vector<1x32xf32>
    %141 = vector.broadcast %140 : vector<1x32xf32> to vector<8x32xf32>
    %142 = arith.addf %139, %141 : vector<8x32xf32>
    %cst_57 = arith.constant 0.353553385 : f32
    %143 = vector.broadcast %cst_57 : f32 to vector<8x32xf32>
    %144 = arith.mulf %142, %143 : vector<8x32xf32>
    %c0_58 = arith.constant 0 : index
    %c0_59 = arith.constant 0 : index
    %c0_60 = arith.constant 0 : index
    %145 = vector.load %arg3[%c0_58, %c0_59, %c0_60] : memref<1x8x32xbf16, #tpu.memory_space<vmem>>, vector<1x8x32xbf16>
    %146 = vector.shape_cast %145 : vector<1x8x32xbf16> to vector<8x32xbf16>
    %c0_61 = arith.constant 0 : index
    %c0_62 = arith.constant 0 : index
    %147 = vector.load %arg12[%c0_61, %c0_62] : memref<32x64xbf16, #tpu.memory_space<vmem>>, vector<32x64xbf16>
    %cst_63 = arith.constant dense<0.000000e+00> : vector<8x64xf32>
    %148 = tpu.matmul %146, %147, %cst_63 {dimension_numbers = #tpu.dot_dimension_numbers<[1], [0], [0], [1], [0, 0, 1, 1], [], []>} : vector<8x32xbf16>, vector<32x64xbf16>, vector<8x64xf32> -> vector<8x64xf32>
    %c0_64 = arith.constant 0 : index
    %c0_65 = arith.constant 0 : index
    %149 = vector.load %arg13[%c0_64, %c0_65] : memref<1x64xf32, #tpu.memory_space<vmem>>, vector<1x64xf32>
    %150 = vector.broadcast %149 : vector<1x64xf32> to vector<8x64xf32>
    %151 = arith.addf %148, %150 : vector<8x64xf32>
    %152 = vector.extract_strided_slice %151 {offsets = [0, 0], sizes = [8, 32], strides = [1, 1]} : vector<8x64xf32> to vector<8x32xf32>
    %153 = vector.extract_strided_slice %151 {offsets = [0, 32], sizes = [8, 32], strides = [1, 1]} : vector<8x64xf32> to vector<8x32xf32>
    %154 = vector.extract_strided_slice %144 {offsets = [0, 0], sizes = [8, 8], strides = [1, 1]} : vector<8x32xf32> to vector<8x8xf32>
    %155 = vector.extract_strided_slice %152 {offsets = [0, 0], sizes = [8, 8], strides = [1, 1]} : vector<8x32xf32> to vector<8x8xf32>
    %156 = arith.truncf %154 : vector<8x8xf32> to vector<8x8xbf16>
    %157 = arith.truncf %155 : vector<8x8xf32> to vector<8x8xbf16>
    %cst_66 = arith.constant dense<0.000000e+00> : vector<8x8xf32>
    %158 = tpu.matmul %156, %157, %cst_66 {dimension_numbers = #tpu.dot_dimension_numbers<[1], [1], [0], [0], [0, 0, 1, 0], [], []>} : vector<8x8xbf16>, vector<8x8xbf16>, vector<8x8xf32> -> vector<8x8xf32>
    %cst_67 = arith.constant dense<0xFF800000> : vector<8xf32>
    %159 = vector.multi_reduction <maximumf>, %158, %cst_67 [1] : vector<8x8xf32> to vector<8xf32>
    %160 = vector.shape_cast %159 : vector<8xf32> to vector<8x1xf32>
    %161 = vector.broadcast %160 : vector<8x1xf32> to vector<8x8xf32>
    %162 = arith.subf %158, %161 : vector<8x8xf32>
    %163 = math.exp %162 : vector<8x8xf32>
    %cst_68 = arith.constant dense<0.000000e+00> : vector<8xf32>
    %164 = vector.multi_reduction <add>, %163, %cst_68 [1] : vector<8x8xf32> to vector<8xf32>
    %165 = vector.shape_cast %164 : vector<8xf32> to vector<8x1xf32>
    %166 = tpu.reciprocal %165 {approx = true} : vector<8x1xf32> -> vector<8x1xf32>
    %167 = vector.broadcast %166 : vector<8x1xf32> to vector<8x8xf32>
    %168 = arith.mulf %163, %167 : vector<8x8xf32>
    %169 = vector.extract_strided_slice %153 {offsets = [0, 0], sizes = [8, 8], strides = [1, 1]} : vector<8x32xf32> to vector<8x8xf32>
    %170 = arith.truncf %168 : vector<8x8xf32> to vector<8x8xbf16>
    %171 = arith.truncf %169 : vector<8x8xf32> to vector<8x8xbf16>
    %cst_69 = arith.constant dense<0.000000e+00> : vector<8x8xf32>
    %172 = tpu.matmul %170, %171, %cst_69 {dimension_numbers = #tpu.dot_dimension_numbers<[1], [0], [0], [1], [0, 0, 1, 1], [], []>} : vector<8x8xbf16>, vector<8x8xbf16>, vector<8x8xf32> -> vector<8x8xf32>
    %c0_70 = arith.constant 0 : index
    %c0_71 = arith.constant 0 : index
    %173 = vector.load %arg25[%c0_70, %c0_71] : memref<8x32xf32, #tpu.memory_space<vmem>>, vector<8x8xf32>
    tpu.vector_store %arg25[%c0_70, %c0_71], %172 {strides = array<i32>} : memref<8x32xf32, #tpu.memory_space<vmem>>, vector<8x8xf32>,
    %174 = vector.extract_strided_slice %144 {offsets = [0, 8], sizes = [8, 8], strides = [1, 1]} : vector<8x32xf32> to vector<8x8xf32>
    %175 = vector.extract_strided_slice %152 {offsets = [0, 8], sizes = [8, 8], strides = [1, 1]} : vector<8x32xf32> to vector<8x8xf32>
    %176 = arith.truncf %174 : vector<8x8xf32> to vector<8x8xbf16>
    %177 = arith.truncf %175 : vector<8x8xf32> to vector<8x8xbf16>
    %cst_72 = arith.constant dense<0.000000e+00> : vector<8x8xf32>
    %178 = tpu.matmul %176, %177, %cst_72 {dimension_numbers = #tpu.dot_dimension_numbers<[1], [1], [0], [0], [0, 0, 1, 0], [], []>} : vector<8x8xbf16>, vector<8x8xbf16>, vector<8x8xf32> -> vector<8x8xf32>
    %cst_73 = arith.constant dense<0xFF800000> : vector<8xf32>
    %179 = vector.multi_reduction <maximumf>, %178, %cst_73 [1] : vector<8x8xf32> to vector<8xf32>
    %180 = vector.shape_cast %179 : vector<8xf32> to vector<8x1xf32>
    %181 = vector.broadcast %180 : vector<8x1xf32> to vector<8x8xf32>
    %182 = arith.subf %178, %181 : vector<8x8xf32>
    %183 = math.exp %182 : vector<8x8xf32>
    %cst_74 = arith.constant dense<0.000000e+00> : vector<8xf32>
    %184 = vector.multi_reduction <add>, %183, %cst_74 [1] : vector<8x8xf32> to vector<8xf32>
    %185 = vector.shape_cast %184 : vector<8xf32> to vector<8x1xf32>
    %186 = tpu.reciprocal %185 {approx = true} : vector<8x1xf32> -> vector<8x1xf32>
    %187 = vector.broadcast %186 : vector<8x1xf32> to vector<8x8xf32>
    %188 = arith.mulf %183, %187 : vector<8x8xf32>
    %189 = vector.extract_strided_slice %153 {offsets = [0, 8], sizes = [8, 8], strides = [1, 1]} : vector<8x32xf32> to vector<8x8xf32>
    %190 = arith.truncf %188 : vector<8x8xf32> to vector<8x8xbf16>
    %191 = arith.truncf %189 : vector<8x8xf32> to vector<8x8xbf16>
    %cst_75 = arith.constant dense<0.000000e+00> : vector<8x8xf32>
    %192 = tpu.matmul %190, %191, %cst_75 {dimension_numbers = #tpu.dot_dimension_numbers<[1], [0], [0], [1], [0, 0, 1, 1], [], []>} : vector<8x8xbf16>, vector<8x8xbf16>, vector<8x8xf32> -> vector<8x8xf32>
    %c0_76 = arith.constant 0 : index
    %c8_77 = arith.constant 8 : index
    %193 = vector.load %arg25[%c0_76, %c8_77] : memref<8x32xf32, #tpu.memory_space<vmem>>, vector<8x8xf32>
    tpu.vector_store %arg25[%c0_76, %c8_77], %192 {strides = array<i32>} : memref<8x32xf32, #tpu.memory_space<vmem>>, vector<8x8xf32>,
    %194 = vector.extract_strided_slice %144 {offsets = [0, 16], sizes = [8, 8], strides = [1, 1]} : vector<8x32xf32> to vector<8x8xf32>
    %195 = vector.extract_strided_slice %152 {offsets = [0, 16], sizes = [8, 8], strides = [1, 1]} : vector<8x32xf32> to vector<8x8xf32>
    %196 = arith.truncf %194 : vector<8x8xf32> to vector<8x8xbf16>
    %197 = arith.truncf %195 : vector<8x8xf32> to vector<8x8xbf16>
    %cst_78 = arith.constant dense<0.000000e+00> : vector<8x8xf32>
    %198 = tpu.matmul %196, %197, %cst_78 {dimension_numbers = #tpu.dot_dimension_numbers<[1], [1], [0], [0], [0, 0, 1, 0], [], []>} : vector<8x8xbf16>, vector<8x8xbf16>, vector<8x8xf32> -> vector<8x8xf32>
    %cst_79 = arith.constant dense<0xFF800000> : vector<8xf32>
    %199 = vector.multi_reduction <maximumf>, %198, %cst_79 [1] : vector<8x8xf32> to vector<8xf32>
    %200 = vector.shape_cast %199 : vector<8xf32> to vector<8x1xf32>
    %201 = vector.broadcast %200 : vector<8x1xf32> to vector<8x8xf32>
    %202 = arith.subf %198, %201 : vector<8x8xf32>
    %203 = math.exp %202 : vector<8x8xf32>
    %cst_80 = arith.constant dense<0.000000e+00> : vector<8xf32>
    %204 = vector.multi_reduction <add>, %203, %cst_80 [1] : vector<8x8xf32> to vector<8xf32>
    %205 = vector.shape_cast %204 : vector<8xf32> to vector<8x1xf32>
    %206 = tpu.reciprocal %205 {approx = true} : vector<8x1xf32> -> vector<8x1xf32>
    %207 = vector.broadcast %206 : vector<8x1xf32> to vector<8x8xf32>
    %208 = arith.mulf %203, %207 : vector<8x8xf32>
    %209 = vector.extract_strided_slice %153 {offsets = [0, 16], sizes = [8, 8], strides = [1, 1]} : vector<8x32xf32> to vector<8x8xf32>
    %210 = arith.truncf %208 : vector<8x8xf32> to vector<8x8xbf16>
    %211 = arith.truncf %209 : vector<8x8xf32> to vector<8x8xbf16>
    %cst_81 = arith.constant dense<0.000000e+00> : vector<8x8xf32>
    %212 = tpu.matmul %210, %211, %cst_81 {dimension_numbers = #tpu.dot_dimension_numbers<[1], [0], [0], [1], [0, 0, 1, 1], [], []>} : vector<8x8xbf16>, vector<8x8xbf16>, vector<8x8xf32> -> vector<8x8xf32>
    %c0_82 = arith.constant 0 : index
    %c16_83 = arith.constant 16 : index
    %213 = vector.load %arg25[%c0_82, %c16_83] : memref<8x32xf32, #tpu.memory_space<vmem>>, vector<8x8xf32>
    tpu.vector_store %arg25[%c0_82, %c16_83], %212 {strides = array<i32>} : memref<8x32xf32, #tpu.memory_space<vmem>>, vector<8x8xf32>,
    %214 = vector.extract_strided_slice %144 {offsets = [0, 24], sizes = [8, 8], strides = [1, 1]} : vector<8x32xf32> to vector<8x8xf32>
    %215 = vector.extract_strided_slice %152 {offsets = [0, 24], sizes = [8, 8], strides = [1, 1]} : vector<8x32xf32> to vector<8x8xf32>
    %216 = arith.truncf %214 : vector<8x8xf32> to vector<8x8xbf16>
    %217 = arith.truncf %215 : vector<8x8xf32> to vector<8x8xbf16>
    %cst_84 = arith.constant dense<0.000000e+00> : vector<8x8xf32>
    %218 = tpu.matmul %216, %217, %cst_84 {dimension_numbers = #tpu.dot_dimension_numbers<[1], [1], [0], [0], [0, 0, 1, 0], [], []>} : vector<8x8xbf16>, vector<8x8xbf16>, vector<8x8xf32> -> vector<8x8xf32>
    %cst_85 = arith.constant dense<0xFF800000> : vector<8xf32>
    %219 = vector.multi_reduction <maximumf>, %218, %cst_85 [1] : vector<8x8xf32> to vector<8xf32>
    %220 = vector.shape_cast %219 : vector<8xf32> to vector<8x1xf32>
    %221 = vector.broadcast %220 : vector<8x1xf32> to vector<8x8xf32>
    %222 = arith.subf %218, %221 : vector<8x8xf32>
    %223 = math.exp %222 : vector<8x8xf32>
    %cst_86 = arith.constant dense<0.000000e+00> : vector<8xf32>
    %224 = vector.multi_reduction <add>, %223, %cst_86 [1] : vector<8x8xf32> to vector<8xf32>
    %225 = vector.shape_cast %224 : vector<8xf32> to vector<8x1xf32>
    %226 = tpu.reciprocal %225 {approx = true} : vector<8x1xf32> -> vector<8x1xf32>
    %227 = vector.broadcast %226 : vector<8x1xf32> to vector<8x8xf32>
    %228 = arith.mulf %223, %227 : vector<8x8xf32>
    %229 = vector.extract_strided_slice %153 {offsets = [0, 24], sizes = [8, 8], strides = [1, 1]} : vector<8x32xf32> to vector<8x8xf32>
    %230 = arith.truncf %228 : vector<8x8xf32> to vector<8x8xbf16>
    %231 = arith.truncf %229 : vector<8x8xf32> to vector<8x8xbf16>
    %cst_87 = arith.constant dense<0.000000e+00> : vector<8x8xf32>
    %232 = tpu.matmul %230, %231, %cst_87 {dimension_numbers = #tpu.dot_dimension_numbers<[1], [0], [0], [1], [0, 0, 1, 1], [], []>} : vector<8x8xbf16>, vector<8x8xbf16>, vector<8x8xf32> -> vector<8x8xf32>
    %c0_88 = arith.constant 0 : index
    %c24_89 = arith.constant 24 : index
    %233 = vector.load %arg25[%c0_88, %c24_89] : memref<8x32xf32, #tpu.memory_space<vmem>>, vector<8x8xf32>
    tpu.vector_store %arg25[%c0_88, %c24_89], %232 {strides = array<i32>} : memref<8x32xf32, #tpu.memory_space<vmem>>, vector<8x8xf32>,
    %c0_90 = arith.constant 0 : index
    %c0_91 = arith.constant 0 : index
    %234 = vector.load %arg25[%c0_90, %c0_91] : memref<8x32xf32, #tpu.memory_space<vmem>>, vector<8x32xf32>
    %c0_92 = arith.constant 0 : index
    %c0_93 = arith.constant 0 : index
    %235 = vector.load %arg14[%c0_92, %c0_93] : memref<32x32xbf16, #tpu.memory_space<vmem>>, vector<32x32xbf16>
    %236 = arith.truncf %234 : vector<8x32xf32> to vector<8x32xbf16>
    %cst_94 = arith.constant dense<0.000000e+00> : vector<8x32xf32>
    %237 = tpu.matmul %236, %235, %cst_94 {dimension_numbers = #tpu.dot_dimension_numbers<[1], [0], [0], [1], [0, 0, 1, 1], [], []>} : vector<8x32xbf16>, vector<32x32xbf16>, vector<8x32xf32> -> vector<8x32xf32>
    %c0_95 = arith.constant 0 : index
    %c0_96 = arith.constant 0 : index
    %238 = vector.load %arg15[%c0_95, %c0_96] : memref<1x32xf32, #tpu.memory_space<vmem>>, vector<1x32xf32>
    %239 = vector.broadcast %238 : vector<1x32xf32> to vector<8x32xf32>
    %240 = arith.addf %237, %239 : vector<8x32xf32>
    %241 = arith.addf %136, %240 : vector<8x32xf32>
    %c0_97 = arith.constant 0 : index
    %c0_98 = arith.constant 0 : index
    %242 = vector.load %arg16[%c0_97, %c0_98] : memref<1x32xf32, #tpu.memory_space<vmem>>, vector<1x32xf32>
    %c0_99 = arith.constant 0 : index
    %c0_100 = arith.constant 0 : index
    %243 = vector.load %arg17[%c0_99, %c0_100] : memref<1x32xf32, #tpu.memory_space<vmem>>, vector<1x32xf32>
    %cst_101 = arith.constant dense<0.000000e+00> : vector<8xf32>
    %244 = vector.multi_reduction <add>, %241, %cst_101 [1] : vector<8x32xf32> to vector<8xf32>
    %245 = vector.shape_cast %244 : vector<8xf32> to vector<8x1xf32>
    %cst_102 = arith.constant 3.200000e+01 : f32
    %246 = vector.broadcast %cst_102 : f32 to vector<8x1xf32>
    %247 = arith.divf %245, %246 : vector<8x1xf32>
    %248 = vector.broadcast %247 : vector<8x1xf32> to vector<8x32xf32>
    %249 = arith.subf %241, %248 : vector<8x32xf32>
    %250 = arith.mulf %249, %249 : vector<8x32xf32>
    %cst_103 = arith.constant dense<0.000000e+00> : vector<8xf32>
    %251 = vector.multi_reduction <add>, %250, %cst_103 [1] : vector<8x32xf32> to vector<8xf32>
    %252 = vector.shape_cast %251 : vector<8xf32> to vector<8x1xf32>
    %cst_104 = arith.constant 3.200000e+01 : f32
    %253 = vector.broadcast %cst_104 : f32 to vector<8x1xf32>
    %254 = arith.divf %252, %253 : vector<8x1xf32>
    %cst_105 = arith.constant 9.99999974E-6 : f32
    %255 = vector.broadcast %cst_105 : f32 to vector<8x1xf32>
    %256 = arith.addf %254, %255 : vector<8x1xf32>
    %257 = math.rsqrt %256 : vector<8x1xf32>
    %258 = vector.broadcast %257 : vector<8x1xf32> to vector<8x32xf32>
    %259 = arith.mulf %249, %258 : vector<8x32xf32>
    %260 = vector.broadcast %242 : vector<1x32xf32> to vector<8x32xf32>
    %261 = arith.mulf %259, %260 : vector<8x32xf32>
    %262 = vector.broadcast %243 : vector<1x32xf32> to vector<8x32xf32>
    %263 = arith.addf %261, %262 : vector<8x32xf32>
    %c0_106 = arith.constant 0 : index
    %c0_107 = arith.constant 0 : index
    %264 = vector.load %arg18[%c0_106, %c0_107] : memref<32x64xbf16, #tpu.memory_space<vmem>>, vector<32x64xbf16>
    %265 = arith.truncf %263 : vector<8x32xf32> to vector<8x32xbf16>
    %cst_108 = arith.constant dense<0.000000e+00> : vector<8x64xf32>
    %266 = tpu.matmul %265, %264, %cst_108 {dimension_numbers = #tpu.dot_dimension_numbers<[1], [0], [0], [1], [0, 0, 1, 1], [], []>} : vector<8x32xbf16>, vector<32x64xbf16>, vector<8x64xf32> -> vector<8x64xf32>
    %c0_109 = arith.constant 0 : index
    %c0_110 = arith.constant 0 : index
    %267 = vector.load %arg19[%c0_109, %c0_110] : memref<1x64xf32, #tpu.memory_space<vmem>>, vector<1x64xf32>
    %268 = vector.broadcast %267 : vector<1x64xf32> to vector<8x64xf32>
    %269 = arith.addf %266, %268 : vector<8x64xf32>
    %cst_111 = arith.constant 0.000000e+00 : f32
    %270 = vector.broadcast %cst_111 : f32 to vector<8x64xf32>
    %271 = arith.maximumf %269, %270 : vector<8x64xf32>
    %c0_112 = arith.constant 0 : index
    %c0_113 = arith.constant 0 : index
    %272 = vector.load %arg20[%c0_112, %c0_113] : memref<64x32xbf16, #tpu.memory_space<vmem>>, vector<64x32xbf16>
    %273 = arith.truncf %271 : vector<8x64xf32> to vector<8x64xbf16>
    %cst_114 = arith.constant dense<0.000000e+00> : vector<8x32xf32>
    %274 = tpu.matmul %273, %272, %cst_114 {dimension_numbers = #tpu.dot_dimension_numbers<[1], [0], [0], [1], [0, 0, 1, 1], [], []>} : vector<8x64xbf16>, vector<64x32xbf16>, vector<8x32xf32> -> vector<8x32xf32>
    %c0_115 = arith.constant 0 : index
    %c0_116 = arith.constant 0 : index
    %275 = vector.load %arg21[%c0_115, %c0_116] : memref<1x32xf32, #tpu.memory_space<vmem>>, vector<1x32xf32>
    %276 = vector.broadcast %275 : vector<1x32xf32> to vector<8x32xf32>
    %277 = arith.addf %274, %276 : vector<8x32xf32>
    %278 = arith.addf %263, %277 : vector<8x32xf32>
    %c0_117 = arith.constant 0 : index
    %c0_118 = arith.constant 0 : index
    %279 = vector.load %arg22[%c0_117, %c0_118] : memref<1x32xf32, #tpu.memory_space<vmem>>, vector<1x32xf32>
    %c0_119 = arith.constant 0 : index
    %c0_120 = arith.constant 0 : index
    %280 = vector.load %arg23[%c0_119, %c0_120] : memref<1x32xf32, #tpu.memory_space<vmem>>, vector<1x32xf32>
    %cst_121 = arith.constant dense<0.000000e+00> : vector<8xf32>
    %281 = vector.multi_reduction <add>, %278, %cst_121 [1] : vector<8x32xf32> to vector<8xf32>
    %282 = vector.shape_cast %281 : vector<8xf32> to vector<8x1xf32>
    %cst_122 = arith.constant 3.200000e+01 : f32
    %283 = vector.broadcast %cst_122 : f32 to vector<8x1xf32>
    %284 = arith.divf %282, %283 : vector<8x1xf32>
    %285 = vector.broadcast %284 : vector<8x1xf32> to vector<8x32xf32>
    %286 = arith.subf %278, %285 : vector<8x32xf32>
    %287 = arith.mulf %286, %286 : vector<8x32xf32>
    %cst_123 = arith.constant dense<0.000000e+00> : vector<8xf32>
    %288 = vector.multi_reduction <add>, %287, %cst_123 [1] : vector<8x32xf32> to vector<8xf32>
    %289 = vector.shape_cast %288 : vector<8xf32> to vector<8x1xf32>
    %cst_124 = arith.constant 3.200000e+01 : f32
    %290 = vector.broadcast %cst_124 : f32 to vector<8x1xf32>
    %291 = arith.divf %289, %290 : vector<8x1xf32>
    %cst_125 = arith.constant 9.99999974E-6 : f32
    %292 = vector.broadcast %cst_125 : f32 to vector<8x1xf32>
    %293 = arith.addf %291, %292 : vector<8x1xf32>
    %294 = math.rsqrt %293 : vector<8x1xf32>
    %295 = vector.broadcast %294 : vector<8x1xf32> to vector<8x32xf32>
    %296 = arith.mulf %286, %295 : vector<8x32xf32>
    %297 = vector.broadcast %279 : vector<1x32xf32> to vector<8x32xf32>
    %298 = arith.mulf %296, %297 : vector<8x32xf32>
    %299 = vector.broadcast %280 : vector<1x32xf32> to vector<8x32xf32>
    %300 = arith.addf %298, %299 : vector<8x32xf32>
    %301 = arith.truncf %300 : vector<8x32xf32> to vector<8x32xbf16>
    %c0_126 = arith.constant 0 : index
    %c0_127 = arith.constant 0 : index
    %c0_128 = arith.constant 0 : index
    %302 = vector.load %arg24[%c0_126, %c0_127, %c0_128] : memref<1x8x32xbf16, #tpu.memory_space<vmem>>, vector<1x8x32xbf16>
    %303 = vector.shape_cast %302 : vector<1x8x32xbf16> to vector<8x32xbf16>
    %304 = vector.shape_cast %301 : vector<8x32xbf16> to vector<1x8x32xbf16>
    tpu.vector_store %arg24[%c0_126, %c0_127, %c0_128], %304 {strides = array<i32>} : memref<1x8x32xbf16, #tpu.memory_space<vmem>>, vector<1x8x32xbf16>,
    return
  }
  func.func @transform_0(%arg0: i32) -> (i32, i32, i32) {
    %c0_i32 = arith.constant 0 : i32
    %c0_i32_0 = arith.constant 0 : i32
    %c0_i32_1 = arith.constant 0 : i32
    return %arg0, %c0_i32, %c0_i32_0 : i32, i32, i32
  }
  func.func @transform_1(%arg0: i32) -> (i32, i32, i32) {
    %c0_i32 = arith.constant 0 : i32
    %c0_i32_0 = arith.constant 0 : i32
    %c0_i32_1 = arith.constant 0 : i32
    return %arg0, %c0_i32, %c0_i32_0 : i32, i32, i32
  }
  func.func @transform_2(%arg0: i32) -> (i32, i32, i32) {
    %c0_i32 = arith.constant 0 : i32
    %c0_i32_0 = arith.constant 0 : i32
    %c0_i32_1 = arith.constant 0 : i32
    return %arg0, %c0_i32, %c0_i32_0 : i32, i32, i32
  }
  func.func @transform_3(%arg0: i32) -> (i32, i32) {
    %c0_i32 = arith.constant 0 : i32
    %c0_i32_0 = arith.constant 0 : i32
    %c0_i32_1 = arith.constant 0 : i32
    return %c0_i32, %c0_i32_0 : i32, i32
  }
  func.func @transform_4(%arg0: i32) -> (i32, i32) {
    %c0_i32 = arith.constant 0 : i32
    %c0_i32_0 = arith.constant 0 : i32
    %c0_i32_1 = arith.constant 0 : i32
    return %c0_i32, %c0_i32_0 : i32, i32
  }
  func.func @transform_5(%arg0: i32) -> (i32, i32) {
    %c0_i32 = arith.constant 0 : i32
    %c0_i32_0 = arith.constant 0 : i32
    %c0_i32_1 = arith.constant 0 : i32
    return %c0_i32, %c0_i32_0 : i32, i32
  }
  func.func @transform_6(%arg0: i32) -> (i32, i32) {
    %c0_i32 = arith.constant 0 : i32
    %c0_i32_0 = arith.constant 0 : i32
    %c0_i32_1 = arith.constant 0 : i32
    return %c0_i32, %c0_i32_0 : i32, i32
  }
  func.func @transform_7(%arg0: i32) -> (i32, i32) {
    %c0_i32 = arith.constant 0 : i32
    %c0_i32_0 = arith.constant 0 : i32
    %c0_i32_1 = arith.constant 0 : i32
    return %c0_i32, %c0_i32_0 : i32, i32
  }
  func.func @transform_8(%arg0: i32) -> (i32, i32) {
    %c0_i32 = arith.constant 0 : i32
    %c0_i32_0 = arith.constant 0 : i32
    %c0_i32_1 = arith.constant 0 : i32
    return %c0_i32, %c0_i32_0 : i32, i32
  }
  func.func @transform_9(%arg0: i32) -> (i32, i32) {
    %c0_i32 = arith.constant 0 : i32
    %c0_i32_0 = arith.constant 0 : i32
    %c0_i32_1 = arith.constant 0 : i32
    return %c0_i32, %c0_i32_0 : i32, i32
  }
  func.func @transform_10(%arg0: i32) -> (i32, i32) {
    %c0_i32 = arith.constant 0 : i32
    %c0_i32_0 = arith.constant 0 : i32
    %c0_i32_1 = arith.constant 0 : i32
    return %c0_i32, %c0_i32_0 : i32, i32
  }
  func.func @transform_11(%arg0: i32) -> (i32, i32) {
    %c0_i32 = arith.constant 0 : i32
    %c0_i32_0 = arith.constant 0 : i32
    %c0_i32_1 = arith.constant 0 : i32
    return %c0_i32, %c0_i32_0 : i32, i32
  }
  func.func @transform_12(%arg0: i32) -> (i32, i32) {
    %c0_i32 = arith.constant 0 : i32
    %c0_i32_0 = arith.constant 0 : i32
    %c0_i32_1 = arith.constant 0 : i32
    return %c0_i32, %c0_i32_0 : i32, i32
  }
  func.func @transform_13(%arg0: i32) -> (i32, i32) {
    %c0_i32 = arith.constant 0 : i32
    %c0_i32_0 = arith.constant 0 : i32
    %c0_i32_1 = arith.constant 0 : i32
    return %c0_i32, %c0_i32_0 : i32, i32
  }
  func.func @transform_14(%arg0: i32) -> (i32, i32) {
    %c0_i32 = arith.constant 0 : i32
    %c0_i32_0 = arith.constant 0 : i32
    %c0_i32_1 = arith.constant 0 : i32
    return %c0_i32, %c0_i32_0 : i32, i32
  }
  func.func @transform_15(%arg0: i32) -> (i32, i32) {
    %c0_i32 = arith.constant 0 : i32
    %c0_i32_0 = arith.constant 0 : i32
    %c0_i32_1 = arith.constant 0 : i32
    return %c0_i32, %c0_i32_0 : i32, i32
  }
  func.func @transform_16(%arg0: i32) -> (i32, i32) {
    %c0_i32 = arith.constant 0 : i32
    %c0_i32_0 = arith.constant 0 : i32
    %c0_i32_1 = arith.constant 0 : i32
    return %c0_i32, %c0_i32_0 : i32, i32
  }
  func.func @transform_17(%arg0: i32) -> (i32, i32) {
    %c0_i32 = arith.constant 0 : i32
    %c0_i32_0 = arith.constant 0 : i32
    %c0_i32_1 = arith.constant 0 : i32
    return %c0_i32, %c0_i32_0 : i32, i32
  }
  func.func @transform_18(%arg0: i32) -> (i32, i32) {
    %c0_i32 = arith.constant 0 : i32
    %c0_i32_0 = arith.constant 0 : i32
    %c0_i32_1 = arith.constant 0 : i32
    return %c0_i32, %c0_i32_0 : i32, i32
  }
  func.func @transform_19(%arg0: i32) -> (i32, i32) {
    %c0_i32 = arith.constant 0 : i32
    %c0_i32_0 = arith.constant 0 : i32
    %c0_i32_1 = arith.constant 0 : i32
    return %c0_i32, %c0_i32_0 : i32, i32
  }
  func.func @transform_20(%arg0: i32) -> (i32, i32) {
    %c0_i32 = arith.constant 0 : i32
    %c0_i32_0 = arith.constant 0 : i32
    %c0_i32_1 = arith.constant 0 : i32
    return %c0_i32, %c0_i32_0 : i32, i32
  }
  func.func @transform_21(%arg0: i32) -> (i32, i32) {
    %c0_i32 = arith.constant 0 : i32
    %c0_i32_0 = arith.constant 0 : i32
    %c0_i32_1 = arith.constant 0 : i32
    return %c0_i32, %c0_i32_0 : i32, i32
  }
  func.func @transform_22(%arg0: i32) -> (i32, i32) {
    %c0_i32 = arith.constant 0 : i32
    %c0_i32_0 = arith.constant 0 : i32
    %c0_i32_1 = arith.constant 0 : i32
    return %c0_i32, %c0_i32_0 : i32, i32
  }
  func.func @transform_23(%arg0: i32) -> (i32, i32, i32) {
    %c0_i32 = arith.constant 0 : i32
    %c0_i32_0 = arith.constant 0 : i32
    %c0_i32_1 = arith.constant 0 : i32
    return %arg0, %c0_i32, %c0_i32_0 : i32, i32, i32
  }
}

</mosaic_0001>

<llo_original>
// kernel: tpu_custom_call.1
$region0: #{tpu_custom_call.1}
  #allocation0 [shape = 'u32[]', space=smem, size = 0x4, offset = 0x4, fixed_abs, tag = 'smem constant byte address 0x4 - core index']
  #allocation1 [shape = 'u32[144,128]{1,0:T(1,128)}', space=vmem, size = 0x12000, scoped, tag = 'internal scratch']
  #allocation2 [shape = 'f32[8,32]{1,0:T(8,128)}', space=vmem, size = 0x1000, scoped, tag = 'scratch operand']
  %s0 = inlined_call_operand.hbm [shape: bf16[2,8,32], index: 0, kind: input, shape index: {}]
  %s1 = inlined_call_operand.vmem [shape: s32[2,8,1], index: 1, kind: input, shape index: {}]
  %s2 = inlined_call_operand.hbm [shape: bf16[2,8,32], index: 2, kind: input, shape index: {}]
  %s3 = inlined_call_operand.vmem [shape: bf16[32,96], index: 3, kind: input, shape index: {}]
  %s4 = inlined_call_operand.hbm [shape: f32[1,96], index: 4, kind: input, shape index: {}]
  %s5 = inlined_call_operand.vmem [shape: bf16[32,32], index: 5, kind: input, shape index: {}]
  %s6 = inlined_call_operand.hbm [shape: f32[1,32], index: 6, kind: input, shape index: {}]
  %s7 = inlined_call_operand.hbm [shape: f32[1,32], index: 7, kind: input, shape index: {}]
  %s8 = inlined_call_operand.hbm [shape: f32[1,32], index: 8, kind: input, shape index: {}]
  %s9 = inlined_call_operand.vmem [shape: bf16[32,32], index: 9, kind: input, shape index: {}]
  %s10 = inlined_call_operand.vmem [shape: f32[1,32], index: 10, kind: input, shape index: {}]
  %s11 = inlined_call_operand.vmem [shape: bf16[32,64], index: 11, kind: input, shape index: {}]
  %s12 = inlined_call_operand.vmem [shape: f32[1,64], index: 12, kind: input, shape index: {}]
  %s13 = inlined_call_operand.vmem [shape: bf16[32,32], index: 13, kind: input, shape index: {}]
  %s14 = inlined_call_operand.vmem [shape: f32[1,32], index: 14, kind: input, shape index: {}]
  %s15 = inlined_call_operand.vmem [shape: f32[1,32], index: 15, kind: input, shape index: {}]
  %s16 = inlined_call_operand.vmem [shape: f32[1,32], index: 16, kind: input, shape index: {}]
  %s17 = inlined_call_operand.vmem [shape: bf16[32,64], index: 17, kind: input, shape index: {}]
  %s18 = inlined_call_operand.vmem [shape: f32[1,64], index: 18, kind: input, shape index: {}]
  %s19 = inlined_call_operand.vmem [shape: bf16[64,32], index: 19, kind: input, shape index: {}]
  %s20 = inlined_call_operand.vmem [shape: f32[1,32], index: 20, kind: input, shape index: {}]
  %s21 = inlined_call_operand.vmem [shape: f32[1,32], index: 21, kind: input, shape index: {}]
  %s22 = inlined_call_operand.vmem [shape: f32[1,32], index: 22, kind: input, shape index: {}]
  %s23 = inlined_call_operand.hbm [shape: bf16[2,8,32], index: 23, kind: output, shape index: {}]
  %s24 = sld [smem:[#allocation0]]
  $region149: #{tpu_custom_call.1} parent=0
    _
  %s26 = ssub.s32 1, %s24
  %s27 = scalar_select 0, %s26, %s24
  $region1: #{tpu_custom_call.1} parent=0
    #allocation3 [shape = 'u8[4096]{0}', space=vmem, size = 0x1000, scoped, tag = 'input window, operand 0']
    #allocation4 [shape = 's32[2]{0}', space=sflag, size = 0x8, scoped, tag = 'scoped memory for tpu_custom_call.1']
    #allocation5 [shape = 's32[2]{0}', space=sflag, size = 0x8, scoped, tag = 'scoped memory for tpu_custom_call.1']
    #allocation6 [shape = 'u8[4096]{0}', space=vmem, size = 0x1000, scoped, tag = 'input window, operand 2']
    #allocation7 [shape = 's32[2]{0}', space=sflag, size = 0x8, scoped, tag = 'scoped memory for tpu_custom_call.1']
    #allocation8 [shape = 'u8[512]{0}', space=vmem, size = 0x400, scoped, tag = 'input window, operand 4, single buffered']
    #allocation9 [shape = 'u8[512]{0}', space=vmem, size = 0x400, scoped, tag = 'input window, operand 6, single buffered']
    #allocation10 [shape = 's32[1]{0}', space=sflag, size = 0x4, scoped, tag = 'scoped memory for tpu_custom_call.1']
    #allocation11 [shape = 'u8[512]{0}', space=vmem, size = 0x400, scoped, tag = 'input window, operand 7, single buffered']
    #allocation12 [shape = 'u8[512]{0}', space=vmem, size = 0x400, scoped, tag = 'input window, operand 8, single buffered']
    #allocation13 [shape = 's32[1]{0}', space=sflag, size = 0x4, scoped, tag = 'scoped memory for tpu_custom_call.1']
    #allocation14 [shape = 'u8[4096]{0}', space=vmem, size = 0x1000, scoped, tag = 'output window, operand 0']
    %28 = vsyncpa [#allocation4], 0
    %s29 = scalar_lea.sflag [#allocation4], 1
    %30 = vsyncpa %s29, 0
    %31 = vsyncpa [#allocation7], 0
    %s32 = scalar_lea.sflag [#allocation7], 1
    %33 = vsyncpa %s32, 0
    %34 = vsyncpa [#allocation10], 0
    %35 = vsyncpa [#allocation13], 0
    %36 = vsyncpa [#allocation5], 0
    %s37 = scalar_lea.sflag [#allocation5], 1
    %38 = vsyncpa %s37, 0
    loop: start=0, step=1, limit=4
    $region2: #{tpu_custom_call.1} parent=1 // loop_pre_header
      _
    $region3: #{tpu_custom_call.1} parent=1 // loop_header
      %s40 = sphi 0, %s44
      %p41 = scmp.ge.s32.totalorder %s40, 4
      %s50 = sphi 0, %s52
      %s53 = sphi 0, %s50
      %s54 = sphi 0, %s53
      %s70 = sphi 0, %s54
      %s76 = sphi 0, %s78
      %s79 = sphi 0, %s76
      %s80 = sphi 0, %s79
      %s96 = sphi 0, %s80
      %s102 = sphi 0, %s104
      %s105 = sphi 0, %s102
      %s106 = sphi 0, %s105
      %s122 = sphi 0, %s106
      %s126 = sphi 0, %s126
      %s128 = sphi 0, %s126
      %s129 = sphi 0, %s128
      %s143 = sphi 0, %s129
      %s147 = sphi 0, %s147
      %s149 = sphi 0, %s147
      %s150 = sphi 0, %s149
      %s164 = sphi 0, %s150
      %s168 = sphi 0, %s168
      %s170 = sphi 0, %s168
      %s171 = sphi 0, %s170
      %s185 = sphi 0, %s171
      %s189 = sphi 0, %s189
      %s191 = sphi 0, %s189
      %s192 = sphi 0, %s191
      %s206 = sphi 0, %s192
      %s210 = sphi 0, %s210
      %s212 = sphi 0, %s210
      %s213 = sphi 0, %s212
      %s227 = sphi 0, %s213
      %s231 = sphi 0, %s231
      %s233 = sphi 0, %s231
      %s234 = sphi 0, %s233
      %s248 = sphi 0, %s234
      %s252 = sphi 0, %s252
      %s254 = sphi 0, %s252
      %s255 = sphi 0, %s254
      %s269 = sphi 0, %s255
      %s273 = sphi 0, %s273
      %s275 = sphi 0, %s273
      %s276 = sphi 0, %s275
      %s290 = sphi 0, %s276
      %s294 = sphi 0, %s294
      %s296 = sphi 0, %s294
      %s297 = sphi 0, %s296
      %s311 = sphi 0, %s297
      %s315 = sphi 0, %s315
      %s317 = sphi 0, %s315
      %s318 = sphi 0, %s317
      %s332 = sphi 0, %s318
      %s336 = sphi 0, %s336
      %s338 = sphi 0, %s336
      %s339 = sphi 0, %s338
      %s353 = sphi 0, %s339
      %s357 = sphi 0, %s357
      %s359 = sphi 0, %s357
      %s360 = sphi 0, %s359
      %s374 = sphi 0, %s360
      %s378 = sphi 0, %s378
      %s380 = sphi 0, %s378
      %s381 = sphi 0, %s380
      %s395 = sphi 0, %s381
      %s399 = sphi 0, %s399
      %s401 = sphi 0, %s399
      %s402 = sphi 0, %s401
      %s416 = sphi 0, %s402
      %s420 = sphi 0, %s420
      %s422 = sphi 0, %s420
      %s423 = sphi 0, %s422
      %s437 = sphi 0, %s423
      %s441 = sphi 0, %s441
      %s443 = sphi 0, %s441
      %s444 = sphi 0, %s443
      %s458 = sphi 0, %s444
      %s462 = sphi 0, %s462
      %s464 = sphi 0, %s462
      %s465 = sphi 0, %s464
      %s479 = sphi 0, %s465
      %s483 = sphi 0, %s483
      %s485 = sphi 0, %s483
      %s486 = sphi 0, %s485
      %s500 = sphi 0, %s486
      %s504 = sphi 0, %s504
      %s506 = sphi 0, %s504
      %s507 = sphi 0, %s506
      %s521 = sphi 0, %s507
      %s525 = sphi 0, %s525
      %s527 = sphi 0, %s525
      %s528 = sphi 0, %s527
      %s542 = sphi 0, %s528
      %s548 = sphi 0, %s550
      %s551 = sphi 0, %s548
      %s552 = sphi 0, %s551
      %s568 = sphi 0, %s552
    $region4: #{tpu_custom_call.1} parent=1 // loop_header_branch
      %43 = sbr.rel (%p41) target = $region8
    $region5: #{tpu_custom_call.1} parent=1 // loop_body
      %s45 = ssub.s32 %s40, 1
      %s46 = ssub.s32 %s40, 2
      %s47 = sadd.s32 %s40, 1
      %s48 = ssub.s32 %s40, %s47
      %p49 = scmp.eq.s32.totalorder %s48, 0
      %s51 = sadd.s32 %s50, 1
      %s52 = scalar_select %p49, %s50, %s51
      %p55 = pneg %p49
      %p56 = scmp.eq.s32.totalorder %s40, 1
      %p57 = por %p55, %p56
      %p58 = scmp.ne.s32.totalorder %s50, %s53
      %p59 = scmp.eq.s32.totalorder %s40, 0
      %p60 = por %p58, %p59
      %p61 = scmp.ne.s32.totalorder %s50, %s53
      %p62 = scmp.eq.s32.totalorder %s45, 1
      %p63 = por %p61, %p62
      %p64 = scmp.ne.s32.totalorder %s53, %s54
      %p65 = scmp.eq.s32.totalorder %s45, 0
      %p66 = por %p64, %p65
      %p67 = scmp.ne.s32.totalorder %s53, %s54
      %p68 = scmp.eq.s32.totalorder %s46, 1
      %p69 = por %p67, %p68
      %p71 = scmp.ne.s32.totalorder %s54, %s70
      %p72 = scmp.eq.s32.totalorder %s46, 0
      %p73 = por %p71, %p72
      %s74 = ssub.s32 %s40, %s47
      %p75 = scmp.eq.s32.totalorder %s74, 0
      %s77 = sadd.s32 %s76, 1
      %s78 = scalar_select %p75, %s76, %s77
      %p81 = pneg %p75
      %p82 = scmp.eq.s32.totalorder %s40, 1
      %p83 = por %p81, %p82
      %p84 = scmp.ne.s32.totalorder %s76, %s79
      %p85 = scmp.eq.s32.totalorder %s40, 0
      %p86 = por %p84, %p85
      %p87 = scmp.ne.s32.totalorder %s76, %s79
      %p88 = scmp.eq.s32.totalorder %s45, 1
      %p89 = por %p87, %p88
      %p90 = scmp.ne.s32.totalorder %s79, %s80
      %p91 = scmp.eq.s32.totalorder %s45, 0
      %p92 = por %p90, %p91
      %p93 = scmp.ne.s32.totalorder %s79, %s80
      %p94 = scmp.eq.s32.totalorder %s46, 1
      %p95 = por %p93, %p94
      %p97 = scmp.ne.s32.totalorder %s80, %s96
      %p98 = scmp.eq.s32.totalorder %s46, 0
      %p99 = por %p97, %p98
      %s100 = ssub.s32 %s40, %s47
      %p101 = scmp.eq.s32.totalorder %s100, 0
      %s103 = sadd.s32 %s102, 1
      %s104 = scalar_select %p101, %s102, %s103
      %p107 = pneg %p101
      %p108 = scmp.eq.s32.totalorder %s40, 1
      %p109 = por %p107, %p108
      %p110 = scmp.ne.s32.totalorder %s102, %s105
      %p111 = scmp.eq.s32.totalorder %s40, 0
      %p112 = por %p110, %p111
      %p113 = scmp.ne.s32.totalorder %s102, %s105
      %p114 = scmp.eq.s32.totalorder %s45, 1
      %p115 = por %p113, %p114
      %p116 = scmp.ne.s32.totalorder %s105, %s106
      %p117 = scmp.eq.s32.totalorder %s45, 0
      %p118 = por %p116, %p117
      %p119 = scmp.ne.s32.totalorder %s105, %s106
      %p120 = scmp.eq.s32.totalorder %s46, 1
      %p121 = por %p119, %p120
      %p123 = scmp.ne.s32.totalorder %s106, %s122
      %p124 = scmp.eq.s32.totalorder %s46, 0
      %p125 = por %p123, %p124
      %s127 = sadd.s32 %s126, 1
      %p130 = scmp.eq.s32.totalorder %s40, 1
      %p131 = scmp.ne.s32.totalorder %s126, %s128
      %p132 = scmp.eq.s32.totalorder %s40, 0
      %p133 = por %p131, %p132
      %p134 = scmp.ne.s32.totalorder %s126, %s128
      %p135 = scmp.eq.s32.totalorder %s45, 1
      %p136 = por %p134, %p135
      %p137 = scmp.ne.s32.totalorder %s128, %s129
      %p138 = scmp.eq.s32.totalorder %s45, 0
      %p139 = por %p137, %p138
      %p140 = scmp.ne.s32.totalorder %s128, %s129
      %p141 = scmp.eq.s32.totalorder %s46, 1
      %p142 = por %p140, %p141
      %p144 = scmp.ne.s32.totalorder %s129, %s143
      %p145 = scmp.eq.s32.totalorder %s46, 0
      %p146 = por %p144, %p145
      %s148 = sadd.s32 %s147, 1
      %p151 = scmp.eq.s32.totalorder %s40, 1
      %p152 = scmp.ne.s32.totalorder %s147, %s149
      %p153 = scmp.eq.s32.totalorder %s40, 0
      %p154 = por %p152, %p153
      %p155 = scmp.ne.s32.totalorder %s147, %s149
      %p156 = scmp.eq.s32.totalorder %s45, 1
      %p157 = por %p155, %p156
      %p158 = scmp.ne.s32.totalorder %s149, %s150
      %p159 = scmp.eq.s32.totalorder %s45, 0
      %p160 = por %p158, %p159
      %p161 = scmp.ne.s32.totalorder %s149, %s150
      %p162 = scmp.eq.s32.totalorder %s46, 1
      %p163 = por %p161, %p162
      %p165 = scmp.ne.s32.totalorder %s150, %s164
      %p166 = scmp.eq.s32.totalorder %s46, 0
      %p167 = por %p165, %p166
      %s169 = sadd.s32 %s168, 1
      %p172 = scmp.eq.s32.totalorder %s40, 1
      %p173 = scmp.ne.s32.totalorder %s168, %s170
      %p174 = scmp.eq.s32.totalorder %s40, 0
      %p175 = por %p173, %p174
      %p176 = scmp.ne.s32.totalorder %s168, %s170
      %p177 = scmp.eq.s32.totalorder %s45, 1
      %p178 = por %p176, %p177
      %p179 = scmp.ne.s32.totalorder %s170, %s171
      %p180 = scmp.eq.s32.totalorder %s45, 0
      %p181 = por %p179, %p180
      %p182 = scmp.ne.s32.totalorder %s170, %s171
      %p183 = scmp.eq.s32.totalorder %s46, 1
      %p184 = por %p182, %p183
      %p186 = scmp.ne.s32.totalorder %s171, %s185
      %p187 = scmp.eq.s32.totalorder %s46, 0
      %p188 = por %p186, %p187
      %s190 = sadd.s32 %s189, 1
      %p193 = scmp.eq.s32.totalorder %s40, 1
      %p194 = scmp.ne.s32.totalorder %s189, %s191
      %p195 = scmp.eq.s32.totalorder %s40, 0
      %p196 = por %p194, %p195
      %p197 = scmp.ne.s32.totalorder %s189, %s191
      %p198 = scmp.eq.s32.totalorder %s45, 1
      %p199 = por %p197, %p198
      %p200 = scmp.ne.s32.totalorder %s191, %s192
      %p201 = scmp.eq.s32.totalorder %s45, 0
      %p202 = por %p200, %p201
      %p203 = scmp.ne.s32.totalorder %s191, %s192
      %p204 = scmp.eq.s32.totalorder %s46, 1
      %p205 = por %p203, %p204
      %p207 = scmp.ne.s32.totalorder %s192, %s206
      %p208 = scmp.eq.s32.totalorder %s46, 0
      %p209 = por %p207, %p208
      %s211 = sadd.s32 %s210, 1
      %p214 = scmp.eq.s32.totalorder %s40, 1
      %p215 = scmp.ne.s32.totalorder %s210, %s212
      %p216 = scmp.eq.s32.totalorder %s40, 0
      %p217 = por %p215, %p216
      %p218 = scmp.ne.s32.totalorder %s210, %s212
      %p219 = scmp.eq.s32.totalorder %s45, 1
      %p220 = por %p218, %p219
      %p221 = scmp.ne.s32.totalorder %s212, %s213
      %p222 = scmp.eq.s32.totalorder %s45, 0
      %p223 = por %p221, %p222
      %p224 = scmp.ne.s32.totalorder %s212, %s213
      %p225 = scmp.eq.s32.totalorder %s46, 1
      %p226 = por %p224, %p225
      %p228 = scmp.ne.s32.totalorder %s213, %s227
      %p229 = scmp.eq.s32.totalorder %s46, 0
      %p230 = por %p228, %p229
      %s232 = sadd.s32 %s231, 1
      %p235 = scmp.eq.s32.totalorder %s40, 1
      %p236 = scmp.ne.s32.totalorder %s231, %s233
      %p237 = scmp.eq.s32.totalorder %s40, 0
      %p238 = por %p236, %p237
      %p239 = scmp.ne.s32.totalorder %s231, %s233
      %p240 = scmp.eq.s32.totalorder %s45, 1
      %p241 = por %p239, %p240
      %p242 = scmp.ne.s32.totalorder %s233, %s234
      %p243 = scmp.eq.s32.totalorder %s45, 0
      %p244 = por %p242, %p243
      %p245 = scmp.ne.s32.totalorder %s233, %s234
      %p246 = scmp.eq.s32.totalorder %s46, 1
      %p247 = por %p245, %p246
      %p249 = scmp.ne.s32.totalorder %s234, %s248
      %p250 = scmp.eq.s32.totalorder %s46, 0
      %p251 = por %p249, %p250
      %s253 = sadd.s32 %s252, 1
      %p256 = scmp.eq.s32.totalorder %s40, 1
      %p257 = scmp.ne.s32.totalorder %s252, %s254
      %p258 = scmp.eq.s32.totalorder %s40, 0
      %p259 = por %p257, %p258
      %p260 = scmp.ne.s32.totalorder %s252, %s254
      %p261 = scmp.eq.s32.totalorder %s45, 1
      %p262 = por %p260, %p261
      %p263 = scmp.ne.s32.totalorder %s254, %s255
      %p264 = scmp.eq.s32.totalorder %s45, 0
      %p265 = por %p263, %p264
      %p266 = scmp.ne.s32.totalorder %s254, %s255
      %p267 = scmp.eq.s32.totalorder %s46, 1
      %p268 = por %p266, %p267
      %p270 = scmp.ne.s32.totalorder %s255, %s269
      %p271 = scmp.eq.s32.totalorder %s46, 0
      %p272 = por %p270, %p271
      %s274 = sadd.s32 %s273, 1
      %p277 = scmp.eq.s32.totalorder %s40, 1
      %p278 = scmp.ne.s32.totalorder %s273, %s275
      %p279 = scmp.eq.s32.totalorder %s40, 0
      %p280 = por %p278, %p279
      %p281 = scmp.ne.s32.totalorder %s273, %s275
      %p282 = scmp.eq.s32.totalorder %s45, 1
      %p283 = por %p281, %p282
      %p284 = scmp.ne.s32.totalorder %s275, %s276
      %p285 = scmp.eq.s32.totalorder %s45, 0
      %p286 = por %p284, %p285
      %p287 = scmp.ne.s32.totalorder %s275, %s276
      %p288 = scmp.eq.s32.totalorder %s46, 1
      %p289 = por %p287, %p288
      %p291 = scmp.ne.s32.totalorder %s276, %s290
      %p292 = scmp.eq.s32.totalorder %s46, 0
      %p293 = por %p291, %p292
      %s295 = sadd.s32 %s294, 1
      %p298 = scmp.eq.s32.totalorder %s40, 1
      %p299 = scmp.ne.s32.totalorder %s294, %s296
      %p300 = scmp.eq.s32.totalorder %s40, 0
      %p301 = por %p299, %p300
      %p302 = scmp.ne.s32.totalorder %s294, %s296
      %p303 = scmp.eq.s32.totalorder %s45, 1
      %p304 = por %p302, %p303
      %p305 = scmp.ne.s32.totalorder %s296, %s297
      %p306 = scmp.eq.s32.totalorder %s45, 0
      %p307 = por %p305, %p306
      %p308 = scmp.ne.s32.totalorder %s296, %s297
      %p309 = scmp.eq.s32.totalorder %s46, 1
      %p310 = por %p308, %p309
      %p312 = scmp.ne.s32.totalorder %s297, %s311
      %p313 = scmp.eq.s32.totalorder %s46, 0
      %p314 = por %p312, %p313
      %s316 = sadd.s32 %s315, 1
      %p319 = scmp.eq.s32.totalorder %s40, 1
      %p320 = scmp.ne.s32.totalorder %s315, %s317
      %p321 = scmp.eq.s32.totalorder %s40, 0
      %p322 = por %p320, %p321
      %p323 = scmp.ne.s32.totalorder %s315, %s317
      %p324 = scmp.eq.s32.totalorder %s45, 1
      %p325 = por %p323, %p324
      %p326 = scmp.ne.s32.totalorder %s317, %s318
      %p327 = scmp.eq.s32.totalorder %s45, 0
      %p328 = por %p326, %p327
      %p329 = scmp.ne.s32.totalorder %s317, %s318
      %p330 = scmp.eq.s32.totalorder %s46, 1
      %p331 = por %p329, %p330
      %p333 = scmp.ne.s32.totalorder %s318, %s332
      %p334 = scmp.eq.s32.totalorder %s46, 0
      %p335 = por %p333, %p334
      %s337 = sadd.s32 %s336, 1
      %p340 = scmp.eq.s32.totalorder %s40, 1
      %p341 = scmp.ne.s32.totalorder %s336, %s338
      %p342 = scmp.eq.s32.totalorder %s40, 0
      %p343 = por %p341, %p342
      %p344 = scmp.ne.s32.totalorder %s336, %s338
      %p345 = scmp.eq.s32.totalorder %s45, 1
      %p346 = por %p344, %p345
      %p347 = scmp.ne.s32.totalorder %s338, %s339
      %p348 = scmp.eq.s32.totalorder %s45, 0
      %p349 = por %p347, %p348
      %p350 = scmp.ne.s32.totalorder %s338, %s339
      %p351 = scmp.eq.s32.totalorder %s46, 1
      %p352 = por %p350, %p351
      %p354 = scmp.ne.s32.totalorder %s339, %s353
      %p355 = scmp.eq.s32.totalorder %s46, 0
      %p356 = por %p354, %p355
      %s358 = sadd.s32 %s357, 1
      %p361 = scmp.eq.s32.totalorder %s40, 1
      %p362 = scmp.ne.s32.totalorder %s357, %s359
      %p363 = scmp.eq.s32.totalorder %s40, 0
      %p364 = por %p362, %p363
      %p365 = scmp.ne.s32.totalorder %s357, %s359
      %p366 = scmp.eq.s32.totalorder %s45, 1
      %p367 = por %p365, %p366
      %p368 = scmp.ne.s32.totalorder %s359, %s360
      %p369 = scmp.eq.s32.totalorder %s45, 0
      %p370 = por %p368, %p369
      %p371 = scmp.ne.s32.totalorder %s359, %s360
      %p372 = scmp.eq.s32.totalorder %s46, 1
      %p373 = por %p371, %p372
      %p375 = scmp.ne.s32.totalorder %s360, %s374
      %p376 = scmp.eq.s32.totalorder %s46, 0
      %p377 = por %p375, %p376
      %s379 = sadd.s32 %s378, 1
      %p382 = scmp.eq.s32.totalorder %s40, 1
      %p383 = scmp.ne.s32.totalorder %s378, %s380
      %p384 = scmp.eq.s32.totalorder %s40, 0
      %p385 = por %p383, %p384
      %p386 = scmp.ne.s32.totalorder %s378, %s380
      %p387 = scmp.eq.s32.totalorder %s45, 1
      %p388 = por %p386, %p387
      %p389 = scmp.ne.s32.totalorder %s380, %s381
      %p390 = scmp.eq.s32.totalorder %s45, 0
      %p391 = por %p389, %p390
      %p392 = scmp.ne.s32.totalorder %s380, %s381
      %p393 = scmp.eq.s32.totalorder %s46, 1
      %p394 = por %p392, %p393
      %p396 = scmp.ne.s32.totalorder %s381, %s395
      %p397 = scmp.eq.s32.totalorder %s46, 0
      %p398 = por %p396, %p397
      %s400 = sadd.s32 %s399, 1
      %p403 = scmp.eq.s32.totalorder %s40, 1
      %p404 = scmp.ne.s32.totalorder %s399, %s401
      %p405 = scmp.eq.s32.totalorder %s40, 0
      %p406 = por %p404, %p405
      %p407 = scmp.ne.s32.totalorder %s399, %s401
      %p408 = scmp.eq.s32.totalorder %s45, 1
      %p409 = por %p407, %p408
      %p410 = scmp.ne.s32.totalorder %s401, %s402
      %p411 = scmp.eq.s32.totalorder %s45, 0
      %p412 = por %p410, %p411
      %p413 = scmp.ne.s32.totalorder %s401, %s402
      %p414 = scmp.eq.s32.totalorder %s46, 1
      %p415 = por %p413, %p414
      %p417 = scmp.ne.s32.totalorder %s402, %s416
      %p418 = scmp.eq.s32.totalorder %s46, 0
      %p419 = por %p417, %p418
      %s421 = sadd.s32 %s420, 1
      %p424 = scmp.eq.s32.totalorder %s40, 1
      %p425 = scmp.ne.s32.totalorder %s420, %s422
      %p426 = scmp.eq.s32.totalorder %s40, 0
      %p427 = por %p425, %p426
      %p428 = scmp.ne.s32.totalorder %s420, %s422
      %p429 = scmp.eq.s32.totalorder %s45, 1
      %p430 = por %p428, %p429
      %p431 = scmp.ne.s32.totalorder %s422, %s423
      %p432 = scmp.eq.s32.totalorder %s45, 0
      %p433 = por %p431, %p432
      %p434 = scmp.ne.s32.totalorder %s422, %s423
      %p435 = scmp.eq.s32.totalorder %s46, 1
      %p436 = por %p434, %p435
      %p438 = scmp.ne.s32.totalorder %s423, %s437
      %p439 = scmp.eq.s32.totalorder %s46, 0
      %p440 = por %p438, %p439
      %s442 = sadd.s32 %s441, 1
      %p445 = scmp.eq.s32.totalorder %s40, 1
      %p446 = scmp.ne.s32.totalorder %s441, %s443
      %p447 = scmp.eq.s32.totalorder %s40, 0
      %p448 = por %p446, %p447
      %p449 = scmp.ne.s32.totalorder %s441, %s443
      %p450 = scmp.eq.s32.totalorder %s45, 1
      %p451 = por %p449, %p450
      %p452 = scmp.ne.s32.totalorder %s443, %s444
      %p453 = scmp.eq.s32.totalorder %s45, 0
      %p454 = por %p452, %p453
      %p455 = scmp.ne.s32.totalorder %s443, %s444
      %p456 = scmp.eq.s32.totalorder %s46, 1
      %p457 = por %p455, %p456
      %p459 = scmp.ne.s32.totalorder %s444, %s458
      %p460 = scmp.eq.s32.totalorder %s46, 0
      %p461 = por %p459, %p460
      %s463 = sadd.s32 %s462, 1
      %p466 = scmp.eq.s32.totalorder %s40, 1
      %p467 = scmp.ne.s32.totalorder %s462, %s464
      %p468 = scmp.eq.s32.totalorder %s40, 0
      %p469 = por %p467, %p468
      %p470 = scmp.ne.s32.totalorder %s462, %s464
      %p471 = scmp.eq.s32.totalorder %s45, 1
      %p472 = por %p470, %p471
      %p473 = scmp.ne.s32.totalorder %s464, %s465
      %p474 = scmp.eq.s32.totalorder %s45, 0
      %p475 = por %p473, %p474
      %p476 = scmp.ne.s32.totalorder %s464, %s465
      %p477 = scmp.eq.s32.totalorder %s46, 1
      %p478 = por %p476, %p477
      %p480 = scmp.ne.s32.totalorder %s465, %s479
      %p481 = scmp.eq.s32.totalorder %s46, 0
      %p482 = por %p480, %p481
      %s484 = sadd.s32 %s483, 1
      %p487 = scmp.eq.s32.totalorder %s40, 1
      %p488 = scmp.ne.s32.totalorder %s483, %s485
      %p489 = scmp.eq.s32.totalorder %s40, 0
      %p490 = por %p488, %p489
      %p491 = scmp.ne.s32.totalorder %s483, %s485
      %p492 = scmp.eq.s32.totalorder %s45, 1
      %p493 = por %p491, %p492
      %p494 = scmp.ne.s32.totalorder %s485, %s486
      %p495 = scmp.eq.s32.totalorder %s45, 0
      %p496 = por %p494, %p495
      %p497 = scmp.ne.s32.totalorder %s485, %s486
      %p498 = scmp.eq.s32.totalorder %s46, 1
      %p499 = por %p497, %p498
      %p501 = scmp.ne.s32.totalorder %s486, %s500
      %p502 = scmp.eq.s32.totalorder %s46, 0
      %p503 = por %p501, %p502
      %s505 = sadd.s32 %s504, 1
      %p508 = scmp.eq.s32.totalorder %s40, 1
      %p509 = scmp.ne.s32.totalorder %s504, %s506
      %p510 = scmp.eq.s32.totalorder %s40, 0
      %p511 = por %p509, %p510
      %p512 = scmp.ne.s32.totalorder %s504, %s506
      %p513 = scmp.eq.s32.totalorder %s45, 1
      %p514 = por %p512, %p513
      %p515 = scmp.ne.s32.totalorder %s506, %s507
      %p516 = scmp.eq.s32.totalorder %s45, 0
      %p517 = por %p515, %p516
      %p518 = scmp.ne.s32.totalorder %s506, %s507
      %p519 = scmp.eq.s32.totalorder %s46, 1
      %p520 = por %p518, %p519
      %p522 = scmp.ne.s32.totalorder %s507, %s521
      %p523 = scmp.eq.s32.totalorder %s46, 0
      %p524 = por %p522, %p523
      %s526 = sadd.s32 %s525, 1
      %p529 = scmp.eq.s32.totalorder %s40, 1
      %p530 = scmp.ne.s32.totalorder %s525, %s527
      %p531 = scmp.eq.s32.totalorder %s40, 0
      %p532 = por %p530, %p531
      %p533 = scmp.ne.s32.totalorder %s525, %s527
      %p534 = scmp.eq.s32.totalorder %s45, 1
      %p535 = por %p533, %p534
      %p536 = scmp.ne.s32.totalorder %s527, %s528
      %p537 = scmp.eq.s32.totalorder %s45, 0
      %p538 = por %p536, %p537
      %p539 = scmp.ne.s32.totalorder %s527, %s528
      %p540 = scmp.eq.s32.totalorder %s46, 1
      %p541 = por %p539, %p540
      %p543 = scmp.ne.s32.totalorder %s528, %s542
      %p544 = scmp.eq.s32.totalorder %s46, 0
      %p545 = por %p543, %p544
      %s546 = ssub.s32 %s40, %s47
      %p547 = scmp.eq.s32.totalorder %s546, 0
      %s549 = sadd.s32 %s548, 1
      %s550 = scalar_select %p547, %s548, %s549
      %p553 = pneg %p547
      %p554 = scmp.eq.s32.totalorder %s40, 1
      %p555 = por %p553, %p554
      %p556 = scmp.ne.s32.totalorder %s548, %s551
      %p557 = scmp.eq.s32.totalorder %s40, 0
      %p558 = por %p556, %p557
      %p559 = scmp.ne.s32.totalorder %s548, %s551
      %p560 = scmp.eq.s32.totalorder %s45, 1
      %p561 = por %p559, %p560
      %p562 = scmp.ne.s32.totalorder %s551, %s552
      %p563 = scmp.eq.s32.totalorder %s45, 0
      %p564 = por %p562, %p563
      %p565 = scmp.ne.s32.totalorder %s551, %s552
      %p566 = scmp.eq.s32.totalorder %s46, 1
      %p567 = por %p565, %p566
      %p569 = scmp.ne.s32.totalorder %s552, %s568
      %p570 = scmp.eq.s32.totalorder %s46, 0
      %p571 = por %p569, %p570
      %p572 = scmp.le.s32.totalorder 1, %s40
      %p573 = scmp.lt.s32.totalorder %s40, 3
      %p574 = pnand %p572, %p573
      %p575 = pneg %p574
      // Predicated region
      $region9: #{tpu_custom_call.1} parent=5 // pred_check
        _
      $region10: #{tpu_custom_call.1} parent=5 // pred_check_branch
        %577 = sbr.rel (%p574) target = $region12
      $region11: #{tpu_custom_call.1} parent=5 // pred_region
        %s578 = ssub.s32 %s40, 1
        // Predicated region
        $region13: #{tpu_custom_call.1} parent=11 // pred_check
          %p579 = pneg %p139
        $region14: #{tpu_custom_call.1} parent=11 // pred_check_branch
          %581 = sbr.rel (%p579) target = $region16
        $region15: #{tpu_custom_call.1} parent=11 // pred_region
          _
        $region16: #{tpu_custom_call.1} parent=11 // pred_fallthru
          _
        // Predicated region
        $region17: #{tpu_custom_call.1} parent=11 // pred_check
          %p582 = pneg %p160
        $region18: #{tpu_custom_call.1} parent=11 // pred_check_branch
          %584 = sbr.rel (%p582) target = $region20
        $region19: #{tpu_custom_call.1} parent=11 // pred_region
          %s586 = ssub.s32 16, 16
          %587 = vsyncadd [#allocation7], %s586
          %s589 = sshll.u32 [#allocation8], 4
          %s590 = int_to_ptr.vmem [resolvable:$true] %s589
          %592 = dma.hbm_to_vmem [thread:$0]  %s4, 16, %s590, [#allocation7]
        $region20: #{tpu_custom_call.1} parent=11 // pred_fallthru
          _
        // Predicated region
        $region21: #{tpu_custom_call.1} parent=11 // pred_check
          %p593 = pneg %p181
        $region22: #{tpu_custom_call.1} parent=11 // pred_check_branch
          %595 = sbr.rel (%p593) target = $region24
        $region23: #{tpu_custom_call.1} parent=11 // pred_region
          _
        $region24: #{tpu_custom_call.1} parent=11 // pred_fallthru
          _
        // Predicated region
        $region25: #{tpu_custom_call.1} parent=11 // pred_check
          %p596 = pneg %p202
        $region26: #{tpu_custom_call.1} parent=11 // pred_check_branch
          %598 = sbr.rel (%p596) target = $region28
        $region27: #{tpu_custom_call.1} parent=11 // pred_region
          %s600 = ssub.s32 16, 16
          %601 = vsyncadd [#allocation10], %s600
          %s603 = sshll.u32 [#allocation9], 4
          %s604 = int_to_ptr.vmem [resolvable:$true] %s603
          %606 = dma.hbm_to_vmem [thread:$0]  %s6, 16, %s604, [#allocation10]
        $region28: #{tpu_custom_call.1} parent=11 // pred_fallthru
          _
        // Predicated region
        $region29: #{tpu_custom_call.1} parent=11 // pred_check
          %p607 = pneg %p223
        $region30: #{tpu_custom_call.1} parent=11 // pred_check_branch
          %609 = sbr.rel (%p607) target = $region32
        $region31: #{tpu_custom_call.1} parent=11 // pred_region
          %s611 = ssub.s32 16, 16
          %612 = vsyncadd [#allocation10], %s611
          %s614 = sshll.u32 [#allocation11], 4
          %s615 = int_to_ptr.vmem [resolvable:$true] %s614
          %617 = dma.hbm_to_vmem [thread:$0]  %s7, 16, %s615, [#allocation10]
        $region32: #{tpu_custom_call.1} parent=11 // pred_fallthru
          _
        // Predicated region
        $region33: #{tpu_custom_call.1} parent=11 // pred_check
          %p618 = pneg %p244
        $region34: #{tpu_custom_call.1} parent=11 // pred_check_branch
          %620 = sbr.rel (%p618) target = $region36
        $region35: #{tpu_custom_call.1} parent=11 // pred_region
          %s622 = ssub.s32 16, 16
          %623 = vsyncadd [#allocation13], %s622
          %s625 = sshll.u32 [#allocation12], 4
          %s626 = int_to_ptr.vmem [resolvable:$true] %s625
          %628 = dma.hbm_to_vmem [thread:$0]  %s8, 16, %s626, [#allocation13]
        $region36: #{tpu_custom_call.1} parent=11 // pred_fallthru
          _
        // Predicated region
        $region37: #{tpu_custom_call.1} parent=11 // pred_check
          %p629 = pneg %p265
        $region38: #{tpu_custom_call.1} parent=11 // pred_check_branch
          %631 = sbr.rel (%p629) target = $region40
        $region39: #{tpu_custom_call.1} parent=11 // pred_region
          _
        $region40: #{tpu_custom_call.1} parent=11 // pred_fallthru
          _
        // Predicated region
        $region41: #{tpu_custom_call.1} parent=11 // pred_check
          %p632 = pneg %p286
        $region42: #{tpu_custom_call.1} parent=11 // pred_check_branch
          %634 = sbr.rel (%p632) target = $region44
        $region43: #{tpu_custom_call.1} parent=11 // pred_region
          _
        $region44: #{tpu_custom_call.1} parent=11 // pred_fallthru
          _
        // Predicated region
        $region45: #{tpu_custom_call.1} parent=11 // pred_check
          %p635 = pneg %p307
        $region46: #{tpu_custom_call.1} parent=11 // pred_check_branch
          %637 = sbr.rel (%p635) target = $region48
        $region47: #{tpu_custom_call.1} parent=11 // pred_region
          _
        $region48: #{tpu_custom_call.1} parent=11 // pred_fallthru
          _
        // Predicated region
        $region49: #{tpu_custom_call.1} parent=11 // pred_check
          %p638 = pneg %p328
        $region50: #{tpu_custom_call.1} parent=11 // pred_check_branch
          %640 = sbr.rel (%p638) target = $region52
        $region51: #{tpu_custom_call.1} parent=11 // pred_region
          _
        $region52: #{tpu_custom_call.1} parent=11 // pred_fallthru
          _
        // Predicated region
        $region53: #{tpu_custom_call.1} parent=11 // pred_check
          %p641 = pneg %p349
        $region54: #{tpu_custom_call.1} parent=11 // pred_check_branch
          %643 = sbr.rel (%p641) target = $region56
        $region55: #{tpu_custom_call.1} parent=11 // pred_region
          _
        $region56: #{tpu_custom_call.1} parent=11 // pred_fallthru
          _
        // Predicated region
        $region57: #{tpu_custom_call.1} parent=11 // pred_check
          %p644 = pneg %p370
        $region58: #{tpu_custom_call.1} parent=11 // pred_check_branch
          %646 = sbr.rel (%p644) target = $region60
        $region59: #{tpu_custom_call.1} parent=11 // pred_region
          _
        $region60: #{tpu_custom_call.1} parent=11 // pred_fallthru
          _
        // Predicated region
        $region61: #{tpu_custom_call.1} parent=11 // pred_check
          %p647 = pneg %p391
        $region62: #{tpu_custom_call.1} parent=11 // pred_check_branch
          %649 = sbr.rel (%p647) target = $region64
        $region63: #{tpu_custom_call.1} parent=11 // pred_region
          _
        $region64: #{tpu_custom_call.1} parent=11 // pred_fallthru
          _
        // Predicated region
        $region65: #{tpu_custom_call.1} parent=11 // pred_check
          %p650 = pneg %p412
        $region66: #{tpu_custom_call.1} parent=11 // pred_check_branch
          %652 = sbr.rel (%p650) target = $region68
        $region67: #{tpu_custom_call.1} parent=11 // pred_region
          _
        $region68: #{tpu_custom_call.1} parent=11 // pred_fallthru
          _
        // Predicated region
        $region69: #{tpu_custom_call.1} parent=11 // pred_check
          %p653 = pneg %p433
        $region70: #{tpu_custom_call.1} parent=11 // pred_check_branch
          %655 = sbr.rel (%p653) target = $region72
        $region71: #{tpu_custom_call.1} parent=11 // pred_region
          _
        $region72: #{tpu_custom_call.1} parent=11 // pred_fallthru
          _
        // Predicated region
        $region73: #{tpu_custom_call.1} parent=11 // pred_check
          %p656 = pneg %p454
        $region74: #{tpu_custom_call.1} parent=11 // pred_check_branch
          %658 = sbr.rel (%p656) target = $region76
        $region75: #{tpu_custom_call.1} parent=11 // pred_region
          _
        $region76: #{tpu_custom_call.1} parent=11 // pred_fallthru
          _
        // Predicated region
        $region77: #{tpu_custom_call.1} parent=11 // pred_check
          %p659 = pneg %p475
        $region78: #{tpu_custom_call.1} parent=11 // pred_check_branch
          %661 = sbr.rel (%p659) target = $region80
        $region79: #{tpu_custom_call.1} parent=11 // pred_region
          _
        $region80: #{tpu_custom_call.1} parent=11 // pred_fallthru
          _
        // Predicated region
        $region81: #{tpu_custom_call.1} parent=11 // pred_check
          %p662 = pneg %p496
        $region82: #{tpu_custom_call.1} parent=11 // pred_check_branch
          %664 = sbr.rel (%p662) target = $region84
        $region83: #{tpu_custom_call.1} parent=11 // pred_region
          _
        $region84: #{tpu_custom_call.1} parent=11 // pred_fallthru
          _
        // Predicated region
        $region85: #{tpu_custom_call.1} parent=11 // pred_check
          %p665 = pneg %p517
        $region86: #{tpu_custom_call.1} parent=11 // pred_check_branch
          %667 = sbr.rel (%p665) target = $region88
        $region87: #{tpu_custom_call.1} parent=11 // pred_region
          _
        $region88: #{tpu_custom_call.1} parent=11 // pred_fallthru
          _
        // Predicated region
        $region89: #{tpu_custom_call.1} parent=11 // pred_check
          %p668 = pneg %p538
        $region90: #{tpu_custom_call.1} parent=11 // pred_check_branch
          %670 = sbr.rel (%p668) target = $region92
        $region91: #{tpu_custom_call.1} parent=11 // pred_region
          _
        $region92: #{tpu_custom_call.1} parent=11 // pred_fallthru
          _
      $region12: #{tpu_custom_call.1} parent=5 // pred_fallthru
        _
      %p671 = scmp.lt.s32.totalorder %s40, 2
      // Predicated region
      $region93: #{tpu_custom_call.1} parent=5 // pred_check
        %p672 = pneg %p671
      $region94: #{tpu_custom_call.1} parent=5 // pred_check_branch
        %674 = sbr.rel (%p672) target = $region96
      $region95: #{tpu_custom_call.1} parent=5 // pred_region
        // Predicated region
        $region97: #{tpu_custom_call.1} parent=95 // pred_check
          %p675 = pneg %p60
        $region98: #{tpu_custom_call.1} parent=95 // pred_check_branch
          %677 = sbr.rel (%p675) target = $region100
        $region99: #{tpu_custom_call.1} parent=95 // pred_region
          %s678 = sand.u32 %s50, 1
          %s679 = scalar_lea.sflag [#allocation4], %s678
          %s680 = sand.u32 %s50, 1
          %s681 = smul.addr %s680, 4
          %s682 = scalar_lea.vmem [#allocation3], %s681
          %s684 = ssub.s32 64, 64
          %685 = vsyncadd %s679, %s684
          %s686 = smul.addr %s40, 64
          %s687 = scalar_lea.hbm %s0, %s686
          %s689 = sshll.u32 %s682, 4
          %s690 = int_to_ptr.vmem [resolvable:$true] %s689
          %692 = dma.hbm_to_vmem [thread:$0]  %s687, 64, %s690, %s679
        $region100: #{tpu_custom_call.1} parent=95 // pred_fallthru
          _
        // Predicated region
        $region101: #{tpu_custom_call.1} parent=95 // pred_check
          %p693 = pneg %p86
        $region102: #{tpu_custom_call.1} parent=95 // pred_check_branch
          %695 = sbr.rel (%p693) target = $region104
        $region103: #{tpu_custom_call.1} parent=95 // pred_region
          %p696 = scmp.lt.s32.totalorder %s40, 1
          %s697 = scalar_select %p696, %s40, 1
          %s698 = smul.addr %s697, 8
          %s699 = scalar_lea.vmem %s1, %s698
        $region104: #{tpu_custom_call.1} parent=95 // pred_fallthru
          _
        // Predicated region
        $region105: #{tpu_custom_call.1} parent=95 // pred_check
          %p700 = pneg %p112
        $region106: #{tpu_custom_call.1} parent=95 // pred_check_branch
          %702 = sbr.rel (%p700) target = $region108
        $region107: #{tpu_custom_call.1} parent=95 // pred_region
          %s703 = sand.u32 %s40, 1
          %s704 = scalar_lea.sflag [#allocation7], %s703
          %s705 = sand.u32 %s102, 1
          %s706 = smul.addr %s705, 4
          %s707 = scalar_lea.vmem [#allocation6], %s706
          %s709 = ssub.s32 64, 64
          %710 = vsyncadd %s704, %s709
          %s711 = smul.addr %s40, 64
          %s712 = scalar_lea.hbm %s2, %s711
          %s714 = sshll.u32 %s707, 4
          %s715 = int_to_ptr.vmem [resolvable:$true] %s714
          %717 = dma.hbm_to_vmem [thread:$0]  %s712, 64, %s715, %s704
        $region108: #{tpu_custom_call.1} parent=95 // pred_fallthru
          _
      $region96: #{tpu_custom_call.1} parent=5 // pred_fallthru
        _
      %p718 = scmp.le.s32.totalorder 1, %s40
      %p719 = scmp.lt.s32.totalorder %s40, 3
      %p720 = pnand %p718, %p719
      %p721 = pneg %p720
      // Predicated region
      $region109: #{tpu_custom_call.1} parent=5 // pred_check
        _
      $region110: #{tpu_custom_call.1} parent=5 // pred_check_branch
        %723 = sbr.rel (%p720) target = $region112
      $region111: #{tpu_custom_call.1} parent=5 // pred_region
        %s724 = ssub.s32 %s40, 1
        %s725 = sand.u32 %s53, 1
        %s726 = scalar_lea.sflag [#allocation4], %s725
        %s727 = sand.u32 %s53, 1
        %s728 = smul.addr %s727, 4
        %s729 = scalar_lea.vmem [#allocation3], %s728
        // Predicated region
        $region113: #{tpu_custom_call.1} parent=111 // pred_check
          %p730 = pneg %p66
        $region114: #{tpu_custom_call.1} parent=111 // pred_check_branch
          %732 = sbr.rel (%p730) target = $region116
        $region115: #{tpu_custom_call.1} parent=111 // pred_region
          %733 = dma.done %s726, 64
        $region116: #{tpu_custom_call.1} parent=111 // pred_fallthru
          _
        %s734 = sand.u32 %s45, 1
        %s735 = scalar_lea.sflag [#allocation7], %s734
        %s736 = sand.u32 %s105, 1
        %s737 = smul.addr %s736, 4
        %s738 = scalar_lea.vmem [#allocation6], %s737
        // Predicated region
        $region117: #{tpu_custom_call.1} parent=111 // pred_check
          %p739 = pneg %p118
        $region118: #{tpu_custom_call.1} parent=111 // pred_check_branch
          %741 = sbr.rel (%p739) target = $region120
        $region119: #{tpu_custom_call.1} parent=111 // pred_region
          %742 = dma.done %s735, 64
        $region120: #{tpu_custom_call.1} parent=111 // pred_fallthru
          _
        // Predicated region
        $region121: #{tpu_custom_call.1} parent=111 // pred_check
          %p743 = pneg %p160
        $region122: #{tpu_custom_call.1} parent=111 // pred_check_branch
          %745 = sbr.rel (%p743) target = $region124
        $region123: #{tpu_custom_call.1} parent=111 // pred_region
          %746 = dma.done [#allocation7], 16
        $region124: #{tpu_custom_call.1} parent=111 // pred_fallthru
          _
        // Predicated region
        $region125: #{tpu_custom_call.1} parent=111 // pred_check
          %p747 = pneg %p202
        $region126: #{tpu_custom_call.1} parent=111 // pred_check_branch
          %749 = sbr.rel (%p747) target = $region128
        $region127: #{tpu_custom_call.1} parent=111 // pred_region
          %750 = dma.done [#allocation10], 16
        $region128: #{tpu_custom_call.1} parent=111 // pred_fallthru
          _
        // Predicated region
        $region129: #{tpu_custom_call.1} parent=111 // pred_check
          %p751 = pneg %p223
        $region130: #{tpu_custom_call.1} parent=111 // pred_check_branch
          %753 = sbr.rel (%p751) target = $region132
        $region131: #{tpu_custom_call.1} parent=111 // pred_region
          %754 = dma.done [#allocation10], 16
        $region132: #{tpu_custom_call.1} parent=111 // pred_fallthru
          _
        // Predicated region
        $region133: #{tpu_custom_call.1} parent=111 // pred_check
          %p755 = pneg %p244
        $region134: #{tpu_custom_call.1} parent=111 // pred_check_branch
          %757 = sbr.rel (%p755) target = $region136
        $region135: #{tpu_custom_call.1} parent=111 // pred_region
          %758 = dma.done [#allocation13], 16
        $region136: #{tpu_custom_call.1} parent=111 // pred_fallthru
          _
        %s759 = sand.u32 %s53, 1
        %s760 = scalar_lea.sflag [#allocation4], %s759
        %s761 = sand.u32 %s53, 1
        %s762 = smul.addr %s761, 4
        %s763 = scalar_lea.vmem [#allocation3], %s762
        %p764 = pneg %p66
        %p765 = pneg %p63
        %p766 = scmp.lt.s32.totalorder %s45, 1
        %s767 = scalar_select %p766, %s45, 1
        %s768 = smul.addr %s767, 8
        %s769 = scalar_lea.vmem %s1, %s768
        %p770 = pneg %p92
        %p771 = pneg %p89
        %s772 = sand.u32 %s45, 1
        %s773 = scalar_lea.sflag [#allocation7], %s772
        %s774 = sand.u32 %s105, 1
        %s775 = smul.addr %s774, 4
        %s776 = scalar_lea.vmem [#allocation6], %s775
        %p777 = pneg %p118
        %p778 = pneg %p115
        %p779 = pneg %p139
        %p780 = pneg %p136
        %p781 = pneg %p160
        %p782 = pneg %p157
        %p783 = pneg %p181
        %p784 = pneg %p178
        %p785 = pneg %p202
        %p786 = pneg %p199
        %p787 = pneg %p223
        %p788 = pneg %p220
        %p789 = pneg %p244
        %p790 = pneg %p241
        %p791 = pneg %p265
        %p792 = pneg %p262
        %p793 = pneg %p286
        %p794 = pneg %p283
        %p795 = pneg %p307
        %p796 = pneg %p304
        %p797 = pneg %p328
        %p798 = pneg %p325
        %p799 = pneg %p349
        %p800 = pneg %p346
        %p801 = pneg %p370
        %p802 = pneg %p367
        %p803 = pneg %p391
        %p804 = pneg %p388
        %p805 = pneg %p412
        %p806 = pneg %p409
        %p807 = pneg %p433
        %p808 = pneg %p430
        %p809 = pneg %p454
        %p810 = pneg %p451
        %p811 = pneg %p475
        %p812 = pneg %p472
        %p813 = pneg %p496
        %p814 = pneg %p493
        %p815 = pneg %p517
        %p816 = pneg %p514
        %p817 = pneg %p538
        %p818 = pneg %p535
        %p819 = pneg %p564
        %p820 = pneg %p561
        %s821 = sand.u32 %s551, 1
        %s822 = scalar_lea.sflag [#allocation5], %s821
        %s823 = sand.u32 %s551, 1
        %s824 = smul.addr %s823, 4
        %s825 = scalar_lea.vmem [#allocation14], %s824
        %p826 = scmp.lt.s32.totalorder %s45, 1
        %s827 = scalar_select %p826, %s45, 1
        %s828 = smul.addr %s827, 8
        %s829 = scalar_lea.vmem %s1, %s828
        %v831 = vld [vmem:[%s729] sm:$0xf]
        %v832 = vunpack.c.l.bf16 %v831
        %v833 = vld [vmem:[%s829] sm:$0xff]
        %v834 = vlaneseq
        %v835 = vand.u32 %v834, 127
        %836 = vset.pattern.permute.xlu0 0
        %837 = vperm.xlu0 %836, %v833
        %v838 = vpop.permute.xlu0 %837
        %vm839 = vcmp.lt.s32.totalorder %v835, %v838
        %v840 = vsel %vm839, 0.0, -10000.0
        %v841 = vld [vmem:[%s3] sm:$0xf]
        %v842 = vld [vmem:[%s3 + $0x4] sm:$0xf]
        %v843 = vld [vmem:[%s3 + $0x8] sm:$0xf]
        %v844 = vld [vmem:[%s3 + $0xc] sm:$0xf]
        %v845 = vld [vmem:[#allocation8] sm:$0x1]
        %v847 = vlaneseq
        %v848 = vshrl.u32 %v847, 7
        %v849 = vsub.s32 0, %v848
        %v850 = vrot.slane %v845, %v849
        %v856 = vunpack.c.l.b16 %v841
        %v857 = vunpack.c.l.b16 %v842
        %v858 = vunpack.c.l.b16 %v843
        %v859 = vunpack.c.l.b16 %v844
        %v860 = vpack.c.b16 %v857, %v856
        %v861 = vpack.c.b16 %v859, %v858
        %vm864 = vcmask 261120
        %v866 = vsel %vm864, %v831, 0
        %868 = vmatprep.subr.bf16.mxu0 0
        %869 = vmatpush1.bf16.msra.mxu0 %v860
        %870 = vmatprep.subr.bf16.mxu0 0
        %871 = vmatpush1.bf16.msra.mxu0 %v861
        %872 = vmatprep.subr.bf16.mxu0 0
        %873 = vmatpush1.bf16.msra.mxu0 0
        %874 = vmatprep.subr.bf16.mxu0 0
        %875 = vmatpush1.bf16.msra.mxu0 0
        %876 = vmatprep.subr.bf16.mxu0 0
        %877 = vmatpush1.bf16.msra.mxu0 0
        %878 = vmatprep.subr.bf16.mxu0 0
        %879 = vmatpush1.bf16.msra.mxu0 0
        %880 = vmatprep.subr.bf16.mxu0 0
        %881 = vmatpush1.bf16.msra.mxu0 0
        %882 = vmatprep.subr.bf16.mxu0 0
        %883 = vmatpush1.bf16.msra.mxu0 0
        %884 = vmatprep.subr.bf16.mxu0 0
        %885 = vmatpush1.bf16.msra.mxu0 0
        %886 = vmatprep.subr.bf16.mxu0 0
        %887 = vmatpush1.bf16.msra.mxu0 0
        %888 = vmatprep.subr.bf16.mxu0 0
        %889 = vmatpush1.bf16.msra.mxu0 0
        %890 = vmatprep.subr.bf16.mxu0 0
        %891 = vmatpush1.bf16.msra.mxu0 0
        %892 = vmatprep.subr.bf16.mxu0 0
        %893 = vmatpush1.bf16.msra.mxu0 0
        %894 = vmatprep.subr.bf16.mxu0 0
        %895 = vmatpush1.bf16.msra.mxu0 0
        %896 = vmatprep.subr.bf16.mxu0 0
        %897 = vmatpush1.bf16.msra.mxu0 0
        %898 = vmatprep.subr.bf16.mxu0 0
        %899 = vmatpush1.bf16.msra.mxu0 0
        %900 = vmatprep.mubr.bf16.mxu0 0
        %901 = vmatmul.mubr.bf16.gmra.mrb[0].mxu0 %v866
        %v902 = vpop.f32.mrb[0].mxu0
        %v903 = vadd.f32 %v850, %v902
        %v904 = vpop.f32.mrb[0].mxu0
        %v905 = vpop.f32.mrb[0].mxu0
        %v906 = vpop.f32.mrb[0].mxu0
        %907 = vdwg.mxu0
        %v908 = vmul.f32 %v903, 0.35355338
        %v909 = vpack.c.bf16 %v908, %v908
        %v910 = vpack.c.bf16 %v903, %v903
        %912 = vrot.lane.b32.xlu0 %v910, 96
        %v913 = vpop.permute.xlu0 %912
        %vm914 = vcmask 64512
        %v916 = vsel %vm914, %v909, 0
        %v919 = vsel %vm914, %v913, 0
        %921 = vmatprep.subr.bf16.mxu0 0
        %922 = vmatpush1.bf16.xpose.msra.mxu0 %v919
        %923 = vmatprep.subr.bf16.mxu0 0
        %924 = vmatpush1.bf16.xpose.msra.mxu0 0
        %925 = vmatprep.subr.bf16.mxu0 0
        %926 = vmatpush1.bf16.xpose.msra.mxu0 0
        %927 = vmatprep.subr.bf16.mxu0 0
        %928 = vmatpush1.bf16.xpose.msra.mxu0 0
        %929 = vmatprep.subr.bf16.mxu0 0
        %930 = vmatpush1.bf16.xpose.msra.mxu0 0
        %931 = vmatprep.subr.bf16.mxu0 0
        %932 = vmatpush1.bf16.xpose.msra.mxu0 0
        %933 = vmatprep.subr.bf16.mxu0 0
        %934 = vmatpush1.bf16.xpose.msra.mxu0 0
        %935 = vmatprep.subr.bf16.mxu0 0
        %936 = vmatpush1.bf16.xpose.msra.mxu0 0
        %937 = vmatprep.subr.bf16.mxu0 0
        %938 = vmatpush1.bf16.xpose.msra.mxu0 0
        %939 = vmatprep.subr.bf16.mxu0 0
        %940 = vmatpush1.bf16.xpose.msra.mxu0 0
        %941 = vmatprep.subr.bf16.mxu0 0
        %942 = vmatpush1.bf16.xpose.msra.mxu0 0
        %943 = vmatprep.subr.bf16.mxu0 0
        %944 = vmatpush1.bf16.xpose.msra.mxu0 0
        %945 = vmatprep.subr.bf16.mxu0 0
        %946 = vmatpush1.bf16.xpose.msra.mxu0 0
        %947 = vmatprep.subr.bf16.mxu0 0
        %948 = vmatpush1.bf16.xpose.msra.mxu0 0
        %949 = vmatprep.subr.bf16.mxu0 0
        %950 = vmatpush1.bf16.xpose.msra.mxu0 0
        %951 = vmatprep.subr.bf16.mxu0 0
        %952 = vmatpush1.bf16.xpose.msra.mxu0 0
        %953 = vmatprep.mubr.bf16.mxu0 0
        %954 = vmatmul.mubr.bf16.gmra.mrb[0].mxu0 %v916
        %v955 = vpop.f32.mrb[0].mxu0
        %v956 = vadd.f32 %v840, %v955
        %v957 = vpop.f32.mrb[0].mxu0
        %v958 = vpop.f32.mrb[0].mxu0
        %v959 = vpop.f32.mrb[0].mxu0
        %960 = vdwg.mxu0
        %v961 = vsel %vm914, %v956, -inf
        %962 = vmax.xlane.f32.xlu0 %v961
        %v963 = vpop.xlane.xlu0 %962
        %v964 = vsub.f32 %v956, %v963
        %v965 = vmul.f32 %v964, 1.442695
        %v966 = vpow.pop %v965
        %v967 = vsel %vm914, %v966, 0.0
        %968 = vadd.xlane.f32.xlu0 %v967
        %v969 = vpop.xlane.xlu0 %968
        %v970 = vrcp.pop %v969
        %v971 = vmul.f32 %v966, %v970
        %v972 = vpack.c.bf16 %v971, %v971
        %973 = vrot.lane.b32.xlu0 %v910, 64
        %v974 = vpop.permute.xlu0 %973
        %v976 = vsel %vm914, %v972, 0
        %vm978 = vcmask 1043456
        %v980 = vsel %vm978, %v974, 0
        %982 = vmatprep.subr.bf16.mxu0 0
        %983 = vmatpush1.bf16.msra.mxu0 %v980
        %984 = vmatprep.subr.bf16.mxu0 0
        %985 = vmatpush1.bf16.msra.mxu0 0
        %986 = vmatprep.subr.bf16.mxu0 0
        %987 = vmatpush1.bf16.msra.mxu0 0
        %988 = vmatprep.subr.bf16.mxu0 0
        %989 = vmatpush1.bf16.msra.mxu0 0
        %990 = vmatprep.subr.bf16.mxu0 0
        %991 = vmatpush1.bf16.msra.mxu0 0
        %992 = vmatprep.subr.bf16.mxu0 0
        %993 = vmatpush1.bf16.msra.mxu0 0
        %994 = vmatprep.subr.bf16.mxu0 0
        %995 = vmatpush1.bf16.msra.mxu0 0
        %996 = vmatprep.subr.bf16.mxu0 0
        %997 = vmatpush1.bf16.msra.mxu0 0
        %998 = vmatprep.subr.bf16.mxu0 0
        %999 = vmatpush1.bf16.msra.mxu0 0
        %1000 = vmatprep.subr.bf16.mxu0 0
        %1001 = vmatpush1.bf16.msra.mxu0 0
        %1002 = vmatprep.subr.bf16.mxu0 0
        %1003 = vmatpush1.bf16.msra.mxu0 0
        %1004 = vmatprep.subr.bf16.mxu0 0
        %1005 = vmatpush1.bf16.msra.mxu0 0
        %1006 = vmatprep.subr.bf16.mxu0 0
        %1007 = vmatpush1.bf16.msra.mxu0 0
        %1008 = vmatprep.subr.bf16.mxu0 0
        %1009 = vmatpush1.bf16.msra.mxu0 0
        %1010 = vmatprep.subr.bf16.mxu0 0
        %1011 = vmatpush1.bf16.msra.mxu0 0
        %1012 = vmatprep.subr.bf16.mxu0 0
        %1013 = vmatpush1.bf16.msra.mxu0 0
        %1014 = vmatprep.mubr.bf16.mxu0 0
        %1015 = vmatmul.mubr.bf16.gmra.mrb[0].mxu0 %v976
        %v1016 = vpop.f32.mrb[0].mxu0
        %v1017 = vadd.f32 0.0, %v1016
        %v1018 = vpop.f32.mrb[0].mxu0
        %v1019 = vpop.f32.mrb[0].mxu0
        %v1020 = vpop.f32.mrb[0].mxu0
        %1021 = vdwg.mxu0
        %1022 = vst.msk [vmem:[#allocation2] sm:$0xff] %vm914, %v1017
        %1024 = vrot.lane.b32.xlu0 %v909, 120
        %v1025 = vpop.permute.xlu0 %1024
        %1026 = vrot.lane.b32.xlu0 %v910, 88
        %v1027 = vpop.permute.xlu0 %1026
        %v1029 = vsel %vm914, %v1025, 0
        %v1032 = vsel %vm914, %v1027, 0
        %1034 = vmatprep.subr.bf16.mxu0 0
        %1035 = vmatpush1.bf16.xpose.msra.mxu0 %v1032
        %1036 = vmatprep.subr.bf16.mxu0 0
        %1037 = vmatpush1.bf16.xpose.msra.mxu0 0
        %1038 = vmatprep.subr.bf16.mxu0 0
        %1039 = vmatpush1.bf16.xpose.msra.mxu0 0
        %1040 = vmatprep.subr.bf16.mxu0 0
        %1041 = vmatpush1.bf16.xpose.msra.mxu0 0
        %1042 = vmatprep.subr.bf16.mxu0 0
        %1043 = vmatpush1.bf16.xpose.msra.mxu0 0
        %1044 = vmatprep.subr.bf16.mxu0 0
        %1045 = vmatpush1.bf16.xpose.msra.mxu0 0
        %1046 = vmatprep.subr.bf16.mxu0 0
        %1047 = vmatpush1.bf16.xpose.msra.mxu0 0
        %1048 = vmatprep.subr.bf16.mxu0 0
        %1049 = vmatpush1.bf16.xpose.msra.mxu0 0
        %1050 = vmatprep.subr.bf16.mxu0 0
        %1051 = vmatpush1.bf16.xpose.msra.mxu0 0
        %1052 = vmatprep.subr.bf16.mxu0 0
        %1053 = vmatpush1.bf16.xpose.msra.mxu0 0
        %1054 = vmatprep.subr.bf16.mxu0 0
        %1055 = vmatpush1.bf16.xpose.msra.mxu0 0
        %1056 = vmatprep.subr.bf16.mxu0 0
        %1057 = vmatpush1.bf16.xpose.msra.mxu0 0
        %1058 = vmatprep.subr.bf16.mxu0 0
        %1059 = vmatpush1.bf16.xpose.msra.mxu0 0
        %1060 = vmatprep.subr.bf16.mxu0 0
        %1061 = vmatpush1.bf16.xpose.msra.mxu0 0
        %1062 = vmatprep.subr.bf16.mxu0 0
        %1063 = vmatpush1.bf16.xpose.msra.mxu0 0
        %1064 = vmatprep.subr.bf16.mxu0 0
        %1065 = vmatpush1.bf16.xpose.msra.mxu0 0
        %1066 = vmatprep.mubr.bf16.mxu0 0
        %1067 = vmatmul.mubr.bf16.gmra.mrb[0].mxu0 %v1029
        %v1068 = vpop.f32.mrb[0].mxu0
        %v1069 = vadd.f32 %v840, %v1068
        %v1070 = vpop.f32.mrb[0].mxu0
        %v1071 = vpop.f32.mrb[0].mxu0
        %v1072 = vpop.f32.mrb[0].mxu0
        %1073 = vdwg.mxu0
        %v1074 = vsel %vm914, %v1069, -inf
        %1075 = vmax.xlane.f32.xlu0 %v1074
        %v1076 = vpop.xlane.xlu0 %1075
        %v1077 = vsub.f32 %v1069, %v1076
        %v1078 = vmul.f32 %v1077, 1.442695
        %v1079 = vpow.pop %v1078
        %v1080 = vsel %vm914, %v1079, 0.0
        %1081 = vadd.xlane.f32.xlu0 %v1080
        %v1082 = vpop.xlane.xlu0 %1081
        %v1083 = vrcp.pop %v1082
        %v1084 = vmul.f32 %v1079, %v1083
        %v1085 = vpack.c.bf16 %v1084, %v1084
        %1086 = vrot.lane.b32.xlu0 %v910, 56
        %v1087 = vpop.permute.xlu0 %1086
        %v1089 = vsel %vm914, %v1085, 0
        %v1092 = vsel %vm978, %v1087, 0
        %1094 = vmatprep.subr.bf16.mxu0 0
        %1095 = vmatpush1.bf16.msra.mxu0 %v1092
        %1096 = vmatprep.subr.bf16.mxu0 0
        %1097 = vmatpush1.bf16.msra.mxu0 0
        %1098 = vmatprep.subr.bf16.mxu0 0
        %1099 = vmatpush1.bf16.msra.mxu0 0
        %1100 = vmatprep.subr.bf16.mxu0 0
        %1101 = vmatpush1.bf16.msra.mxu0 0
        %1102 = vmatprep.subr.bf16.mxu0 0
        %1103 = vmatpush1.bf16.msra.mxu0 0
        %1104 = vmatprep.subr.bf16.mxu0 0
        %1105 = vmatpush1.bf16.msra.mxu0 0
        %1106 = vmatprep.subr.bf16.mxu0 0
        %1107 = vmatpush1.bf16.msra.mxu0 0
        %1108 = vmatprep.subr.bf16.mxu0 0
        %1109 = vmatpush1.bf16.msra.mxu0 0
        %1110 = vmatprep.subr.bf16.mxu0 0
        %1111 = vmatpush1.bf16.msra.mxu0 0
        %1112 = vmatprep.subr.bf16.mxu0 0
        %1113 = vmatpush1.bf16.msra.mxu0 0
        %1114 = vmatprep.subr.bf16.mxu0 0
        %1115 = vmatpush1.bf16.msra.mxu0 0
        %1116 = vmatprep.subr.bf16.mxu0 0
        %1117 = vmatpush1.bf16.msra.mxu0 0
        %1118 = vmatprep.subr.bf16.mxu0 0
        %1119 = vmatpush1.bf16.msra.mxu0 0
        %1120 = vmatprep.subr.bf16.mxu0 0
        %1121 = vmatpush1.bf16.msra.mxu0 0
        %1122 = vmatprep.subr.bf16.mxu0 0
        %1123 = vmatpush1.bf16.msra.mxu0 0
        %1124 = vmatprep.subr.bf16.mxu0 0
        %1125 = vmatpush1.bf16.msra.mxu0 0
        %1126 = vmatprep.mubr.bf16.mxu0 0
        %1127 = vmatmul.mubr.bf16.gmra.mrb[0].mxu0 %v1089
        %v1128 = vpop.f32.mrb[0].mxu0
        %v1129 = vadd.f32 0.0, %v1128
        %v1130 = vpop.f32.mrb[0].mxu0
        %v1131 = vpop.f32.mrb[0].mxu0
        %v1132 = vpop.f32.mrb[0].mxu0
        %1133 = vdwg.mxu0
        %1135 = vrot.lane.b32.xlu0 %v1129, 8
        %v1136 = vpop.permute.xlu0 %1135
        %vm1138 = vcmask 130112
        %1139 = vst.msk [vmem:[#allocation2] sm:$0xff] %vm1138, %v1136
        %1140 = vrot.lane.b32.xlu0 %v909, 112
        %v1141 = vpop.permute.xlu0 %1140
        %1142 = vrot.lane.b32.xlu0 %v910, 80
        %v1143 = vpop.permute.xlu0 %1142
        %v1145 = vsel %vm914, %v1141, 0
        %v1148 = vsel %vm914, %v1143, 0
        %1150 = vmatprep.subr.bf16.mxu0 0
        %1151 = vmatpush1.bf16.xpose.msra.mxu0 %v1148
        %1152 = vmatprep.subr.bf16.mxu0 0
        %1153 = vmatpush1.bf16.xpose.msra.mxu0 0
        %1154 = vmatprep.subr.bf16.mxu0 0
        %1155 = vmatpush1.bf16.xpose.msra.mxu0 0
        %1156 = vmatprep.subr.bf16.mxu0 0
        %1157 = vmatpush1.bf16.xpose.msra.mxu0 0
        %1158 = vmatprep.subr.bf16.mxu0 0
        %1159 = vmatpush1.bf16.xpose.msra.mxu0 0
        %1160 = vmatprep.subr.bf16.mxu0 0
        %1161 = vmatpush1.bf16.xpose.msra.mxu0 0
        %1162 = vmatprep.subr.bf16.mxu0 0
        %1163 = vmatpush1.bf16.xpose.msra.mxu0 0
        %1164 = vmatprep.subr.bf16.mxu0 0
        %1165 = vmatpush1.bf16.xpose.msra.mxu0 0
        %1166 = vmatprep.subr.bf16.mxu0 0
        %1167 = vmatpush1.bf16.xpose.msra.mxu0 0
        %1168 = vmatprep.subr.bf16.mxu0 0
        %1169 = vmatpush1.bf16.xpose.msra.mxu0 0
        %1170 = vmatprep.subr.bf16.mxu0 0
        %1171 = vmatpush1.bf16.xpose.msra.mxu0 0
        %1172 = vmatprep.subr.bf16.mxu0 0
        %1173 = vmatpush1.bf16.xpose.msra.mxu0 0
        %1174 = vmatprep.subr.bf16.mxu0 0
        %1175 = vmatpush1.bf16.xpose.msra.mxu0 0
        %1176 = vmatprep.subr.bf16.mxu0 0
        %1177 = vmatpush1.bf16.xpose.msra.mxu0 0
        %1178 = vmatprep.subr.bf16.mxu0 0
        %1179 = vmatpush1.bf16.xpose.msra.mxu0 0
        %1180 = vmatprep.subr.bf16.mxu0 0
        %1181 = vmatpush1.bf16.xpose.msra.mxu0 0
        %1182 = vmatprep.mubr.bf16.mxu0 0
        %1183 = vmatmul.mubr.bf16.gmra.mrb[0].mxu0 %v1145
        %v1184 = vpop.f32.mrb[0].mxu0
        %v1185 = vadd.f32 %v840, %v1184
        %v1186 = vpop.f32.mrb[0].mxu0
        %v1187 = vpop.f32.mrb[0].mxu0
        %v1188 = vpop.f32.mrb[0].mxu0
        %1189 = vdwg.mxu0
        %v1190 = vsel %vm914, %v1185, -inf
        %1191 = vmax.xlane.f32.xlu0 %v1190
        %v1192 = vpop.xlane.xlu0 %1191
        %v1193 = vsub.f32 %v1185, %v1192
        %v1194 = vmul.f32 %v1193, 1.442695
        %v1195 = vpow.pop %v1194
        %v1196 = vsel %vm914, %v1195, 0.0
        %1197 = vadd.xlane.f32.xlu0 %v1196
        %v1198 = vpop.xlane.xlu0 %1197
        %v1199 = vrcp.pop %v1198
        %v1200 = vmul.f32 %v1195, %v1199
        %v1201 = vpack.c.bf16 %v1200, %v1200
        %1202 = vrot.lane.b32.xlu0 %v910, 48
        %v1203 = vpop.permute.xlu0 %1202
        %v1205 = vsel %vm914, %v1201, 0
        %v1208 = vsel %vm978, %v1203, 0
        %1210 = vmatprep.subr.bf16.mxu0 0
        %1211 = vmatpush1.bf16.msra.mxu0 %v1208
        %1212 = vmatprep.subr.bf16.mxu0 0
        %1213 = vmatpush1.bf16.msra.mxu0 0
        %1214 = vmatprep.subr.bf16.mxu0 0
        %1215 = vmatpush1.bf16.msra.mxu0 0
        %1216 = vmatprep.subr.bf16.mxu0 0
        %1217 = vmatpush1.bf16.msra.mxu0 0
        %1218 = vmatprep.subr.bf16.mxu0 0
        %1219 = vmatpush1.bf16.msra.mxu0 0
        %1220 = vmatprep.subr.bf16.mxu0 0
        %1221 = vmatpush1.bf16.msra.mxu0 0
        %1222 = vmatprep.subr.bf16.mxu0 0
        %1223 = vmatpush1.bf16.msra.mxu0 0
        %1224 = vmatprep.subr.bf16.mxu0 0
        %1225 = vmatpush1.bf16.msra.mxu0 0
        %1226 = vmatprep.subr.bf16.mxu0 0
        %1227 = vmatpush1.bf16.msra.mxu0 0
        %1228 = vmatprep.subr.bf16.mxu0 0
        %1229 = vmatpush1.bf16.msra.mxu0 0
        %1230 = vmatprep.subr.bf16.mxu0 0
        %1231 = vmatpush1.bf16.msra.mxu0 0
        %1232 = vmatprep.subr.bf16.mxu0 0
        %1233 = vmatpush1.bf16.msra.mxu0 0
        %1234 = vmatprep.subr.bf16.mxu0 0
        %1235 = vmatpush1.bf16.msra.mxu0 0
        %1236 = vmatprep.subr.bf16.mxu0 0
        %1237 = vmatpush1.bf16.msra.mxu0 0
        %1238 = vmatprep.subr.bf16.mxu0 0
        %1239 = vmatpush1.bf16.msra.mxu0 0
        %1240 = vmatprep.subr.bf16.mxu0 0
        %1241 = vmatpush1.bf16.msra.mxu0 0
        %1242 = vmatprep.mubr.bf16.mxu0 0
        %1243 = vmatmul.mubr.bf16.gmra.mrb[0].mxu0 %v1205
        %v1244 = vpop.f32.mrb[0].mxu0
        %v1245 = vadd.f32 0.0, %v1244
        %v1246 = vpop.f32.mrb[0].mxu0
        %v1247 = vpop.f32.mrb[0].mxu0
        %v1248 = vpop.f32.mrb[0].mxu0
        %1249 = vdwg.mxu0
        %1251 = vrot.lane.b32.xlu0 %v1245, 16
        %v1252 = vpop.permute.xlu0 %1251
        %vm1254 = vcmask 195712
        %1255 = vst.msk [vmem:[#allocation2] sm:$0xff] %vm1254, %v1252
        %1256 = vrot.lane.b32.xlu0 %v909, 104
        %v1257 = vpop.permute.xlu0 %1256
        %1258 = vrot.lane.b32.xlu0 %v910, 72
        %v1259 = vpop.permute.xlu0 %1258
        %v1261 = vsel %vm914, %v1257, 0
        %v1264 = vsel %vm914, %v1259, 0
        %1266 = vmatprep.subr.bf16.mxu0 0
        %1267 = vmatpush1.bf16.xpose.msra.mxu0 %v1264
        %1268 = vmatprep.subr.bf16.mxu0 0
        %1269 = vmatpush1.bf16.xpose.msra.mxu0 0
        %1270 = vmatprep.subr.bf16.mxu0 0
        %1271 = vmatpush1.bf16.xpose.msra.mxu0 0
        %1272 = vmatprep.subr.bf16.mxu0 0
        %1273 = vmatpush1.bf16.xpose.msra.mxu0 0
        %1274 = vmatprep.subr.bf16.mxu0 0
        %1275 = vmatpush1.bf16.xpose.msra.mxu0 0
        %1276 = vmatprep.subr.bf16.mxu0 0
        %1277 = vmatpush1.bf16.xpose.msra.mxu0 0
        %1278 = vmatprep.subr.bf16.mxu0 0
        %1279 = vmatpush1.bf16.xpose.msra.mxu0 0
        %1280 = vmatprep.subr.bf16.mxu0 0
        %1281 = vmatpush1.bf16.xpose.msra.mxu0 0
        %1282 = vmatprep.subr.bf16.mxu0 0
        %1283 = vmatpush1.bf16.xpose.msra.mxu0 0
        %1284 = vmatprep.subr.bf16.mxu0 0
        %1285 = vmatpush1.bf16.xpose.msra.mxu0 0
        %1286 = vmatprep.subr.bf16.mxu0 0
        %1287 = vmatpush1.bf16.xpose.msra.mxu0 0
        %1288 = vmatprep.subr.bf16.mxu0 0
        %1289 = vmatpush1.bf16.xpose.msra.mxu0 0
        %1290 = vmatprep.subr.bf16.mxu0 0
        %1291 = vmatpush1.bf16.xpose.msra.mxu0 0
        %1292 = vmatprep.subr.bf16.mxu0 0
        %1293 = vmatpush1.bf16.xpose.msra.mxu0 0
        %1294 = vmatprep.subr.bf16.mxu0 0
        %1295 = vmatpush1.bf16.xpose.msra.mxu0 0
        %1296 = vmatprep.subr.bf16.mxu0 0
        %1297 = vmatpush1.bf16.xpose.msra.mxu0 0
        %1298 = vmatprep.mubr.bf16.mxu0 0
        %1299 = vmatmul.mubr.bf16.gmra.mrb[0].mxu0 %v1261
        %v1300 = vpop.f32.mrb[0].mxu0
        %v1301 = vadd.f32 %v840, %v1300
        %v1302 = vpop.f32.mrb[0].mxu0
        %v1303 = vpop.f32.mrb[0].mxu0
        %v1304 = vpop.f32.mrb[0].mxu0
        %1305 = vdwg.mxu0
        %v1306 = vsel %vm914, %v1301, -inf
        %1307 = vmax.xlane.f32.xlu0 %v1306
        %v1308 = vpop.xlane.xlu0 %1307
        %v1309 = vsub.f32 %v1301, %v1308
        %v1310 = vmul.f32 %v1309, 1.442695
        %v1311 = vpow.pop %v1310
        %v1312 = vsel %vm914, %v1311, 0.0
        %1313 = vadd.xlane.f32.xlu0 %v1312
        %v1314 = vpop.xlane.xlu0 %1313
        %v1315 = vrcp.pop %v1314
        %v1316 = vmul.f32 %v1311, %v1315
        %v1317 = vpack.c.bf16 %v1316, %v1316
        %1318 = vrot.lane.b32.xlu0 %v910, 40
        %v1319 = vpop.permute.xlu0 %1318
        %v1321 = vsel %vm914, %v1317, 0
        %v1324 = vsel %vm978, %v1319, 0
        %1326 = vmatprep.subr.bf16.mxu0 0
        %1327 = vmatpush1.bf16.msra.mxu0 %v1324
        %1328 = vmatprep.subr.bf16.mxu0 0
        %1329 = vmatpush1.bf16.msra.mxu0 0
        %1330 = vmatprep.subr.bf16.mxu0 0
        %1331 = vmatpush1.bf16.msra.mxu0 0
        %1332 = vmatprep.subr.bf16.mxu0 0
        %1333 = vmatpush1.bf16.msra.mxu0 0
        %1334 = vmatprep.subr.bf16.mxu0 0
        %1335 = vmatpush1.bf16.msra.mxu0 0
        %1336 = vmatprep.subr.bf16.mxu0 0
        %1337 = vmatpush1.bf16.msra.mxu0 0
        %1338 = vmatprep.subr.bf16.mxu0 0
        %1339 = vmatpush1.bf16.msra.mxu0 0
        %1340 = vmatprep.subr.bf16.mxu0 0
        %1341 = vmatpush1.bf16.msra.mxu0 0
        %1342 = vmatprep.subr.bf16.mxu0 0
        %1343 = vmatpush1.bf16.msra.mxu0 0
        %1344 = vmatprep.subr.bf16.mxu0 0
        %1345 = vmatpush1.bf16.msra.mxu0 0
        %1346 = vmatprep.subr.bf16.mxu0 0
        %1347 = vmatpush1.bf16.msra.mxu0 0
        %1348 = vmatprep.subr.bf16.mxu0 0
        %1349 = vmatpush1.bf16.msra.mxu0 0
        %1350 = vmatprep.subr.bf16.mxu0 0
        %1351 = vmatpush1.bf16.msra.mxu0 0
        %1352 = vmatprep.subr.bf16.mxu0 0
        %1353 = vmatpush1.bf16.msra.mxu0 0
        %1354 = vmatprep.subr.bf16.mxu0 0
        %1355 = vmatpush1.bf16.msra.mxu0 0
        %1356 = vmatprep.subr.bf16.mxu0 0
        %1357 = vmatpush1.bf16.msra.mxu0 0
        %1358 = vmatprep.mubr.bf16.mxu0 0
        %1359 = vmatmul.mubr.bf16.gmra.mrb[0].mxu0 %v1321
        %v1360 = vpop.f32.mrb[0].mxu0
        %v1361 = vadd.f32 0.0, %v1360
        %v1362 = vpop.f32.mrb[0].mxu0
        %v1363 = vpop.f32.mrb[0].mxu0
        %v1364 = vpop.f32.mrb[0].mxu0
        %1365 = vdwg.mxu0
        %1367 = vrot.lane.b32.xlu0 %v1361, 24
        %v1368 = vpop.permute.xlu0 %1367
        %vm1370 = vcmask 261312
        %1371 = vst.msk [vmem:[#allocation2] sm:$0xff] %vm1370, %v1368
        %v1372 = vld [vmem:[#allocation2] sm:$0xff]
        %v1373 = vld [vmem:[%s5] sm:$0xf]
        %v1374 = vld [vmem:[%s5 + $0x4] sm:$0xf]
        %v1375 = vld [vmem:[%s5 + $0x8] sm:$0xf]
        %v1376 = vld [vmem:[%s5 + $0xc] sm:$0xf]
        %v1377 = vpack.c.bf16 %v1372, %v1372
        %v1378 = vld [vmem:[#allocation9] sm:$0x1]
        %v1380 = vlaneseq
        %v1381 = vshrl.u32 %v1380, 7
        %v1382 = vsub.s32 0, %v1381
        %v1383 = vrot.slane %v1378, %v1382
        %v1389 = vunpack.c.l.b16 %v1373
        %v1390 = vunpack.c.l.b16 %v1374
        %v1391 = vunpack.c.l.b16 %v1375
        %v1392 = vunpack.c.l.b16 %v1376
        %v1393 = vpack.c.b16 %v1390, %v1389
        %v1394 = vpack.c.b16 %v1392, %v1391
        %v1398 = vsel %vm864, %v1377, 0
        %1400 = vmatprep.subr.bf16.mxu0 0
        %1401 = vmatpush1.bf16.msra.mxu0 %v1393
        %1402 = vmatprep.subr.bf16.mxu0 0
        %1403 = vmatpush1.bf16.msra.mxu0 %v1394
        %1404 = vmatprep.subr.bf16.mxu0 0
        %1405 = vmatpush1.bf16.msra.mxu0 0
        %1406 = vmatprep.subr.bf16.mxu0 0
        %1407 = vmatpush1.bf16.msra.mxu0 0
        %1408 = vmatprep.subr.bf16.mxu0 0
        %1409 = vmatpush1.bf16.msra.mxu0 0
        %1410 = vmatprep.subr.bf16.mxu0 0
        %1411 = vmatpush1.bf16.msra.mxu0 0
        %1412 = vmatprep.subr.bf16.mxu0 0
        %1413 = vmatpush1.bf16.msra.mxu0 0
        %1414 = vmatprep.subr.bf16.mxu0 0
        %1415 = vmatpush1.bf16.msra.mxu0 0
        %1416 = vmatprep.subr.bf16.mxu0 0
        %1417 = vmatpush1.bf16.msra.mxu0 0
        %1418 = vmatprep.subr.bf16.mxu0 0
        %1419 = vmatpush1.bf16.msra.mxu0 0
        %1420 = vmatprep.subr.bf16.mxu0 0
        %1421 = vmatpush1.bf16.msra.mxu0 0
        %1422 = vmatprep.subr.bf16.mxu0 0
        %1423 = vmatpush1.bf16.msra.mxu0 0
        %1424 = vmatprep.subr.bf16.mxu0 0
        %1425 = vmatpush1.bf16.msra.mxu0 0
        %1426 = vmatprep.subr.bf16.mxu0 0
        %1427 = vmatpush1.bf16.msra.mxu0 0
        %1428 = vmatprep.subr.bf16.mxu0 0
        %1429 = vmatpush1.bf16.msra.mxu0 0
        %1430 = vmatprep.subr.bf16.mxu0 0
        %1431 = vmatpush1.bf16.msra.mxu0 0
        %1432 = vmatprep.mubr.bf16.mxu0 0
        %1433 = vmatmul.mubr.bf16.gmra.mrb[0].mxu0 %v1398
        %v1434 = vpop.f32.mrb[0].mxu0
        %v1435 = vadd.f32 %v1383, %v1434
        %v1436 = vpop.f32.mrb[0].mxu0
        %v1437 = vpop.f32.mrb[0].mxu0
        %v1438 = vpop.f32.mrb[0].mxu0
        %1439 = vdwg.mxu0
        %v1440 = vadd.f32 %v832, %v1435
        %v1441 = vld [vmem:[#allocation11] sm:$0x1]
        %v1442 = vld [vmem:[#allocation12] sm:$0x1]
        %v1443 = vsel %vm864, %v1440, 0.0
        %1444 = vadd.xlane.f32.xlu0 %v1443
        %v1445 = vpop.xlane.xlu0 %1444
        %v1446 = vrcp.pop 32.0
        %v1447 = vmul.f32 %v1445, %v1446
        %v1448 = vsub.f32 %v1440, %v1447
        %v1449 = vmul.f32 %v1448, %v1448
        %v1450 = vsel %vm864, %v1449, 0.0
        %1451 = vadd.xlane.f32.xlu0 %v1450
        %v1452 = vpop.xlane.xlu0 %1451
        %v1453 = vmul.f32 %v1452, %v1446
        %v1454 = vadd.f32 %v1453, 1e-05
        %v1455 = vrsqrt.pop %v1454
        %v1456 = vmul.f32 %v1448, %v1455
        %v1458 = vlaneseq
        %v1459 = vshrl.u32 %v1458, 7
        %v1460 = vsub.s32 0, %v1459
        %v1461 = vrot.slane %v1441, %v1460
        %v1463 = vmul.f32 %v1456, %v1461
        %v1465 = vlaneseq
        %v1466 = vshrl.u32 %v1465, 7
        %v1467 = vsub.s32 0, %v1466
        %v1468 = vrot.slane %v1442, %v1467
        %v1470 = vadd.f32 %v1463, %v1468
        %v1471 = vld [vmem:[%s9] sm:$0xf]
        %v1472 = vld [vmem:[%s9 + $0x4] sm:$0xf]
        %v1473 = vld [vmem:[%s9 + $0x8] sm:$0xf]
        %v1474 = vld [vmem:[%s9 + $0xc] sm:$0xf]
        %v1475 = vpack.c.bf16 %v1470, %v1470
        %v1476 = vld [vmem:[%s10] sm:$0x1]
        %v1478 = vlaneseq
        %v1479 = vshrl.u32 %v1478, 7
        %v1480 = vsub.s32 0, %v1479
        %v1481 = vrot.slane %v1476, %v1480
        %v1487 = vunpack.c.l.b16 %v1471
        %v1488 = vunpack.c.l.b16 %v1472
        %v1489 = vunpack.c.l.b16 %v1473
        %v1490 = vunpack.c.l.b16 %v1474
        %v1491 = vpack.c.b16 %v1488, %v1487
        %v1492 = vpack.c.b16 %v1490, %v1489
        %v1496 = vsel %vm864, %v1475, 0
        %1498 = vmatprep.subr.bf16.mxu0 0
        %1499 = vmatpush1.bf16.msra.mxu0 %v1491
        %1500 = vmatprep.subr.bf16.mxu0 0
        %1501 = vmatpush1.bf16.msra.mxu0 %v1492
        %1502 = vmatprep.subr.bf16.mxu0 0
        %1503 = vmatpush1.bf16.msra.mxu0 0
        %1504 = vmatprep.subr.bf16.mxu0 0
        %1505 = vmatpush1.bf16.msra.mxu0 0
        %1506 = vmatprep.subr.bf16.mxu0 0
        %1507 = vmatpush1.bf16.msra.mxu0 0
        %1508 = vmatprep.subr.bf16.mxu0 0
        %1509 = vmatpush1.bf16.msra.mxu0 0
        %1510 = vmatprep.subr.bf16.mxu0 0
        %1511 = vmatpush1.bf16.msra.mxu0 0
        %1512 = vmatprep.subr.bf16.mxu0 0
        %1513 = vmatpush1.bf16.msra.mxu0 0
        %1514 = vmatprep.subr.bf16.mxu0 0
        %1515 = vmatpush1.bf16.msra.mxu0 0
        %1516 = vmatprep.subr.bf16.mxu0 0
        %1517 = vmatpush1.bf16.msra.mxu0 0
        %1518 = vmatprep.subr.bf16.mxu0 0
        %1519 = vmatpush1.bf16.msra.mxu0 0
        %1520 = vmatprep.subr.bf16.mxu0 0
        %1521 = vmatpush1.bf16.msra.mxu0 0
        %1522 = vmatprep.subr.bf16.mxu0 0
        %1523 = vmatpush1.bf16.msra.mxu0 0
        %1524 = vmatprep.subr.bf16.mxu0 0
        %1525 = vmatpush1.bf16.msra.mxu0 0
        %1526 = vmatprep.subr.bf16.mxu0 0
        %1527 = vmatpush1.bf16.msra.mxu0 0
        %1528 = vmatprep.subr.bf16.mxu0 0
        %1529 = vmatpush1.bf16.msra.mxu0 0
        %1530 = vmatprep.mubr.bf16.mxu0 0
        %1531 = vmatmul.mubr.bf16.gmra.mrb[0].mxu0 %v1496
        %v1532 = vpop.f32.mrb[0].mxu0
        %v1533 = vadd.f32 %v1481, %v1532
        %v1534 = vpop.f32.mrb[0].mxu0
        %v1535 = vpop.f32.mrb[0].mxu0
        %v1536 = vpop.f32.mrb[0].mxu0
        %1537 = vdwg.mxu0
        %v1538 = vmul.f32 %v1533, 0.35355338
        %v1539 = vld [vmem:[%s738] sm:$0xf]
        %v1540 = vld [vmem:[%s11] sm:$0xf]
        %v1541 = vld [vmem:[%s11 + $0x4] sm:$0xf]
        %v1542 = vld [vmem:[%s11 + $0x8] sm:$0xf]
        %v1543 = vld [vmem:[%s11 + $0xc] sm:$0xf]
        %v1544 = vld [vmem:[%s12] sm:$0x1]
        %v1546 = vlaneseq
        %v1547 = vshrl.u32 %v1546, 7
        %v1548 = vsub.s32 0, %v1547
        %v1549 = vrot.slane %v1544, %v1548
        %v1555 = vunpack.c.l.b16 %v1540
        %v1556 = vunpack.c.l.b16 %v1541
        %v1557 = vunpack.c.l.b16 %v1542
        %v1558 = vunpack.c.l.b16 %v1543
        %v1559 = vpack.c.b16 %v1556, %v1555
        %v1560 = vpack.c.b16 %v1558, %v1557
        %v1564 = vsel %vm864, %v1539, 0
        %1566 = vmatprep.subr.bf16.mxu0 0
        %1567 = vmatpush1.bf16.msra.mxu0 %v1559
        %1568 = vmatprep.subr.bf16.mxu0 0
        %1569 = vmatpush1.bf16.msra.mxu0 %v1560
        %1570 = vmatprep.subr.bf16.mxu0 0
        %1571 = vmatpush1.bf16.msra.mxu0 0
        %1572 = vmatprep.subr.bf16.mxu0 0
        %1573 = vmatpush1.bf16.msra.mxu0 0
        %1574 = vmatprep.subr.bf16.mxu0 0
        %1575 = vmatpush1.bf16.msra.mxu0 0
        %1576 = vmatprep.subr.bf16.mxu0 0
        %1577 = vmatpush1.bf16.msra.mxu0 0
        %1578 = vmatprep.subr.bf16.mxu0 0
        %1579 = vmatpush1.bf16.msra.mxu0 0
        %1580 = vmatprep.subr.bf16.mxu0 0
        %1581 = vmatpush1.bf16.msra.mxu0 0
        %1582 = vmatprep.subr.bf16.mxu0 0
        %1583 = vmatpush1.bf16.msra.mxu0 0
        %1584 = vmatprep.subr.bf16.mxu0 0
        %1585 = vmatpush1.bf16.msra.mxu0 0
        %1586 = vmatprep.subr.bf16.mxu0 0
        %1587 = vmatpush1.bf16.msra.mxu0 0
        %1588 = vmatprep.subr.bf16.mxu0 0
        %1589 = vmatpush1.bf16.msra.mxu0 0
        %1590 = vmatprep.subr.bf16.mxu0 0
        %1591 = vmatpush1.bf16.msra.mxu0 0
        %1592 = vmatprep.subr.bf16.mxu0 0
        %1593 = vmatpush1.bf16.msra.mxu0 0
        %1594 = vmatprep.subr.bf16.mxu0 0
        %1595 = vmatpush1.bf16.msra.mxu0 0
        %1596 = vmatprep.subr.bf16.mxu0 0
        %1597 = vmatpush1.bf16.msra.mxu0 0
        %1598 = vmatprep.mubr.bf16.mxu0 0
        %1599 = vmatmul.mubr.bf16.gmra.mrb[0].mxu0 %v1564
        %v1600 = vpop.f32.mrb[0].mxu0
        %v1601 = vadd.f32 %v1549, %v1600
        %v1602 = vpop.f32.mrb[0].mxu0
        %v1603 = vpop.f32.mrb[0].mxu0
        %v1604 = vpop.f32.mrb[0].mxu0
        %1605 = vdwg.mxu0
        %v1606 = vpack.c.bf16 %v1538, %v1538
        %v1607 = vpack.c.bf16 %v1601, %v1601
        %v1609 = vsel %vm914, %v1606, 0
        %v1612 = vsel %vm914, %v1607, 0
        %1614 = vmatprep.subr.bf16.mxu0 0
        %1615 = vmatpush1.bf16.xpose.msra.mxu0 %v1612
        %1616 = vmatprep.subr.bf16.mxu0 0
        %1617 = vmatpush1.bf16.xpose.msra.mxu0 0
        %1618 = vmatprep.subr.bf16.mxu0 0
        %1619 = vmatpush1.bf16.xpose.msra.mxu0 0
        %1620 = vmatprep.subr.bf16.mxu0 0
        %1621 = vmatpush1.bf16.xpose.msra.mxu0 0
        %1622 = vmatprep.subr.bf16.mxu0 0
        %1623 = vmatpush1.bf16.xpose.msra.mxu0 0
        %1624 = vmatprep.subr.bf16.mxu0 0
        %1625 = vmatpush1.bf16.xpose.msra.mxu0 0
        %1626 = vmatprep.subr.bf16.mxu0 0
        %1627 = vmatpush1.bf16.xpose.msra.mxu0 0
        %1628 = vmatprep.subr.bf16.mxu0 0
        %1629 = vmatpush1.bf16.xpose.msra.mxu0 0
        %1630 = vmatprep.subr.bf16.mxu0 0
        %1631 = vmatpush1.bf16.xpose.msra.mxu0 0
        %1632 = vmatprep.subr.bf16.mxu0 0
        %1633 = vmatpush1.bf16.xpose.msra.mxu0 0
        %1634 = vmatprep.subr.bf16.mxu0 0
        %1635 = vmatpush1.bf16.xpose.msra.mxu0 0
        %1636 = vmatprep.subr.bf16.mxu0 0
        %1637 = vmatpush1.bf16.xpose.msra.mxu0 0
        %1638 = vmatprep.subr.bf16.mxu0 0
        %1639 = vmatpush1.bf16.xpose.msra.mxu0 0
        %1640 = vmatprep.subr.bf16.mxu0 0
        %1641 = vmatpush1.bf16.xpose.msra.mxu0 0
        %1642 = vmatprep.subr.bf16.mxu0 0
        %1643 = vmatpush1.bf16.xpose.msra.mxu0 0
        %1644 = vmatprep.subr.bf16.mxu0 0
        %1645 = vmatpush1.bf16.xpose.msra.mxu0 0
        %1646 = vmatprep.mubr.bf16.mxu0 0
        %1647 = vmatmul.mubr.bf16.gmra.mrb[0].mxu0 %v1609
        %v1648 = vpop.f32.mrb[0].mxu0
        %v1649 = vadd.f32 0.0, %v1648
        %v1650 = vpop.f32.mrb[0].mxu0
        %v1651 = vpop.f32.mrb[0].mxu0
        %v1652 = vpop.f32.mrb[0].mxu0
        %1653 = vdwg.mxu0
        %v1654 = vsel %vm914, %v1649, -inf
        %1655 = vmax.xlane.f32.xlu0 %v1654
        %v1656 = vpop.xlane.xlu0 %1655
        %v1657 = vsub.f32 %v1649, %v1656
        %v1658 = vmul.f32 %v1657, 1.442695
        %v1659 = vpow.pop %v1658
        %v1660 = vsel %vm914, %v1659, 0.0
        %1661 = vadd.xlane.f32.xlu0 %v1660
        %v1662 = vpop.xlane.xlu0 %1661
        %v1663 = vrcp.pop %v1662
        %v1664 = vmul.f32 %v1659, %v1663
        %v1665 = vpack.c.bf16 %v1664, %v1664
        %1667 = vrot.lane.b32.xlu0 %v1607, 96
        %v1668 = vpop.permute.xlu0 %1667
        %v1670 = vsel %vm914, %v1665, 0
        %v1673 = vsel %vm978, %v1668, 0
        %1675 = vmatprep.subr.bf16.mxu0 0
        %1676 = vmatpush1.bf16.msra.mxu0 %v1673
        %1677 = vmatprep.subr.bf16.mxu0 0
        %1678 = vmatpush1.bf16.msra.mxu0 0
        %1679 = vmatprep.subr.bf16.mxu0 0
        %1680 = vmatpush1.bf16.msra.mxu0 0
        %1681 = vmatprep.subr.bf16.mxu0 0
        %1682 = vmatpush1.bf16.msra.mxu0 0
        %1683 = vmatprep.subr.bf16.mxu0 0
        %1684 = vmatpush1.bf16.msra.mxu0 0
        %1685 = vmatprep.subr.bf16.mxu0 0
        %1686 = vmatpush1.bf16.msra.mxu0 0
        %1687 = vmatprep.subr.bf16.mxu0 0
        %1688 = vmatpush1.bf16.msra.mxu0 0
        %1689 = vmatprep.subr.bf16.mxu0 0
        %1690 = vmatpush1.bf16.msra.mxu0 0
        %1691 = vmatprep.subr.bf16.mxu0 0
        %1692 = vmatpush1.bf16.msra.mxu0 0
        %1693 = vmatprep.subr.bf16.mxu0 0
        %1694 = vmatpush1.bf16.msra.mxu0 0
        %1695 = vmatprep.subr.bf16.mxu0 0
        %1696 = vmatpush1.bf16.msra.mxu0 0
        %1697 = vmatprep.subr.bf16.mxu0 0
        %1698 = vmatpush1.bf16.msra.mxu0 0
        %1699 = vmatprep.subr.bf16.mxu0 0
        %1700 = vmatpush1.bf16.msra.mxu0 0
        %1701 = vmatprep.subr.bf16.mxu0 0
        %1702 = vmatpush1.bf16.msra.mxu0 0
        %1703 = vmatprep.subr.bf16.mxu0 0
        %1704 = vmatpush1.bf16.msra.mxu0 0
        %1705 = vmatprep.subr.bf16.mxu0 0
        %1706 = vmatpush1.bf16.msra.mxu0 0
        %1707 = vmatprep.mubr.bf16.mxu0 0
        %1708 = vmatmul.mubr.bf16.gmra.mrb[0].mxu0 %v1670
        %v1709 = vpop.f32.mrb[0].mxu0
        %v1710 = vadd.f32 0.0, %v1709
        %v1711 = vpop.f32.mrb[0].mxu0
        %v1712 = vpop.f32.mrb[0].mxu0
        %v1713 = vpop.f32.mrb[0].mxu0
        %1714 = vdwg.mxu0
        %1715 = vst.msk [vmem:[#allocation2] sm:$0xff] %vm914, %v1710
        %1717 = vrot.lane.b32.xlu0 %v1606, 120
        %v1718 = vpop.permute.xlu0 %1717
        %1719 = vrot.lane.b32.xlu0 %v1607, 120
        %v1720 = vpop.permute.xlu0 %1719
        %v1722 = vsel %vm914, %v1718, 0
        %v1725 = vsel %vm914, %v1720, 0
        %1727 = vmatprep.subr.bf16.mxu0 0
        %1728 = vmatpush1.bf16.xpose.msra.mxu0 %v1725
        %1729 = vmatprep.subr.bf16.mxu0 0
        %1730 = vmatpush1.bf16.xpose.msra.mxu0 0
        %1731 = vmatprep.subr.bf16.mxu0 0
        %1732 = vmatpush1.bf16.xpose.msra.mxu0 0
        %1733 = vmatprep.subr.bf16.mxu0 0
        %1734 = vmatpush1.bf16.xpose.msra.mxu0 0
        %1735 = vmatprep.subr.bf16.mxu0 0
        %1736 = vmatpush1.bf16.xpose.msra.mxu0 0
        %1737 = vmatprep.subr.bf16.mxu0 0
        %1738 = vmatpush1.bf16.xpose.msra.mxu0 0
        %1739 = vmatprep.subr.bf16.mxu0 0
        %1740 = vmatpush1.bf16.xpose.msra.mxu0 0
        %1741 = vmatprep.subr.bf16.mxu0 0
        %1742 = vmatpush1.bf16.xpose.msra.mxu0 0
        %1743 = vmatprep.subr.bf16.mxu0 0
        %1744 = vmatpush1.bf16.xpose.msra.mxu0 0
        %1745 = vmatprep.subr.bf16.mxu0 0
        %1746 = vmatpush1.bf16.xpose.msra.mxu0 0
        %1747 = vmatprep.subr.bf16.mxu0 0
        %1748 = vmatpush1.bf16.xpose.msra.mxu0 0
        %1749 = vmatprep.subr.bf16.mxu0 0
        %1750 = vmatpush1.bf16.xpose.msra.mxu0 0
        %1751 = vmatprep.subr.bf16.mxu0 0
        %1752 = vmatpush1.bf16.xpose.msra.mxu0 0
        %1753 = vmatprep.subr.bf16.mxu0 0
        %1754 = vmatpush1.bf16.xpose.msra.mxu0 0
        %1755 = vmatprep.subr.bf16.mxu0 0
        %1756 = vmatpush1.bf16.xpose.msra.mxu0 0
        %1757 = vmatprep.subr.bf16.mxu0 0
        %1758 = vmatpush1.bf16.xpose.msra.mxu0 0
        %1759 = vmatprep.mubr.bf16.mxu0 0
        %1760 = vmatmul.mubr.bf16.gmra.mrb[0].mxu0 %v1722
        %v1761 = vpop.f32.mrb[0].mxu0
        %v1762 = vadd.f32 0.0, %v1761
        %v1763 = vpop.f32.mrb[0].mxu0
        %v1764 = vpop.f32.mrb[0].mxu0
        %v1765 = vpop.f32.mrb[0].mxu0
        %1766 = vdwg.mxu0
        %v1767 = vsel %vm914, %v1762, -inf
        %1768 = vmax.xlane.f32.xlu0 %v1767
        %v1769 = vpop.xlane.xlu0 %1768
        %v1770 = vsub.f32 %v1762, %v1769
        %v1771 = vmul.f32 %v1770, 1.442695
        %v1772 = vpow.pop %v1771
        %v1773 = vsel %vm914, %v1772, 0.0
        %1774 = vadd.xlane.f32.xlu0 %v1773
        %v1775 = vpop.xlane.xlu0 %1774
        %v1776 = vrcp.pop %v1775
        %v1777 = vmul.f32 %v1772, %v1776
        %v1778 = vpack.c.bf16 %v1777, %v1777
        %1779 = vrot.lane.b32.xlu0 %v1607, 88
        %v1780 = vpop.permute.xlu0 %1779
        %v1782 = vsel %vm914, %v1778, 0
        %v1785 = vsel %vm978, %v1780, 0
        %1787 = vmatprep.subr.bf16.mxu0 0
        %1788 = vmatpush1.bf16.msra.mxu0 %v1785
        %1789 = vmatprep.subr.bf16.mxu0 0
        %1790 = vmatpush1.bf16.msra.mxu0 0
        %1791 = vmatprep.subr.bf16.mxu0 0
        %1792 = vmatpush1.bf16.msra.mxu0 0
        %1793 = vmatprep.subr.bf16.mxu0 0
        %1794 = vmatpush1.bf16.msra.mxu0 0
        %1795 = vmatprep.subr.bf16.mxu0 0
        %1796 = vmatpush1.bf16.msra.mxu0 0
        %1797 = vmatprep.subr.bf16.mxu0 0
        %1798 = vmatpush1.bf16.msra.mxu0 0
        %1799 = vmatprep.subr.bf16.mxu0 0
        %1800 = vmatpush1.bf16.msra.mxu0 0
        %1801 = vmatprep.subr.bf16.mxu0 0
        %1802 = vmatpush1.bf16.msra.mxu0 0
        %1803 = vmatprep.subr.bf16.mxu0 0
        %1804 = vmatpush1.bf16.msra.mxu0 0
        %1805 = vmatprep.subr.bf16.mxu0 0
        %1806 = vmatpush1.bf16.msra.mxu0 0
        %1807 = vmatprep.subr.bf16.mxu0 0
        %1808 = vmatpush1.bf16.msra.mxu0 0
        %1809 = vmatprep.subr.bf16.mxu0 0
        %1810 = vmatpush1.bf16.msra.mxu0 0
        %1811 = vmatprep.subr.bf16.mxu0 0
        %1812 = vmatpush1.bf16.msra.mxu0 0
        %1813 = vmatprep.subr.bf16.mxu0 0
        %1814 = vmatpush1.bf16.msra.mxu0 0
        %1815 = vmatprep.subr.bf16.mxu0 0
        %1816 = vmatpush1.bf16.msra.mxu0 0
        %1817 = vmatprep.subr.bf16.mxu0 0
        %1818 = vmatpush1.bf16.msra.mxu0 0
        %1819 = vmatprep.mubr.bf16.mxu0 0
        %1820 = vmatmul.mubr.bf16.gmra.mrb[0].mxu0 %v1782
        %v1821 = vpop.f32.mrb[0].mxu0
        %v1822 = vadd.f32 0.0, %v1821
        %v1823 = vpop.f32.mrb[0].mxu0
        %v1824 = vpop.f32.mrb[0].mxu0
        %v1825 = vpop.f32.mrb[0].mxu0
        %1826 = vdwg.mxu0
        %1828 = vrot.lane.b32.xlu0 %v1822, 8
        %v1829 = vpop.permute.xlu0 %1828
        %1831 = vst.msk [vmem:[#allocation2] sm:$0xff] %vm1138, %v1829
        %1832 = vrot.lane.b32.xlu0 %v1606, 112
        %v1833 = vpop.permute.xlu0 %1832
        %1834 = vrot.lane.b32.xlu0 %v1607, 112
        %v1835 = vpop.permute.xlu0 %1834
        %v1837 = vsel %vm914, %v1833, 0
        %v1840 = vsel %vm914, %v1835, 0
        %1842 = vmatprep.subr.bf16.mxu0 0
        %1843 = vmatpush1.bf16.xpose.msra.mxu0 %v1840
        %1844 = vmatprep.subr.bf16.mxu0 0
        %1845 = vmatpush1.bf16.xpose.msra.mxu0 0
        %1846 = vmatprep.subr.bf16.mxu0 0
        %1847 = vmatpush1.bf16.xpose.msra.mxu0 0
        %1848 = vmatprep.subr.bf16.mxu0 0
        %1849 = vmatpush1.bf16.xpose.msra.mxu0 0
        %1850 = vmatprep.subr.bf16.mxu0 0
        %1851 = vmatpush1.bf16.xpose.msra.mxu0 0
        %1852 = vmatprep.subr.bf16.mxu0 0
        %1853 = vmatpush1.bf16.xpose.msra.mxu0 0
        %1854 = vmatprep.subr.bf16.mxu0 0
        %1855 = vmatpush1.bf16.xpose.msra.mxu0 0
        %1856 = vmatprep.subr.bf16.mxu0 0
        %1857 = vmatpush1.bf16.xpose.msra.mxu0 0
        %1858 = vmatprep.subr.bf16.mxu0 0
        %1859 = vmatpush1.bf16.xpose.msra.mxu0 0
        %1860 = vmatprep.subr.bf16.mxu0 0
        %1861 = vmatpush1.bf16.xpose.msra.mxu0 0
        %1862 = vmatprep.subr.bf16.mxu0 0
        %1863 = vmatpush1.bf16.xpose.msra.mxu0 0
        %1864 = vmatprep.subr.bf16.mxu0 0
        %1865 = vmatpush1.bf16.xpose.msra.mxu0 0
        %1866 = vmatprep.subr.bf16.mxu0 0
        %1867 = vmatpush1.bf16.xpose.msra.mxu0 0
        %1868 = vmatprep.subr.bf16.mxu0 0
        %1869 = vmatpush1.bf16.xpose.msra.mxu0 0
        %1870 = vmatprep.subr.bf16.mxu0 0
        %1871 = vmatpush1.bf16.xpose.msra.mxu0 0
        %1872 = vmatprep.subr.bf16.mxu0 0
        %1873 = vmatpush1.bf16.xpose.msra.mxu0 0
        %1874 = vmatprep.mubr.bf16.mxu0 0
        %1875 = vmatmul.mubr.bf16.gmra.mrb[0].mxu0 %v1837
        %v1876 = vpop.f32.mrb[0].mxu0
        %v1877 = vadd.f32 0.0, %v1876
        %v1878 = vpop.f32.mrb[0].mxu0
        %v1879 = vpop.f32.mrb[0].mxu0
        %v1880 = vpop.f32.mrb[0].mxu0
        %1881 = vdwg.mxu0
        %v1882 = vsel %vm914, %v1877, -inf
        %1883 = vmax.xlane.f32.xlu0 %v1882
        %v1884 = vpop.xlane.xlu0 %1883
        %v1885 = vsub.f32 %v1877, %v1884
        %v1886 = vmul.f32 %v1885, 1.442695
        %v1887 = vpow.pop %v1886
        %v1888 = vsel %vm914, %v1887, 0.0
        %1889 = vadd.xlane.f32.xlu0 %v1888
        %v1890 = vpop.xlane.xlu0 %1889
        %v1891 = vrcp.pop %v1890
        %v1892 = vmul.f32 %v1887, %v1891
        %v1893 = vpack.c.bf16 %v1892, %v1892
        %1894 = vrot.lane.b32.xlu0 %v1607, 80
        %v1895 = vpop.permute.xlu0 %1894
        %v1897 = vsel %vm914, %v1893, 0
        %v1900 = vsel %vm978, %v1895, 0
        %1902 = vmatprep.subr.bf16.mxu0 0
        %1903 = vmatpush1.bf16.msra.mxu0 %v1900
        %1904 = vmatprep.subr.bf16.mxu0 0
        %1905 = vmatpush1.bf16.msra.mxu0 0
        %1906 = vmatprep.subr.bf16.mxu0 0
        %1907 = vmatpush1.bf16.msra.mxu0 0
        %1908 = vmatprep.subr.bf16.mxu0 0
        %1909 = vmatpush1.bf16.msra.mxu0 0
        %1910 = vmatprep.subr.bf16.mxu0 0
        %1911 = vmatpush1.bf16.msra.mxu0 0
        %1912 = vmatprep.subr.bf16.mxu0 0
        %1913 = vmatpush1.bf16.msra.mxu0 0
        %1914 = vmatprep.subr.bf16.mxu0 0
        %1915 = vmatpush1.bf16.msra.mxu0 0
        %1916 = vmatprep.subr.bf16.mxu0 0
        %1917 = vmatpush1.bf16.msra.mxu0 0
        %1918 = vmatprep.subr.bf16.mxu0 0
        %1919 = vmatpush1.bf16.msra.mxu0 0
        %1920 = vmatprep.subr.bf16.mxu0 0
        %1921 = vmatpush1.bf16.msra.mxu0 0
        %1922 = vmatprep.subr.bf16.mxu0 0
        %1923 = vmatpush1.bf16.msra.mxu0 0
        %1924 = vmatprep.subr.bf16.mxu0 0
        %1925 = vmatpush1.bf16.msra.mxu0 0
        %1926 = vmatprep.subr.bf16.mxu0 0
        %1927 = vmatpush1.bf16.msra.mxu0 0
        %1928 = vmatprep.subr.bf16.mxu0 0
        %1929 = vmatpush1.bf16.msra.mxu0 0
        %1930 = vmatprep.subr.bf16.mxu0 0
        %1931 = vmatpush1.bf16.msra.mxu0 0
        %1932 = vmatprep.subr.bf16.mxu0 0
        %1933 = vmatpush1.bf16.msra.mxu0 0
        %1934 = vmatprep.mubr.bf16.mxu0 0
        %1935 = vmatmul.mubr.bf16.gmra.mrb[0].mxu0 %v1897
        %v1936 = vpop.f32.mrb[0].mxu0
        %v1937 = vadd.f32 0.0, %v1936
        %v1938 = vpop.f32.mrb[0].mxu0
        %v1939 = vpop.f32.mrb[0].mxu0
        %v1940 = vpop.f32.mrb[0].mxu0
        %1941 = vdwg.mxu0
        %1943 = vrot.lane.b32.xlu0 %v1937, 16
        %v1944 = vpop.permute.xlu0 %1943
        %1946 = vst.msk [vmem:[#allocation2] sm:$0xff] %vm1254, %v1944
        %1947 = vrot.lane.b32.xlu0 %v1606, 104
        %v1948 = vpop.permute.xlu0 %1947
        %1949 = vrot.lane.b32.xlu0 %v1607, 104
        %v1950 = vpop.permute.xlu0 %1949
        %v1952 = vsel %vm914, %v1948, 0
        %v1955 = vsel %vm914, %v1950, 0
        %1957 = vmatprep.subr.bf16.mxu0 0
        %1958 = vmatpush1.bf16.xpose.msra.mxu0 %v1955
        %1959 = vmatprep.subr.bf16.mxu0 0
        %1960 = vmatpush1.bf16.xpose.msra.mxu0 0
        %1961 = vmatprep.subr.bf16.mxu0 0
        %1962 = vmatpush1.bf16.xpose.msra.mxu0 0
        %1963 = vmatprep.subr.bf16.mxu0 0
        %1964 = vmatpush1.bf16.xpose.msra.mxu0 0
        %1965 = vmatprep.subr.bf16.mxu0 0
        %1966 = vmatpush1.bf16.xpose.msra.mxu0 0
        %1967 = vmatprep.subr.bf16.mxu0 0
        %1968 = vmatpush1.bf16.xpose.msra.mxu0 0
        %1969 = vmatprep.subr.bf16.mxu0 0
        %1970 = vmatpush1.bf16.xpose.msra.mxu0 0
        %1971 = vmatprep.subr.bf16.mxu0 0
        %1972 = vmatpush1.bf16.xpose.msra.mxu0 0
        %1973 = vmatprep.subr.bf16.mxu0 0
        %1974 = vmatpush1.bf16.xpose.msra.mxu0 0
        %1975 = vmatprep.subr.bf16.mxu0 0
        %1976 = vmatpush1.bf16.xpose.msra.mxu0 0
        %1977 = vmatprep.subr.bf16.mxu0 0
        %1978 = vmatpush1.bf16.xpose.msra.mxu0 0
        %1979 = vmatprep.subr.bf16.mxu0 0
        %1980 = vmatpush1.bf16.xpose.msra.mxu0 0
        %1981 = vmatprep.subr.bf16.mxu0 0
        %1982 = vmatpush1.bf16.xpose.msra.mxu0 0
        %1983 = vmatprep.subr.bf16.mxu0 0
        %1984 = vmatpush1.bf16.xpose.msra.mxu0 0
        %1985 = vmatprep.subr.bf16.mxu0 0
        %1986 = vmatpush1.bf16.xpose.msra.mxu0 0
        %1987 = vmatprep.subr.bf16.mxu0 0
        %1988 = vmatpush1.bf16.xpose.msra.mxu0 0
        %1989 = vmatprep.mubr.bf16.mxu0 0
        %1990 = vmatmul.mubr.bf16.gmra.mrb[0].mxu0 %v1952
        %v1991 = vpop.f32.mrb[0].mxu0
        %v1992 = vadd.f32 0.0, %v1991
        %v1993 = vpop.f32.mrb[0].mxu0
        %v1994 = vpop.f32.mrb[0].mxu0
        %v1995 = vpop.f32.mrb[0].mxu0
        %1996 = vdwg.mxu0
        %v1997 = vsel %vm914, %v1992, -inf
        %1998 = vmax.xlane.f32.xlu0 %v1997
        %v1999 = vpop.xlane.xlu0 %1998
        %v2000 = vsub.f32 %v1992, %v1999
        %v2001 = vmul.f32 %v2000, 1.442695
        %v2002 = vpow.pop %v2001
        %v2003 = vsel %vm914, %v2002, 0.0
        %2004 = vadd.xlane.f32.xlu0 %v2003
        %v2005 = vpop.xlane.xlu0 %2004
        %v2006 = vrcp.pop %v2005
        %v2007 = vmul.f32 %v2002, %v2006
        %v2008 = vpack.c.bf16 %v2007, %v2007
        %2009 = vrot.lane.b32.xlu0 %v1607, 72
        %v2010 = vpop.permute.xlu0 %2009
        %v2012 = vsel %vm914, %v2008, 0
        %v2015 = vsel %vm978, %v2010, 0
        %2017 = vmatprep.subr.bf16.mxu0 0
        %2018 = vmatpush1.bf16.msra.mxu0 %v2015
        %2019 = vmatprep.subr.bf16.mxu0 0
        %2020 = vmatpush1.bf16.msra.mxu0 0
        %2021 = vmatprep.subr.bf16.mxu0 0
        %2022 = vmatpush1.bf16.msra.mxu0 0
        %2023 = vmatprep.subr.bf16.mxu0 0
        %2024 = vmatpush1.bf16.msra.mxu0 0
        %2025 = vmatprep.subr.bf16.mxu0 0
        %2026 = vmatpush1.bf16.msra.mxu0 0
        %2027 = vmatprep.subr.bf16.mxu0 0
        %2028 = vmatpush1.bf16.msra.mxu0 0
        %2029 = vmatprep.subr.bf16.mxu0 0
        %2030 = vmatpush1.bf16.msra.mxu0 0
        %2031 = vmatprep.subr.bf16.mxu0 0
        %2032 = vmatpush1.bf16.msra.mxu0 0
        %2033 = vmatprep.subr.bf16.mxu0 0
        %2034 = vmatpush1.bf16.msra.mxu0 0
        %2035 = vmatprep.subr.bf16.mxu0 0
        %2036 = vmatpush1.bf16.msra.mxu0 0
        %2037 = vmatprep.subr.bf16.mxu0 0
        %2038 = vmatpush1.bf16.msra.mxu0 0
        %2039 = vmatprep.subr.bf16.mxu0 0
        %2040 = vmatpush1.bf16.msra.mxu0 0
        %2041 = vmatprep.subr.bf16.mxu0 0
        %2042 = vmatpush1.bf16.msra.mxu0 0
        %2043 = vmatprep.subr.bf16.mxu0 0
        %2044 = vmatpush1.bf16.msra.mxu0 0
        %2045 = vmatprep.subr.bf16.mxu0 0
        %2046 = vmatpush1.bf16.msra.mxu0 0
        %2047 = vmatprep.subr.bf16.mxu0 0
        %2048 = vmatpush1.bf16.msra.mxu0 0
        %2049 = vmatprep.mubr.bf16.mxu0 0
        %2050 = vmatmul.mubr.bf16.gmra.mrb[0].mxu0 %v2012
        %v2051 = vpop.f32.mrb[0].mxu0
        %v2052 = vadd.f32 0.0, %v2051
        %v2053 = vpop.f32.mrb[0].mxu0
        %v2054 = vpop.f32.mrb[0].mxu0
        %v2055 = vpop.f32.mrb[0].mxu0
        %2056 = vdwg.mxu0
        %2058 = vrot.lane.b32.xlu0 %v2052, 24
        %v2059 = vpop.permute.xlu0 %2058
        %2061 = vst.msk [vmem:[#allocation2] sm:$0xff] %vm1370, %v2059
        %v2062 = vld [vmem:[#allocation2] sm:$0xff]
        %v2063 = vld [vmem:[%s13] sm:$0xf]
        %v2064 = vld [vmem:[%s13 + $0x4] sm:$0xf]
        %v2065 = vld [vmem:[%s13 + $0x8] sm:$0xf]
        %v2066 = vld [vmem:[%s13 + $0xc] sm:$0xf]
        %v2067 = vpack.c.bf16 %v2062, %v2062
        %v2068 = vld [vmem:[%s14] sm:$0x1]
        %v2070 = vlaneseq
        %v2071 = vshrl.u32 %v2070, 7
        %v2072 = vsub.s32 0, %v2071
        %v2073 = vrot.slane %v2068, %v2072
        %v2079 = vunpack.c.l.b16 %v2063
        %v2080 = vunpack.c.l.b16 %v2064
        %v2081 = vunpack.c.l.b16 %v2065
        %v2082 = vunpack.c.l.b16 %v2066
        %v2083 = vpack.c.b16 %v2080, %v2079
        %v2084 = vpack.c.b16 %v2082, %v2081
        %v2088 = vsel %vm864, %v2067, 0
        %2090 = vmatprep.subr.bf16.mxu0 0
        %2091 = vmatpush1.bf16.msra.mxu0 %v2083
        %2092 = vmatprep.subr.bf16.mxu0 0
        %2093 = vmatpush1.bf16.msra.mxu0 %v2084
        %2094 = vmatprep.subr.bf16.mxu0 0
        %2095 = vmatpush1.bf16.msra.mxu0 0
        %2096 = vmatprep.subr.bf16.mxu0 0
        %2097 = vmatpush1.bf16.msra.mxu0 0
        %2098 = vmatprep.subr.bf16.mxu0 0
        %2099 = vmatpush1.bf16.msra.mxu0 0
        %2100 = vmatprep.subr.bf16.mxu0 0
        %2101 = vmatpush1.bf16.msra.mxu0 0
        %2102 = vmatprep.subr.bf16.mxu0 0
        %2103 = vmatpush1.bf16.msra.mxu0 0
        %2104 = vmatprep.subr.bf16.mxu0 0
        %2105 = vmatpush1.bf16.msra.mxu0 0
        %2106 = vmatprep.subr.bf16.mxu0 0
        %2107 = vmatpush1.bf16.msra.mxu0 0
        %2108 = vmatprep.subr.bf16.mxu0 0
        %2109 = vmatpush1.bf16.msra.mxu0 0
        %2110 = vmatprep.subr.bf16.mxu0 0
        %2111 = vmatpush1.bf16.msra.mxu0 0
        %2112 = vmatprep.subr.bf16.mxu0 0
        %2113 = vmatpush1.bf16.msra.mxu0 0
        %2114 = vmatprep.subr.bf16.mxu0 0
        %2115 = vmatpush1.bf16.msra.mxu0 0
        %2116 = vmatprep.subr.bf16.mxu0 0
        %2117 = vmatpush1.bf16.msra.mxu0 0
        %2118 = vmatprep.subr.bf16.mxu0 0
        %2119 = vmatpush1.bf16.msra.mxu0 0
        %2120 = vmatprep.subr.bf16.mxu0 0
        %2121 = vmatpush1.bf16.msra.mxu0 0
        %2122 = vmatprep.mubr.bf16.mxu0 0
        %2123 = vmatmul.mubr.bf16.gmra.mrb[0].mxu0 %v2088
        %v2124 = vpop.f32.mrb[0].mxu0
        %v2125 = vadd.f32 %v2073, %v2124
        %v2126 = vpop.f32.mrb[0].mxu0
        %v2127 = vpop.f32.mrb[0].mxu0
        %v2128 = vpop.f32.mrb[0].mxu0
        %2129 = vdwg.mxu0
        %v2130 = vadd.f32 %v1470, %v2125
        %v2131 = vld [vmem:[%s15] sm:$0x1]
        %v2132 = vld [vmem:[%s16] sm:$0x1]
        %v2133 = vsel %vm864, %v2130, 0.0
        %2134 = vadd.xlane.f32.xlu0 %v2133
        %v2135 = vpop.xlane.xlu0 %2134
        %v2136 = vmul.f32 %v2135, %v1446
        %v2137 = vsub.f32 %v2130, %v2136
        %v2138 = vmul.f32 %v2137, %v2137
        %v2139 = vsel %vm864, %v2138, 0.0
        %2140 = vadd.xlane.f32.xlu0 %v2139
        %v2141 = vpop.xlane.xlu0 %2140
        %v2142 = vmul.f32 %v2141, %v1446
        %v2143 = vadd.f32 %v2142, 1e-05
        %v2144 = vrsqrt.pop %v2143
        %v2145 = vmul.f32 %v2137, %v2144
        %v2147 = vlaneseq
        %v2148 = vshrl.u32 %v2147, 7
        %v2149 = vsub.s32 0, %v2148
        %v2150 = vrot.slane %v2131, %v2149
        %v2152 = vmul.f32 %v2145, %v2150
        %v2154 = vlaneseq
        %v2155 = vshrl.u32 %v2154, 7
        %v2156 = vsub.s32 0, %v2155
        %v2157 = vrot.slane %v2132, %v2156
        %v2159 = vadd.f32 %v2152, %v2157
        %v2160 = vld [vmem:[%s17] sm:$0xf]
        %v2161 = vld [vmem:[%s17 + $0x4] sm:$0xf]
        %v2162 = vld [vmem:[%s17 + $0x8] sm:$0xf]
        %v2163 = vld [vmem:[%s17 + $0xc] sm:$0xf]
        %v2164 = vpack.c.bf16 %v2159, %v2159
        %v2165 = vld [vmem:[%s18] sm:$0x1]
        %v2167 = vlaneseq
        %v2168 = vshrl.u32 %v2167, 7
        %v2169 = vsub.s32 0, %v2168
        %v2170 = vrot.slane %v2165, %v2169
        %v2176 = vunpack.c.l.b16 %v2160
        %v2177 = vunpack.c.l.b16 %v2161
        %v2178 = vunpack.c.l.b16 %v2162
        %v2179 = vunpack.c.l.b16 %v2163
        %v2180 = vpack.c.b16 %v2177, %v2176
        %v2181 = vpack.c.b16 %v2179, %v2178
        %v2185 = vsel %vm864, %v2164, 0
        %2187 = vmatprep.subr.bf16.mxu0 0
        %2188 = vmatpush1.bf16.msra.mxu0 %v2180
        %2189 = vmatprep.subr.bf16.mxu0 0
        %2190 = vmatpush1.bf16.msra.mxu0 %v2181
        %2191 = vmatprep.subr.bf16.mxu0 0
        %2192 = vmatpush1.bf16.msra.mxu0 0
        %2193 = vmatprep.subr.bf16.mxu0 0
        %2194 = vmatpush1.bf16.msra.mxu0 0
        %2195 = vmatprep.subr.bf16.mxu0 0
        %2196 = vmatpush1.bf16.msra.mxu0 0
        %2197 = vmatprep.subr.bf16.mxu0 0
        %2198 = vmatpush1.bf16.msra.mxu0 0
        %2199 = vmatprep.subr.bf16.mxu0 0
        %2200 = vmatpush1.bf16.msra.mxu0 0
        %2201 = vmatprep.subr.bf16.mxu0 0
        %2202 = vmatpush1.bf16.msra.mxu0 0
        %2203 = vmatprep.subr.bf16.mxu0 0
        %2204 = vmatpush1.bf16.msra.mxu0 0
        %2205 = vmatprep.subr.bf16.mxu0 0
        %2206 = vmatpush1.bf16.msra.mxu0 0
        %2207 = vmatprep.subr.bf16.mxu0 0
        %2208 = vmatpush1.bf16.msra.mxu0 0
        %2209 = vmatprep.subr.bf16.mxu0 0
        %2210 = vmatpush1.bf16.msra.mxu0 0
        %2211 = vmatprep.subr.bf16.mxu0 0
        %2212 = vmatpush1.bf16.msra.mxu0 0
        %2213 = vmatprep.subr.bf16.mxu0 0
        %2214 = vmatpush1.bf16.msra.mxu0 0
        %2215 = vmatprep.subr.bf16.mxu0 0
        %2216 = vmatpush1.bf16.msra.mxu0 0
        %2217 = vmatprep.subr.bf16.mxu0 0
        %2218 = vmatpush1.bf16.msra.mxu0 0
        %2219 = vmatprep.mubr.bf16.mxu0 0
        %2220 = vmatmul.mubr.bf16.gmra.mrb[0].mxu0 %v2185
        %v2221 = vpop.f32.mrb[0].mxu0
        %v2222 = vadd.f32 %v2170, %v2221
        %v2223 = vpop.f32.mrb[0].mxu0
        %v2224 = vpop.f32.mrb[0].mxu0
        %v2225 = vpop.f32.mrb[0].mxu0
        %2226 = vdwg.mxu0
        %v2227 = vmax.f32 %v2222, 0.0
        %v2228 = vld [vmem:[%s19] sm:$0xf]
        %v2229 = vld [vmem:[%s19 + $0x4] sm:$0xf]
        %v2230 = vld [vmem:[%s19 + $0x8] sm:$0xf]
        %v2231 = vld [vmem:[%s19 + $0xc] sm:$0xf]
        %v2232 = vld [vmem:[%s19 + $0x10] sm:$0xf]
        %v2233 = vld [vmem:[%s19 + $0x14] sm:$0xf]
        %v2234 = vld [vmem:[%s19 + $0x18] sm:$0xf]
        %v2235 = vld [vmem:[%s19 + $0x1c] sm:$0xf]
        %v2236 = vpack.c.bf16 %v2227, %v2227
        %v2237 = vld [vmem:[%s20] sm:$0x1]
        %v2239 = vlaneseq
        %v2240 = vshrl.u32 %v2239, 7
        %v2241 = vsub.s32 0, %v2240
        %v2242 = vrot.slane %v2237, %v2241
        %v2252 = vunpack.c.l.b16 %v2228
        %v2253 = vunpack.c.l.b16 %v2229
        %v2254 = vunpack.c.l.b16 %v2230
        %v2255 = vunpack.c.l.b16 %v2231
        %v2256 = vunpack.c.l.b16 %v2232
        %v2257 = vunpack.c.l.b16 %v2233
        %v2258 = vunpack.c.l.b16 %v2234
        %v2259 = vunpack.c.l.b16 %v2235
        %v2260 = vpack.c.b16 %v2253, %v2252
        %v2261 = vpack.c.b16 %v2255, %v2254
        %v2262 = vpack.c.b16 %v2257, %v2256
        %v2263 = vpack.c.b16 %v2259, %v2258
        %vm2268 = vcmask 523264
        %v2270 = vsel %vm2268, %v2236, 0
        %2272 = vmatprep.subr.bf16.mxu0 0
        %2273 = vmatpush1.bf16.msra.mxu0 %v2260
        %2274 = vmatprep.subr.bf16.mxu0 0
        %2275 = vmatpush1.bf16.msra.mxu0 %v2261
        %2276 = vmatprep.subr.bf16.mxu0 0
        %2277 = vmatpush1.bf16.msra.mxu0 %v2262
        %2278 = vmatprep.subr.bf16.mxu0 0
        %2279 = vmatpush1.bf16.msra.mxu0 %v2263
        %2280 = vmatprep.subr.bf16.mxu0 0
        %2281 = vmatpush1.bf16.msra.mxu0 0
        %2282 = vmatprep.subr.bf16.mxu0 0
        %2283 = vmatpush1.bf16.msra.mxu0 0
        %2284 = vmatprep.subr.bf16.mxu0 0
        %2285 = vmatpush1.bf16.msra.mxu0 0
        %2286 = vmatprep.subr.bf16.mxu0 0
        %2287 = vmatpush1.bf16.msra.mxu0 0
        %2288 = vmatprep.subr.bf16.mxu0 0
        %2289 = vmatpush1.bf16.msra.mxu0 0
        %2290 = vmatprep.subr.bf16.mxu0 0
        %2291 = vmatpush1.bf16.msra.mxu0 0
        %2292 = vmatprep.subr.bf16.mxu0 0
        %2293 = vmatpush1.bf16.msra.mxu0 0
        %2294 = vmatprep.subr.bf16.mxu0 0
        %2295 = vmatpush1.bf16.msra.mxu0 0
        %2296 = vmatprep.subr.bf16.mxu0 0
        %2297 = vmatpush1.bf16.msra.mxu0 0
        %2298 = vmatprep.subr.bf16.mxu0 0
        %2299 = vmatpush1.bf16.msra.mxu0 0
        %2300 = vmatprep.subr.bf16.mxu0 0
        %2301 = vmatpush1.bf16.msra.mxu0 0
        %2302 = vmatprep.subr.bf16.mxu0 0
        %2303 = vmatpush1.bf16.msra.mxu0 0
        %2304 = vmatprep.mubr.bf16.mxu0 0
        %2305 = vmatmul.mubr.bf16.gmra.mrb[0].mxu0 %v2270
        %v2306 = vpop.f32.mrb[0].mxu0
        %v2307 = vadd.f32 %v2242, %v2306
        %v2308 = vpop.f32.mrb[0].mxu0
        %v2309 = vpop.f32.mrb[0].mxu0
        %v2310 = vpop.f32.mrb[0].mxu0
        %2311 = vdwg.mxu0
        %v2312 = vadd.f32 %v2159, %v2307
        %v2313 = vld [vmem:[%s21] sm:$0x1]
        %v2314 = vld [vmem:[%s22] sm:$0x1]
        %v2315 = vsel %vm864, %v2312, 0.0
        %2316 = vadd.xlane.f32.xlu0 %v2315
        %v2317 = vpop.xlane.xlu0 %2316
        %v2318 = vmul.f32 %v2317, %v1446
        %v2319 = vsub.f32 %v2312, %v2318
        %v2320 = vmul.f32 %v2319, %v2319
        %v2321 = vsel %vm864, %v2320, 0.0
        %2322 = vadd.xlane.f32.xlu0 %v2321
        %v2323 = vpop.xlane.xlu0 %2322
        %v2324 = vmul.f32 %v2323, %v1446
        %v2325 = vadd.f32 %v2324, 1e-05
        %v2326 = vrsqrt.pop %v2325
        %v2327 = vmul.f32 %v2319, %v2326
        %v2329 = vlaneseq
        %v2330 = vshrl.u32 %v2329, 7
        %v2331 = vsub.s32 0, %v2330
        %v2332 = vrot.slane %v2313, %v2331
        %v2334 = vmul.f32 %v2327, %v2332
        %v2336 = vlaneseq
        %v2337 = vshrl.u32 %v2336, 7
        %v2338 = vsub.s32 0, %v2337
        %v2339 = vrot.slane %v2314, %v2338
        %v2341 = vadd.f32 %v2334, %v2339
        %v2342 = vpack.c.bf16 %v2341, %v2341
        %vm2343 = vcmask 257024
        %2344 = vst.msk [vmem:[%s825] sm:$0xf] %vm2343, %v2342
        %s2345 = sand.u32 %s551, 1
        %s2346 = scalar_lea.sflag [#allocation5], %s2345
        %s2347 = sand.u32 %s551, 1
        %s2348 = smul.addr %s2347, 4
        %s2349 = scalar_lea.vmem [#allocation14], %s2348
        // Predicated region
        $region137: #{tpu_custom_call.1} parent=111 // pred_check
          %p2350 = pneg %p561
        $region138: #{tpu_custom_call.1} parent=111 // pred_check_branch
          %2352 = sbr.rel (%p2350) target = $region140
        $region139: #{tpu_custom_call.1} parent=111 // pred_region
          %s2354 = ssub.s32 64, 64
          %2355 = vsyncadd %s2346, %s2354
          %s2356 = smul.addr %s45, 64
          %s2357 = scalar_lea.hbm %s23, %s2356
          %s2359 = sshll.u32 %s2349, 4
          %s2360 = int_to_ptr.vmem [resolvable:$true] %s2359
          %2362 = dma.vmem_to_hbm [thread:$0]  %s2360, 64, %s2357, %s2346
        $region140: #{tpu_custom_call.1} parent=111 // pred_fallthru
          _
      $region112: #{tpu_custom_call.1} parent=5 // pred_fallthru
        _
      %p2363 = scmp.le.s32.totalorder 2, %s40
      // Predicated region
      $region141: #{tpu_custom_call.1} parent=5 // pred_check
        %p2364 = pneg %p2363
      $region142: #{tpu_custom_call.1} parent=5 // pred_check_branch
        %2366 = sbr.rel (%p2364) target = $region144
      $region143: #{tpu_custom_call.1} parent=5 // pred_region
        %s2367 = ssub.s32 %s40, 2
        // Predicated region
        $region145: #{tpu_custom_call.1} parent=143 // pred_check
          %p2368 = pneg %p567
        $region146: #{tpu_custom_call.1} parent=143 // pred_check_branch
          %2370 = sbr.rel (%p2368) target = $region148
        $region147: #{tpu_custom_call.1} parent=143 // pred_region
          %s2371 = sand.u32 %s552, 1
          %s2372 = scalar_lea.sflag [#allocation5], %s2371
          %s2373 = sand.u32 %s552, 1
          %s2374 = smul.addr %s2373, 4
          %s2375 = scalar_lea.vmem [#allocation14], %s2374
          %2376 = dma.done %s2372, 64
        $region148: #{tpu_custom_call.1} parent=143 // pred_fallthru
          _
      $region144: #{tpu_custom_call.1} parent=5 // pred_fallthru
        _
    $region6: #{tpu_custom_call.1} parent=1 // loop_footer
      %s44 = sadd.s32 1, %s40
    $region7: #{tpu_custom_call.1} parent=1 // loop_footer_branch
      %39 = sbr.rel target = $region3
    $region8: #{tpu_custom_call.1} parent=1 // loop_exit
      _
    %2377 = vsyncpa [#allocation4], 1
    %s2378 = scalar_lea.sflag [#allocation4], 1
    %2379 = vsyncpa %s2378, 1
    %2380 = vsyncpa [#allocation7], 1
    %s2381 = scalar_lea.sflag [#allocation7], 1
    %2382 = vsyncpa %s2381, 1
    %2383 = vsyncpa [#allocation10], 1
    %2384 = vsyncpa [#allocation13], 1
    %2385 = vsyncpa [#allocation5], 1
    %s2386 = scalar_lea.sflag [#allocation5], 1
    %2387 = vsyncpa %s2386, 1

</llo_original>
